<compile_context>
chip_gen: v7x
topology: tpu7x:2x2x1
jax: 0.10.0
libtpu: 0.0.40
codegen_flags: <defaults>
</compile_context>

<pallas_src>
import functools

import jax
import jax.numpy as jnp
from jax import lax
from jax.experimental import pallas as pl
from jax.experimental.pallas import tpu as pltpu

# ---- scaled-down config (stand-ins for the real ResNet50 sizes) ----
B = 2                   # batch
IMG = 16                # input image spatial (stand-in for 224)
FEAT_HW = 4             # backbone feature-map spatial (stand-in for 7)
EMBED = 32              # attention embed dim / rgb channels (stand-in for 512)
C_TEX = 64              # texture backbone channels (stand-in for 2048)
NUM_CLASSES = 4
NPAD = 128              # classifier logits padded to a full 128-lane slab (dense vst)
PATCH = IMG // FEAT_HW  # 4x4 stride-4 patchify stem conv

# default matmul tiles: sized so (2 bufs per input + f32 acc) fits v7x's 64 MiB VMEM with
# headroom; v5e/v6e (128 MiB) could go larger but these already keep the MXU fed.
TM, TN, TK = 256, 256, 512


def _round_up(x, m):
    return (x + m - 1) // m * m


# ---------------- kernel 1: tiled linear (matmul + bias, optional ReLU) ----------------
def _linear_kernel(x_ref, w_ref, b_ref, o_ref, acc_ref, *, relu):
    @pl.when(pl.program_id(2) == 0)
    def _init():
        acc_ref[...] = jnp.zeros_like(acc_ref)

    acc_ref[...] += jnp.dot(x_ref[...].astype(jnp.bfloat16), w_ref[...],
                            preferred_element_type=jnp.float32)

    @pl.when(pl.program_id(2) == pl.num_programs(2) - 1)
    def _finalize():
        y = acc_ref[...] + b_ref[...]
        if relu:
            y = jnp.maximum(y, 0.0)
        o_ref[...] = y.astype(o_ref.dtype)


def linear_pallas(x, w_bf16, b, relu=False, *, tm=TM, tn=TN, tk=TK):
    """y = x @ w + b ; x:(M,K) f32, w:(K,N) bf16 (pre-transposed), b:(N,) f32."""
    M, K = x.shape
    _, N = w_bf16.shape
    tm = min(tm, _round_up(M, 8))
    tn = min(tn, _round_up(N, 128))
    tk = min(tk, _round_up(K, 128))
    Mp, Kp, Np = _round_up(M, tm), _round_up(K, tk), _round_up(N, tn)
    xp = jnp.pad(x, ((0, Mp - M), (0, Kp - K)))
    wp = jnp.pad(w_bf16, ((0, Kp - K), (0, Np - N)))
    bp = jnp.pad(b.reshape(1, -1), ((0, 0), (0, Np - N)))
    out = pl.pallas_call(
        functools.partial(_linear_kernel, relu=relu),
        out_shape=jax.ShapeDtypeStruct((Mp, Np), jnp.float32),
        grid=(Mp // tm, Np // tn, Kp // tk),
        in_specs=[pl.BlockSpec((tm, tk), lambda i, j, k: (i, k)),
                  pl.BlockSpec((tk, tn), lambda i, j, k: (k, j)),
                  pl.BlockSpec((1, tn), lambda i, j, k: (0, j))],
        out_specs=pl.BlockSpec((tm, tn), lambda i, j, k: (i, j)),
        scratch_shapes=[pltpu.VMEM((tm, tn), jnp.float32)],
        compiler_params=pltpu.CompilerParams(
            dimension_semantics=("parallel", "parallel", "arbitrary")),
    )(xp, wp, bp)
    return out[:M, :N]


# ------- kernel 2: texture stem conv + 1x1 texture_projection, fused (2 chained dots) ---
def _linear2_kernel(x_ref, w1_ref, b1_ref, w2_ref, b2_ref, o_ref):
    h = jnp.dot(x_ref[...].astype(jnp.bfloat16), w1_ref[...],
                preferred_element_type=jnp.float32) + b1_ref[...]
    h = jnp.maximum(h, 0.0)                                     # ReLU of the texture trunk
    o_ref[...] = (jnp.dot(h.astype(jnp.bfloat16), w2_ref[...],
                          preferred_element_type=jnp.float32) + b2_ref[...]).astype(o_ref.dtype)


def linear2_pallas(x, w1, b1, w2, b2, *, tm=TM):
    """relu(x @ w1 + b1) @ w2 + b2, intermediate kept on-chip.  Grid tiles M only
    (stem K and the 2048-wide projection K fit a single block even at real sizes)."""
    M, K1 = x.shape
    _, C = w1.shape
    _, N = w2.shape
    tm = min(tm, _round_up(M, 8))
    Mp = _round_up(M, tm)
    K1p, Cp, Np = _round_up(K1, 128), _round_up(C, 128), _round_up(N, 128)
    xp = jnp.pad(x, ((0, Mp - M), (0, K1p - K1)))
    w1p = jnp.pad(w1, ((0, K1p - K1), (0, Cp - C)))
    b1p = jnp.pad(b1.reshape(1, -1), ((0, 0), (0, Cp - C)))
    w2p = jnp.pad(w2, ((0, Cp - C), (0, Np - N)))
    b2p = jnp.pad(b2.reshape(1, -1), ((0, 0), (0, Np - N)))
    out = pl.pallas_call(
        _linear2_kernel,
        out_shape=jax.ShapeDtypeStruct((Mp, Np), jnp.float32),
        grid=(Mp // tm,),
        in_specs=[pl.BlockSpec((tm, K1p), lambda i: (i, 0)),
                  pl.BlockSpec((K1p, Cp), lambda i: (0, 0)),
                  pl.BlockSpec((1, Cp), lambda i: (0, 0)),
                  pl.BlockSpec((Cp, Np), lambda i: (0, 0)),
                  pl.BlockSpec((1, Np), lambda i: (0, 0))],
        out_specs=pl.BlockSpec((tm, Np), lambda i: (i, 0)),
        compiler_params=pltpu.CompilerParams(dimension_semantics=("parallel",)),
    )(xp, w1p, b1p, w2p, b2p)
    return out[:M, :N]


# -- kernel 3: CrossModalAttention + residual fuse + adaptive_avg_pool2d + fc (one call) --
def _attn_fused_head_kernel(rgbv_ref, texv_ref, wq_ref, wk_ref, wv_ref,
                            bq_ref, bk_ref, bv_ref, whead_ref, bhead_ref,
                            logits_ref, attw_ref, *, scale, inv_hw):
    bsz, seq, _ = rgbv_ref.shape
    wq, wk, wv = wq_ref[...], wk_ref[...], wv_ref[...]
    bq, bk, bv = bq_ref[...], bk_ref[...], bv_ref[...]
    for b in range(bsz):                       # whole batch folded into ONE invocation
        xq32 = rgbv_ref[b]                     # (S,E) rgb raw-view: query == key input
        xq = xq32.astype(jnp.bfloat16)
        xv = texv_ref[b].astype(jnp.bfloat16)  # projected-texture raw-view: value input
        q = jnp.dot(xq, wq, preferred_element_type=jnp.float32) + bq
        k = jnp.dot(xq, wk, preferred_element_type=jnp.float32) + bk
        v = jnp.dot(xv, wv, preferred_element_type=jnp.float32) + bv
        # scores = q @ k^T / sqrt(E): contract last dims directly (no XLU transpose of k)
        s = lax.dot_general(q.astype(jnp.bfloat16), k.astype(jnp.bfloat16),
                            (((1,), (1,)), ((), ())),
                            preferred_element_type=jnp.float32) * scale
        m = jnp.max(s, axis=-1, keepdims=True)
        e = jnp.exp(s - m)
        p = e * pl.reciprocal(jnp.sum(e, axis=-1, keepdims=True), approx=True)  # softmax(-1)
        attw_ref[b] = p
        ctx = jnp.dot(p.astype(jnp.bfloat16), v.astype(jnp.bfloat16),
                      preferred_element_type=jnp.float32)
        # fused = rgb_features + attended (identical raw-view layout); global avg-pool over
        # the NCHW spatial dims + fc are folded into the pre-expanded head weight.
        fused = (xq32 + ctx) * inv_hw          # (S, E)
        logit = bhead_ref[...]                 # (1, NPAD)
        for t in range(seq):
            logit = logit + jnp.dot(fused[t:t + 1, :].astype(jnp.bfloat16), whead_ref[t],
                                    preferred_element_type=jnp.float32)
        logits_ref[b] = logit


def attention_fused_head(rgb_view, tex_view, params):
    b, s, e = rgb_view.shape
    npad = params["head_b"].shape[-1]
    kernel = functools.partial(_attn_fused_head_kernel,
                               scale=1.0 / float(e) ** 0.5,   # / key.size(-1)**0.5
                               inv_hw=1.0 / float(s))
    logits, attw = pl.pallas_call(
        kernel,
        out_shape=(jax.ShapeDtypeStruct((b, 1, npad), jnp.float32),
                   jax.ShapeDtypeStruct((b, s, s), jnp.float32)),
        grid=(1,),
        in_specs=[pl.BlockSpec((b, s, e), lambda i: (0, 0, 0)),
                  pl.BlockSpec((b, s, e), lambda i: (0, 0, 0)),
                  pl.BlockSpec((e, e), lambda i: (0, 0)),
                  pl.BlockSpec((e, e), lambda i: (0, 0)),
                  pl.BlockSpec((e, e), lambda i: (0, 0)),
                  pl.BlockSpec((1, e), lambda i: (0, 0)),
                  pl.BlockSpec((1, e), lambda i: (0, 0)),
                  pl.BlockSpec((1, e), lambda i: (0, 0)),
                  pl.BlockSpec((s, e, npad), lambda i: (0, 0, 0)),
                  pl.BlockSpec((1, npad), lambda i: (0, 0))],
        out_specs=(pl.BlockSpec((b, 1, npad), lambda i: (0, 0, 0)),
                   pl.BlockSpec((b, s, s), lambda i: (0, 0, 0))),
        compiler_params=pltpu.CompilerParams(dimension_semantics=("arbitrary",)),
    )(rgb_view, tex_view, params["wq"], params["wk"], params["wv"],
      params["bq"], params["bk"], params["bv"], params["head_w"], params["head_b"])
    return logits.reshape(b, npad), attw


# ---------------- host glue ----------------
def _patchify(x, patch):
    """stride == kernel patchify: im2col degenerates to a pure reshape (no HBM blowup).
    Column order is (cin, ph, pw), matching conv_w.reshape(Cout,-1).T."""
    bn, cin, h, w = x.shape
    ho, wo = h // patch, w // patch
    p = x.reshape(bn, cin, ho, patch, wo, patch).transpose(0, 2, 4, 1, 3, 5)
    return p.reshape(bn * ho * wo, cin * patch * patch)


# ---------------- parameters (deterministic, synthetic; stored in kernel layout) --------
def init_params(key):
    ks = jax.random.split(key, 12)
    hw = FEAT_HW * FEAT_HW

    def w(k, shape, fan_in, dtype=jnp.bfloat16):
        return (jax.random.normal(k, shape, jnp.float32) / jnp.sqrt(float(fan_in))).astype(dtype)

    k_stem = 3 * PATCH * PATCH
    # fc = Linear(EMBED, num_classes): store W^T, lane-pad classes to NPAD, then expand so
    # the raw `.view(b,h*w,c)` layout maps straight to class logits (folds the avg-pool):
    # head_w[t, j, :] = fc_w^T[(t*EMBED + j) // hw, :]
    fc_w_t = w(ks[10], (EMBED, NUM_CLASSES), EMBED, jnp.float32)
    fc_w_t = jnp.pad(fc_w_t, ((0, 0), (0, NPAD - NUM_CLASSES)))
    head_w = jnp.repeat(fc_w_t, hw, axis=0).reshape(hw, EMBED, NPAD).astype(jnp.bfloat16)
    head_b = jnp.pad(jnp.zeros((1, NUM_CLASSES), jnp.float32),
                     ((0, 0), (0, NPAD - NUM_CLASSES)))
    return {
        # abbreviated rgb trunk: patchify stem conv, pre-flattened to x@W layout, bf16
        "rgb_w": w(ks[0], (k_stem, EMBED), k_stem),
        "rgb_b": jnp.zeros((EMBED,), jnp.float32),
        # abbreviated texture trunk stem + texture_projection = Conv2d(2048, 512, 1)
        "tex_w": w(ks[1], (k_stem, C_TEX), k_stem),
        "tex_b": jnp.zeros((C_TEX,), jnp.float32),
        "proj_w": w(ks[2], (C_TEX, EMBED), C_TEX),
        "proj_b": jax.random.normal(ks[3], (EMBED,), jnp.float32) / jnp.sqrt(float(C_TEX)),
        # CrossModalAttention(embed_dim): Linear weights pre-transposed (x @ W), bf16
        "wq": w(ks[4], (EMBED, EMBED), EMBED),
        "bq": jax.random.normal(ks[5], (1, EMBED), jnp.float32) / jnp.sqrt(float(EMBED)),
        "wk": w(ks[6], (EMBED, EMBED), EMBED),
        "bk": jax.random.normal(ks[7], (1, EMBED), jnp.float32) / jnp.sqrt(float(EMBED)),
        "wv": w(ks[8], (EMBED, EMBED), EMBED),
        "bv": jax.random.normal(ks[9], (1, EMBED), jnp.float32) / jnp.sqrt(float(EMBED)),
        # avg-pool + fc, pre-fused
        "head_w": head_w,
        "head_b": head_b,
    }


# ---------------- full forward pass ----------------
def forward(params, rgb_input, texture_input):
    bsz = rgb_input.shape[0]
    hw = FEAT_HW * FEAT_HW
    # TODO(synk): the two 50-layer ResNet50 trunks are abbreviated to one patchify stem conv
    # each; the full trunk's 1x1 convs reuse linear_pallas directly and its 3x3 convs would
    # use windowed BlockSpecs / manual DMA gather instead of HBM-materialized im2col.
    rgb_patches = _patchify(rgb_input, PATCH)                    # (B*HW, 3*P*P)
    tex_patches = _patchify(texture_input, PATCH)
    rgb_tok = linear_pallas(rgb_patches, params["rgb_w"], params["rgb_b"], relu=True)
    tex_tok = linear2_pallas(tex_patches, params["tex_w"], params["tex_b"],
                             params["proj_w"], params["proj_b"])  # trunk + 1x1 proj fused

    # layout plumbing (host glue): token-major -> NCHW, then torch's raw
    # `.view(b, h*w, c)` reinterpretation of the NCHW slab (reproduced exactly).
    rgb_view = rgb_tok.reshape(bsz, hw, EMBED).transpose(0, 2, 1).reshape(bsz, hw, EMBED)
    tex_view = tex_tok.reshape(bsz, hw, EMBED).transpose(0, 2, 1).reshape(bsz, hw, EMBED)

    # CrossModalAttention(query=rgb, key=rgb, value=texture) + fuse + pool + fc, one kernel.
    logits_padded, attw = attention_fused_head(rgb_view, tex_view, params)
    return logits_padded[:, :NUM_CLASSES], attw


if __name__ == "__main__":
    key = jax.random.PRNGKey(0)
    kp, kr, kt = jax.random.split(key, 3)
    params = init_params(kp)
    rgb = jax.random.normal(kr, (B, 3, IMG, IMG), jnp.float32)
    tex = jax.random.normal(kt, (B, 3, IMG, IMG), jnp.float32)

    out, attw = jax.jit(forward)(params, rgb, tex)
    jax.block_until_ready((out, attw))

    assert out.shape == (B, NUM_CLASSES), out.shape
    assert attw.shape == (B, FEAT_HW * FEAT_HW, FEAT_HW * FEAT_HW), attw.shape
    print("KERNEL_OK")
</pallas_src>

<mosaic_0001>
module attributes {stable_mosaic.version = 11 : i64} {
  func.func @_linear2_kernel(%arg0: i32, %arg1: memref<32x128xf32, #tpu.memory_space<vmem>>, %arg2: memref<128x128xbf16, #tpu.memory_space<vmem>>, %arg3: memref<1x128xf32, #tpu.memory_space<vmem>>, %arg4: memref<128x128xbf16, #tpu.memory_space<vmem>>, %arg5: memref<1x128xf32, #tpu.memory_space<vmem>>, %arg6: memref<32x128xf32, #tpu.memory_space<vmem>>) attributes {dimension_semantics = [#tpu.dimension_semantics<parallel>], iteration_bounds = array<i64: 1>, scalar_prefetch = 0 : i64, scratch_operands = 0 : i64, tpu.core_type = #tpu.core_type<tc>, window_params = [{transform_indices = @transform_0, window_bounds = array<i64: 32, 128>}, {pipeline_mode = #tpu.pipeline_mode<synchronous>, transform_indices = @transform_1, window_bounds = array<i64: 128, 128>}, {pipeline_mode = #tpu.pipeline_mode<synchronous>, transform_indices = @transform_2, window_bounds = array<i64: 1, 128>}, {pipeline_mode = #tpu.pipeline_mode<synchronous>, transform_indices = @transform_3, window_bounds = array<i64: 128, 128>}, {pipeline_mode = #tpu.pipeline_mode<synchronous>, transform_indices = @transform_4, window_bounds = array<i64: 1, 128>}, {transform_indices = @transform_5, window_bounds = array<i64: 32, 128>}]} {
    %c0 = arith.constant 0 : index
    %c0_0 = arith.constant 0 : index
    %0 = vector.load %arg1[%c0, %c0_0] : memref<32x128xf32, #tpu.memory_space<vmem>>, vector<32x128xf32>
    %1 = arith.truncf %0 : vector<32x128xf32> to vector<32x128xbf16>
    %c0_1 = arith.constant 0 : index
    %c0_2 = arith.constant 0 : index
    %2 = vector.load %arg2[%c0_1, %c0_2] : memref<128x128xbf16, #tpu.memory_space<vmem>>, vector<128x128xbf16>
    %cst = arith.constant dense<0.000000e+00> : vector<32x128xf32>
    %3 = tpu.matmul %1, %2, %cst {dimension_numbers = #tpu.dot_dimension_numbers<[1], [0], [0], [1], [0, 0, 1, 1], [], []>} : vector<32x128xbf16>, vector<128x128xbf16>, vector<32x128xf32> -> vector<32x128xf32>
    %c0_3 = arith.constant 0 : index
    %c0_4 = arith.constant 0 : index
    %4 = vector.load %arg3[%c0_3, %c0_4] : memref<1x128xf32, #tpu.memory_space<vmem>>, vector<1x128xf32>
    %5 = vector.broadcast %4 : vector<1x128xf32> to vector<32x128xf32>
    %6 = arith.addf %3, %5 : vector<32x128xf32>
    %cst_5 = arith.constant 0.000000e+00 : f32
    %7 = vector.broadcast %cst_5 : f32 to vector<32x128xf32>
    %8 = arith.maximumf %6, %7 : vector<32x128xf32>
    %9 = arith.truncf %8 : vector<32x128xf32> to vector<32x128xbf16>
    %c0_6 = arith.constant 0 : index
    %c0_7 = arith.constant 0 : index
    %10 = vector.load %arg4[%c0_6, %c0_7] : memref<128x128xbf16, #tpu.memory_space<vmem>>, vector<128x128xbf16>
    %cst_8 = arith.constant dense<0.000000e+00> : vector<32x128xf32>
    %11 = tpu.matmul %9, %10, %cst_8 {dimension_numbers = #tpu.dot_dimension_numbers<[1], [0], [0], [1], [0, 0, 1, 1], [], []>} : vector<32x128xbf16>, vector<128x128xbf16>, vector<32x128xf32> -> vector<32x128xf32>
    %c0_9 = arith.constant 0 : index
    %c0_10 = arith.constant 0 : index
    %12 = vector.load %arg5[%c0_9, %c0_10] : memref<1x128xf32, #tpu.memory_space<vmem>>, vector<1x128xf32>
    %13 = vector.broadcast %12 : vector<1x128xf32> to vector<32x128xf32>
    %14 = arith.addf %11, %13 : vector<32x128xf32>
    %c0_11 = arith.constant 0 : index
    %c0_12 = arith.constant 0 : index
    %15 = vector.load %arg6[%c0_11, %c0_12] : memref<32x128xf32, #tpu.memory_space<vmem>>, vector<32x128xf32>
    tpu.vector_store %arg6[%c0_11, %c0_12], %14 {strides = array<i32>} : memref<32x128xf32, #tpu.memory_space<vmem>>, vector<32x128xf32>,
    return
  }
  func.func @transform_0(%arg0: i32) -> (i32, i32) {
    %c0_i32 = arith.constant 0 : i32
    %c0_i32_0 = arith.constant 0 : i32
    return %arg0, %c0_i32 : i32, i32
  }
  func.func @transform_1(%arg0: i32) -> (i32, i32) {
    %c0_i32 = arith.constant 0 : i32
    %c0_i32_0 = arith.constant 0 : i32
    %c0_i32_1 = arith.constant 0 : i32
    return %c0_i32, %c0_i32_0 : i32, i32
  }
  func.func @transform_2(%arg0: i32) -> (i32, i32) {
    %c0_i32 = arith.constant 0 : i32
    %c0_i32_0 = arith.constant 0 : i32
    %c0_i32_1 = arith.constant 0 : i32
    return %c0_i32, %c0_i32_0 : i32, i32
  }
  func.func @transform_3(%arg0: i32) -> (i32, i32) {
    %c0_i32 = arith.constant 0 : i32
    %c0_i32_0 = arith.constant 0 : i32
    %c0_i32_1 = arith.constant 0 : i32
    return %c0_i32, %c0_i32_0 : i32, i32
  }
  func.func @transform_4(%arg0: i32) -> (i32, i32) {
    %c0_i32 = arith.constant 0 : i32
    %c0_i32_0 = arith.constant 0 : i32
    %c0_i32_1 = arith.constant 0 : i32
    return %c0_i32, %c0_i32_0 : i32, i32
  }
  func.func @transform_5(%arg0: i32) -> (i32, i32) {
    %c0_i32 = arith.constant 0 : i32
    %c0_i32_0 = arith.constant 0 : i32
    return %arg0, %c0_i32 : i32, i32
  }
}

module attributes {stable_mosaic.version = 11 : i64} {
  func.func @_linear_kernel(%arg0: i32, %arg1: i32, %arg2: i32, %arg3: memref<32x128xf32, #tpu.memory_space<vmem>>, %arg4: memref<128x128xbf16, #tpu.memory_space<vmem>>, %arg5: memref<1x128xf32, #tpu.memory_space<vmem>>, %arg6: memref<32x128xf32, #tpu.memory_space<vmem>>, %arg7: memref<32x128xf32, #tpu.memory_space<vmem>>) attributes {dimension_semantics = [#tpu.dimension_semantics<parallel>, #tpu.dimension_semantics<parallel>, #tpu.dimension_semantics<arbitrary>], iteration_bounds = array<i64: 1, 1, 1>, scalar_prefetch = 0 : i64, scratch_operands = 1 : i64, tpu.core_type = #tpu.core_type<tc>, window_params = [{transform_indices = @transform_0, window_bounds = array<i64: 32, 128>}, {transform_indices = @transform_1, window_bounds = array<i64: 128, 128>}, {transform_indices = @transform_2, window_bounds = array<i64: 1, 128>}, {transform_indices = @transform_3, window_bounds = array<i64: 32, 128>}]} {
    %c0_i32 = arith.constant 0 : i32
    %0 = arith.cmpi eq, %arg2, %c0_i32 : i32
    %1 = arith.extui %0 : i1 to i32
    %c0_i32_0 = arith.constant 0 : i32
    %2 = arith.cmpi ne, %1, %c0_i32_0 : i32
    scf.if %2 {
      %cst_10 = arith.constant 0.000000e+00 : f32
      %13 = vector.broadcast %cst_10 : f32 to vector<32x128xf32>
      %c0_11 = arith.constant 0 : index
      %c0_12 = arith.constant 0 : index
      %14 = vector.load %arg7[%c0_11, %c0_12] : memref<32x128xf32, #tpu.memory_space<vmem>>, vector<32x128xf32>
      tpu.vector_store %arg7[%c0_11, %c0_12], %13 {strides = array<i32>} : memref<32x128xf32, #tpu.memory_space<vmem>>, vector<32x128xf32>,
    } else {
    }
    %c0 = arith.constant 0 : index
    %c0_1 = arith.constant 0 : index
    %3 = vector.load %arg7[%c0, %c0_1] : memref<32x128xf32, #tpu.memory_space<vmem>>, vector<32x128xf32>
    %c0_2 = arith.constant 0 : index
    %c0_3 = arith.constant 0 : index
    %4 = vector.load %arg3[%c0_2, %c0_3] : memref<32x128xf32, #tpu.memory_space<vmem>>, vector<32x128xf32>
    %5 = arith.truncf %4 : vector<32x128xf32> to vector<32x128xbf16>
    %c0_4 = arith.constant 0 : index
    %c0_5 = arith.constant 0 : index
    %6 = vector.load %arg4[%c0_4, %c0_5] : memref<128x128xbf16, #tpu.memory_space<vmem>>, vector<128x128xbf16>
    %cst = arith.constant dense<0.000000e+00> : vector<32x128xf32>
    %7 = tpu.matmul %5, %6, %cst {dimension_numbers = #tpu.dot_dimension_numbers<[1], [0], [0], [1], [0, 0, 1, 1], [], []>} : vector<32x128xbf16>, vector<128x128xbf16>, vector<32x128xf32> -> vector<32x128xf32>
    %8 = arith.addf %3, %7 : vector<32x128xf32>
    %c0_6 = arith.constant 0 : index
    %c0_7 = arith.constant 0 : index
    %9 = vector.load %arg7[%c0_6, %c0_7] : memref<32x128xf32, #tpu.memory_space<vmem>>, vector<32x128xf32>
    tpu.vector_store %arg7[%c0_6, %c0_7], %8 {strides = array<i32>} : memref<32x128xf32, #tpu.memory_space<vmem>>, vector<32x128xf32>,
    %c0_i32_8 = arith.constant 0 : i32
    %10 = arith.cmpi eq, %arg2, %c0_i32_8 : i32
    %11 = arith.extui %10 : i1 to i32
    %c0_i32_9 = arith.constant 0 : i32
    %12 = arith.cmpi ne, %11, %c0_i32_9 : i32
    scf.if %12 {
      %c0_10 = arith.constant 0 : index
      %c0_11 = arith.constant 0 : index
      %13 = vector.load %arg7[%c0_10, %c0_11] : memref<32x128xf32, #tpu.memory_space<vmem>>, vector<32x128xf32>
      %c0_12 = arith.constant 0 : index
      %c0_13 = arith.constant 0 : index
      %14 = vector.load %arg5[%c0_12, %c0_13] : memref<1x128xf32, #tpu.memory_space<vmem>>, vector<1x128xf32>
      %15 = vector.broadcast %14 : vector<1x128xf32> to vector<32x128xf32>
      %16 = arith.addf %13, %15 : vector<32x128xf32>
      %cst_14 = arith.constant 0.000000e+00 : f32
      %17 = vector.broadcast %cst_14 : f32 to vector<32x128xf32>
      %18 = arith.maximumf %16, %17 : vector<32x128xf32>
      %c0_15 = arith.constant 0 : index
      %c0_16 = arith.constant 0 : index
      %19 = vector.load %arg6[%c0_15, %c0_16] : memref<32x128xf32, #tpu.memory_space<vmem>>, vector<32x128xf32>
      tpu.vector_store %arg6[%c0_15, %c0_16], %18 {strides = array<i32>} : memref<32x128xf32, #tpu.memory_space<vmem>>, vector<32x128xf32>,
    } else {
    }
    return
  }
  func.func @transform_0(%arg0: i32, %arg1: i32, %arg2: i32) -> (i32, i32) {
    %c0_i32 = arith.constant 0 : i32
    return %arg0, %arg2 : i32, i32
  }
  func.func @transform_1(%arg0: i32, %arg1: i32, %arg2: i32) -> (i32, i32) {
    %c0_i32 = arith.constant 0 : i32
    return %arg2, %arg1 : i32, i32
  }
  func.func @transform_2(%arg0: i32, %arg1: i32, %arg2: i32) -> (i32, i32) {
    %c0_i32 = arith.constant 0 : i32
    %c0_i32_0 = arith.constant 0 : i32
    return %c0_i32, %arg1 : i32, i32
  }
  func.func @transform_3(%arg0: i32, %arg1: i32, %arg2: i32) -> (i32, i32) {
    %c0_i32 = arith.constant 0 : i32
    return %arg0, %arg1 : i32, i32
  }
}

module attributes {stable_mosaic.version = 11 : i64} {
  func.func @_attn_fused_head_kernel(%arg0: i32, %arg1: memref<2x16x32xf32, #tpu.memory_space<vmem>>, %arg2: memref<2x16x32xf32, #tpu.memory_space<vmem>>, %arg3: memref<32x32xbf16, #tpu.memory_space<vmem>>, %arg4: memref<32x32xbf16, #tpu.memory_space<vmem>>, %arg5: memref<32x32xbf16, #tpu.memory_space<vmem>>, %arg6: memref<1x32xf32, #tpu.memory_space<vmem>>, %arg7: memref<1x32xf32, #tpu.memory_space<vmem>>, %arg8: memref<1x32xf32, #tpu.memory_space<vmem>>, %arg9: memref<16x32x128xbf16, #tpu.memory_space<vmem>>, %arg10: memref<1x128xf32, #tpu.memory_space<vmem>>, %arg11: memref<2x1x128xf32, #tpu.memory_space<vmem>>, %arg12: memref<2x16x16xf32, #tpu.memory_space<vmem>>) attributes {dimension_semantics = [#tpu.dimension_semantics<arbitrary>], iteration_bounds = array<i64: 1>, scalar_prefetch = 0 : i64, scratch_operands = 0 : i64, tpu.core_type = #tpu.core_type<tc>, window_params = [{pipeline_mode = #tpu.pipeline_mode<synchronous>, transform_indices = @transform_0, window_bounds = array<i64: 2, 16, 32>}, {pipeline_mode = #tpu.pipeline_mode<synchronous>, transform_indices = @transform_1, window_bounds = array<i64: 2, 16, 32>}, {pipeline_mode = #tpu.pipeline_mode<synchronous>, transform_indices = @transform_2, window_bounds = array<i64: 32, 32>}, {pipeline_mode = #tpu.pipeline_mode<synchronous>, transform_indices = @transform_3, window_bounds = array<i64: 32, 32>}, {pipeline_mode = #tpu.pipeline_mode<synchronous>, transform_indices = @transform_4, window_bounds = array<i64: 32, 32>}, {pipeline_mode = #tpu.pipeline_mode<synchronous>, transform_indices = @transform_5, window_bounds = array<i64: 1, 32>}, {pipeline_mode = #tpu.pipeline_mode<synchronous>, transform_indices = @transform_6, window_bounds = array<i64: 1, 32>}, {pipeline_mode = #tpu.pipeline_mode<synchronous>, transform_indices = @transform_7, window_bounds = array<i64: 1, 32>}, {pipeline_mode = #tpu.pipeline_mode<synchronous>, transform_indices = @transform_8, window_bounds = array<i64: 16, 32, 128>}, {pipeline_mode = #tpu.pipeline_mode<synchronous>, transform_indices = @transform_9, window_bounds = array<i64: 1, 128>}, {pipeline_mode = #tpu.pipeline_mode<synchronous>, transform_indices = @transform_10, window_bounds = array<i64: 2, 1, 128>}, {pipeline_mode = #tpu.pipeline_mode<synchronous>, transform_indices = @transform_11, window_bounds = array<i64: 2, 16, 16>}]} {
    %c0 = arith.constant 0 : index
    %c0_0 = arith.constant 0 : index
    %0 = vector.load %arg3[%c0, %c0_0] : memref<32x32xbf16, #tpu.memory_space<vmem>>, vector<32x32xbf16>
    %c0_1 = arith.constant 0 : index
    %c0_2 = arith.constant 0 : index
    %1 = vector.load %arg4[%c0_1, %c0_2] : memref<32x32xbf16, #tpu.memory_space<vmem>>, vector<32x32xbf16>
    %c0_3 = arith.constant 0 : index
    %c0_4 = arith.constant 0 : index
    %2 = vector.load %arg5[%c0_3, %c0_4] : memref<32x32xbf16, #tpu.memory_space<vmem>>, vector<32x32xbf16>
    %c0_5 = arith.constant 0 : index
    %c0_6 = arith.constant 0 : index
    %3 = vector.load %arg6[%c0_5, %c0_6] : memref<1x32xf32, #tpu.memory_space<vmem>>, vector<1x32xf32>
    %c0_7 = arith.constant 0 : index
    %c0_8 = arith.constant 0 : index
    %4 = vector.load %arg7[%c0_7, %c0_8] : memref<1x32xf32, #tpu.memory_space<vmem>>, vector<1x32xf32>
    %c0_9 = arith.constant 0 : index
    %c0_10 = arith.constant 0 : index
    %5 = vector.load %arg8[%c0_9, %c0_10] : memref<1x32xf32, #tpu.memory_space<vmem>>, vector<1x32xf32>
    %c0_11 = arith.constant 0 : index
    %c0_12 = arith.constant 0 : index
    %c0_13 = arith.constant 0 : index
    %6 = vector.load %arg1[%c0_11, %c0_12, %c0_13] : memref<2x16x32xf32, #tpu.memory_space<vmem>>, vector<1x16x32xf32>
    %7 = vector.shape_cast %6 : vector<1x16x32xf32> to vector<16x32xf32>
    %8 = arith.truncf %7 : vector<16x32xf32> to vector<16x32xbf16>
    %c0_14 = arith.constant 0 : index
    %c0_15 = arith.constant 0 : index
    %c0_16 = arith.constant 0 : index
    %9 = vector.load %arg2[%c0_14, %c0_15, %c0_16] : memref<2x16x32xf32, #tpu.memory_space<vmem>>, vector<1x16x32xf32>
    %10 = vector.shape_cast %9 : vector<1x16x32xf32> to vector<16x32xf32>
    %11 = arith.truncf %10 : vector<16x32xf32> to vector<16x32xbf16>
    %cst = arith.constant dense<0.000000e+00> : vector<16x32xf32>
    %12 = tpu.matmul %8, %0, %cst {dimension_numbers = #tpu.dot_dimension_numbers<[1], [0], [0], [1], [0, 0, 1, 1], [], []>} : vector<16x32xbf16>, vector<32x32xbf16>, vector<16x32xf32> -> vector<16x32xf32>
    %13 = vector.broadcast %3 : vector<1x32xf32> to vector<16x32xf32>
    %14 = arith.addf %12, %13 : vector<16x32xf32>
    %cst_17 = arith.constant dense<0.000000e+00> : vector<16x32xf32>
    %15 = tpu.matmul %8, %1, %cst_17 {dimension_numbers = #tpu.dot_dimension_numbers<[1], [0], [0], [1], [0, 0, 1, 1], [], []>} : vector<16x32xbf16>, vector<32x32xbf16>, vector<16x32xf32> -> vector<16x32xf32>
    %16 = vector.broadcast %4 : vector<1x32xf32> to vector<16x32xf32>
    %17 = arith.addf %15, %16 : vector<16x32xf32>
    %cst_18 = arith.constant dense<0.000000e+00> : vector<16x32xf32>
    %18 = tpu.matmul %11, %2, %cst_18 {dimension_numbers = #tpu.dot_dimension_numbers<[1], [0], [0], [1], [0, 0, 1, 1], [], []>} : vector<16x32xbf16>, vector<32x32xbf16>, vector<16x32xf32> -> vector<16x32xf32>
    %19 = vector.broadcast %5 : vector<1x32xf32> to vector<16x32xf32>
    %20 = arith.addf %18, %19 : vector<16x32xf32>
    %21 = arith.truncf %14 : vector<16x32xf32> to vector<16x32xbf16>
    %22 = arith.truncf %17 : vector<16x32xf32> to vector<16x32xbf16>
    %cst_19 = arith.constant dense<0.000000e+00> : vector<16x16xf32>
    %23 = tpu.matmul %21, %22, %cst_19 {dimension_numbers = #tpu.dot_dimension_numbers<[1], [1], [0], [0], [0, 0, 1, 0], [], []>} : vector<16x32xbf16>, vector<16x32xbf16>, vector<16x16xf32> -> vector<16x16xf32>
    %cst_20 = arith.constant 0.176776692 : f32
    %24 = vector.broadcast %cst_20 : f32 to vector<16x16xf32>
    %25 = arith.mulf %23, %24 : vector<16x16xf32>
    %cst_21 = arith.constant dense<0xFF800000> : vector<16xf32>
    %26 = vector.multi_reduction <maximumf>, %25, %cst_21 [1] : vector<16x16xf32> to vector<16xf32>
    %27 = vector.shape_cast %26 : vector<16xf32> to vector<16x1xf32>
    %28 = vector.broadcast %27 : vector<16x1xf32> to vector<16x16xf32>
    %29 = arith.subf %25, %28 : vector<16x16xf32>
    %30 = math.exp %29 : vector<16x16xf32>
    %cst_22 = arith.constant dense<0.000000e+00> : vector<16xf32>
    %31 = vector.multi_reduction <add>, %30, %cst_22 [1] : vector<16x16xf32> to vector<16xf32>
    %32 = vector.shape_cast %31 : vector<16xf32> to vector<16x1xf32>
    %33 = tpu.reciprocal %32 {approx = true} : vector<16x1xf32> -> vector<16x1xf32>
    %34 = vector.broadcast %33 : vector<16x1xf32> to vector<16x16xf32>
    %35 = arith.mulf %30, %34 : vector<16x16xf32>
    %c0_23 = arith.constant 0 : index
    %c0_24 = arith.constant 0 : index
    %c0_25 = arith.constant 0 : index
    %36 = vector.load %arg12[%c0_23, %c0_24, %c0_25] : memref<2x16x16xf32, #tpu.memory_space<vmem>>, vector<1x16x16xf32>
    %37 = vector.shape_cast %36 : vector<1x16x16xf32> to vector<16x16xf32>
    %38 = vector.shape_cast %35 : vector<16x16xf32> to vector<1x16x16xf32>
    tpu.vector_store %arg12[%c0_23, %c0_24, %c0_25], %38 {strides = array<i32>} : memref<2x16x16xf32, #tpu.memory_space<vmem>>, vector<1x16x16xf32>,
    %39 = arith.truncf %35 : vector<16x16xf32> to vector<16x16xbf16>
    %40 = arith.truncf %20 : vector<16x32xf32> to vector<16x32xbf16>
    %cst_26 = arith.constant dense<0.000000e+00> : vector<16x32xf32>
    %41 = tpu.matmul %39, %40, %cst_26 {dimension_numbers = #tpu.dot_dimension_numbers<[1], [0], [0], [1], [0, 0, 1, 1], [], []>} : vector<16x16xbf16>, vector<16x32xbf16>, vector<16x32xf32> -> vector<16x32xf32>
    %42 = arith.addf %7, %41 : vector<16x32xf32>
    %cst_27 = arith.constant 6.250000e-02 : f32
    %43 = vector.broadcast %cst_27 : f32 to vector<16x32xf32>
    %44 = arith.mulf %42, %43 : vector<16x32xf32>
    %c0_28 = arith.constant 0 : index
    %c0_29 = arith.constant 0 : index
    %45 = vector.load %arg10[%c0_28, %c0_29] : memref<1x128xf32, #tpu.memory_space<vmem>>, vector<1x128xf32>
    %46 = vector.extract_strided_slice %44 {offsets = [0, 0], sizes = [1, 32], strides = [1, 1]} : vector<16x32xf32> to vector<1x32xf32>
    %47 = arith.truncf %46 : vector<1x32xf32> to vector<1x32xbf16>
    %c0_30 = arith.constant 0 : index
    %c0_31 = arith.constant 0 : index
    %c0_32 = arith.constant 0 : index
    %48 = vector.load %arg9[%c0_30, %c0_31, %c0_32] : memref<16x32x128xbf16, #tpu.memory_space<vmem>>, vector<1x32x128xbf16>
    %49 = vector.shape_cast %48 : vector<1x32x128xbf16> to vector<32x128xbf16>
    %cst_33 = arith.constant dense<0.000000e+00> : vector<1x128xf32>
    %50 = tpu.matmul %47, %49, %cst_33 {dimension_numbers = #tpu.dot_dimension_numbers<[1], [0], [0], [1], [0, 0, 1, 1], [], []>} : vector<1x32xbf16>, vector<32x128xbf16>, vector<1x128xf32> -> vector<1x128xf32>
    %51 = arith.addf %45, %50 : vector<1x128xf32>
    %52 = vector.extract_strided_slice %44 {offsets = [1, 0], sizes = [1, 32], strides = [1, 1]} : vector<16x32xf32> to vector<1x32xf32>
    %53 = arith.truncf %52 : vector<1x32xf32> to vector<1x32xbf16>
    %c1 = arith.constant 1 : index
    %c0_34 = arith.constant 0 : index
    %c0_35 = arith.constant 0 : index
    %54 = vector.load %arg9[%c1, %c0_34, %c0_35] : memref<16x32x128xbf16, #tpu.memory_space<vmem>>, vector<1x32x128xbf16>
    %55 = vector.shape_cast %54 : vector<1x32x128xbf16> to vector<32x128xbf16>
    %cst_36 = arith.constant dense<0.000000e+00> : vector<1x128xf32>
    %56 = tpu.matmul %53, %55, %cst_36 {dimension_numbers = #tpu.dot_dimension_numbers<[1], [0], [0], [1], [0, 0, 1, 1], [], []>} : vector<1x32xbf16>, vector<32x128xbf16>, vector<1x128xf32> -> vector<1x128xf32>
    %57 = arith.addf %51, %56 : vector<1x128xf32>
    %58 = vector.extract_strided_slice %44 {offsets = [2, 0], sizes = [1, 32], strides = [1, 1]} : vector<16x32xf32> to vector<1x32xf32>
    %59 = arith.truncf %58 : vector<1x32xf32> to vector<1x32xbf16>
    %c2 = arith.constant 2 : index
    %c0_37 = arith.constant 0 : index
    %c0_38 = arith.constant 0 : index
    %60 = vector.load %arg9[%c2, %c0_37, %c0_38] : memref<16x32x128xbf16, #tpu.memory_space<vmem>>, vector<1x32x128xbf16>
    %61 = vector.shape_cast %60 : vector<1x32x128xbf16> to vector<32x128xbf16>
    %cst_39 = arith.constant dense<0.000000e+00> : vector<1x128xf32>
    %62 = tpu.matmul %59, %61, %cst_39 {dimension_numbers = #tpu.dot_dimension_numbers<[1], [0], [0], [1], [0, 0, 1, 1], [], []>} : vector<1x32xbf16>, vector<32x128xbf16>, vector<1x128xf32> -> vector<1x128xf32>
    %63 = arith.addf %57, %62 : vector<1x128xf32>
    %64 = vector.extract_strided_slice %44 {offsets = [3, 0], sizes = [1, 32], strides = [1, 1]} : vector<16x32xf32> to vector<1x32xf32>
    %65 = arith.truncf %64 : vector<1x32xf32> to vector<1x32xbf16>
    %c3 = arith.constant 3 : index
    %c0_40 = arith.constant 0 : index
    %c0_41 = arith.constant 0 : index
    %66 = vector.load %arg9[%c3, %c0_40, %c0_41] : memref<16x32x128xbf16, #tpu.memory_space<vmem>>, vector<1x32x128xbf16>
    %67 = vector.shape_cast %66 : vector<1x32x128xbf16> to vector<32x128xbf16>
    %cst_42 = arith.constant dense<0.000000e+00> : vector<1x128xf32>
    %68 = tpu.matmul %65, %67, %cst_42 {dimension_numbers = #tpu.dot_dimension_numbers<[1], [0], [0], [1], [0, 0, 1, 1], [], []>} : vector<1x32xbf16>, vector<32x128xbf16>, vector<1x128xf32> -> vector<1x128xf32>
    %69 = arith.addf %63, %68 : vector<1x128xf32>
    %70 = vector.extract_strided_slice %44 {offsets = [4, 0], sizes = [1, 32], strides = [1, 1]} : vector<16x32xf32> to vector<1x32xf32>
    %71 = arith.truncf %70 : vector<1x32xf32> to vector<1x32xbf16>
    %c4 = arith.constant 4 : index
    %c0_43 = arith.constant 0 : index
    %c0_44 = arith.constant 0 : index
    %72 = vector.load %arg9[%c4, %c0_43, %c0_44] : memref<16x32x128xbf16, #tpu.memory_space<vmem>>, vector<1x32x128xbf16>
    %73 = vector.shape_cast %72 : vector<1x32x128xbf16> to vector<32x128xbf16>
    %cst_45 = arith.constant dense<0.000000e+00> : vector<1x128xf32>
    %74 = tpu.matmul %71, %73, %cst_45 {dimension_numbers = #tpu.dot_dimension_numbers<[1], [0], [0], [1], [0, 0, 1, 1], [], []>} : vector<1x32xbf16>, vector<32x128xbf16>, vector<1x128xf32> -> vector<1x128xf32>
    %75 = arith.addf %69, %74 : vector<1x128xf32>
    %76 = vector.extract_strided_slice %44 {offsets = [5, 0], sizes = [1, 32], strides = [1, 1]} : vector<16x32xf32> to vector<1x32xf32>
    %77 = arith.truncf %76 : vector<1x32xf32> to vector<1x32xbf16>
    %c5 = arith.constant 5 : index
    %c0_46 = arith.constant 0 : index
    %c0_47 = arith.constant 0 : index
    %78 = vector.load %arg9[%c5, %c0_46, %c0_47] : memref<16x32x128xbf16, #tpu.memory_space<vmem>>, vector<1x32x128xbf16>
    %79 = vector.shape_cast %78 : vector<1x32x128xbf16> to vector<32x128xbf16>
    %cst_48 = arith.constant dense<0.000000e+00> : vector<1x128xf32>
    %80 = tpu.matmul %77, %79, %cst_48 {dimension_numbers = #tpu.dot_dimension_numbers<[1], [0], [0], [1], [0, 0, 1, 1], [], []>} : vector<1x32xbf16>, vector<32x128xbf16>, vector<1x128xf32> -> vector<1x128xf32>
    %81 = arith.addf %75, %80 : vector<1x128xf32>
    %82 = vector.extract_strided_slice %44 {offsets = [6, 0], sizes = [1, 32], strides = [1, 1]} : vector<16x32xf32> to vector<1x32xf32>
    %83 = arith.truncf %82 : vector<1x32xf32> to vector<1x32xbf16>
    %c6 = arith.constant 6 : index
    %c0_49 = arith.constant 0 : index
    %c0_50 = arith.constant 0 : index
    %84 = vector.load %arg9[%c6, %c0_49, %c0_50] : memref<16x32x128xbf16, #tpu.memory_space<vmem>>, vector<1x32x128xbf16>
    %85 = vector.shape_cast %84 : vector<1x32x128xbf16> to vector<32x128xbf16>
    %cst_51 = arith.constant dense<0.000000e+00> : vector<1x128xf32>
    %86 = tpu.matmul %83, %85, %cst_51 {dimension_numbers = #tpu.dot_dimension_numbers<[1], [0], [0], [1], [0, 0, 1, 1], [], []>} : vector<1x32xbf16>, vector<32x128xbf16>, vector<1x128xf32> -> vector<1x128xf32>
    %87 = arith.addf %81, %86 : vector<1x128xf32>
    %88 = vector.extract_strided_slice %44 {offsets = [7, 0], sizes = [1, 32], strides = [1, 1]} : vector<16x32xf32> to vector<1x32xf32>
    %89 = arith.truncf %88 : vector<1x32xf32> to vector<1x32xbf16>
    %c7 = arith.constant 7 : index
    %c0_52 = arith.constant 0 : index
    %c0_53 = arith.constant 0 : index
    %90 = vector.load %arg9[%c7, %c0_52, %c0_53] : memref<16x32x128xbf16, #tpu.memory_space<vmem>>, vector<1x32x128xbf16>
    %91 = vector.shape_cast %90 : vector<1x32x128xbf16> to vector<32x128xbf16>
    %cst_54 = arith.constant dense<0.000000e+00> : vector<1x128xf32>
    %92 = tpu.matmul %89, %91, %cst_54 {dimension_numbers = #tpu.dot_dimension_numbers<[1], [0], [0], [1], [0, 0, 1, 1], [], []>} : vector<1x32xbf16>, vector<32x128xbf16>, vector<1x128xf32> -> vector<1x128xf32>
    %93 = arith.addf %87, %92 : vector<1x128xf32>
    %94 = vector.extract_strided_slice %44 {offsets = [8, 0], sizes = [1, 32], strides = [1, 1]} : vector<16x32xf32> to vector<1x32xf32>
    %95 = arith.truncf %94 : vector<1x32xf32> to vector<1x32xbf16>
    %c8 = arith.constant 8 : index
    %c0_55 = arith.constant 0 : index
    %c0_56 = arith.constant 0 : index
    %96 = vector.load %arg9[%c8, %c0_55, %c0_56] : memref<16x32x128xbf16, #tpu.memory_space<vmem>>, vector<1x32x128xbf16>
    %97 = vector.shape_cast %96 : vector<1x32x128xbf16> to vector<32x128xbf16>
    %cst_57 = arith.constant dense<0.000000e+00> : vector<1x128xf32>
    %98 = tpu.matmul %95, %97, %cst_57 {dimension_numbers = #tpu.dot_dimension_numbers<[1], [0], [0], [1], [0, 0, 1, 1], [], []>} : vector<1x32xbf16>, vector<32x128xbf16>, vector<1x128xf32> -> vector<1x128xf32>
    %99 = arith.addf %93, %98 : vector<1x128xf32>
    %100 = vector.extract_strided_slice %44 {offsets = [9, 0], sizes = [1, 32], strides = [1, 1]} : vector<16x32xf32> to vector<1x32xf32>
    %101 = arith.truncf %100 : vector<1x32xf32> to vector<1x32xbf16>
    %c9 = arith.constant 9 : index
    %c0_58 = arith.constant 0 : index
    %c0_59 = arith.constant 0 : index
    %102 = vector.load %arg9[%c9, %c0_58, %c0_59] : memref<16x32x128xbf16, #tpu.memory_space<vmem>>, vector<1x32x128xbf16>
    %103 = vector.shape_cast %102 : vector<1x32x128xbf16> to vector<32x128xbf16>
    %cst_60 = arith.constant dense<0.000000e+00> : vector<1x128xf32>
    %104 = tpu.matmul %101, %103, %cst_60 {dimension_numbers = #tpu.dot_dimension_numbers<[1], [0], [0], [1], [0, 0, 1, 1], [], []>} : vector<1x32xbf16>, vector<32x128xbf16>, vector<1x128xf32> -> vector<1x128xf32>
    %105 = arith.addf %99, %104 : vector<1x128xf32>
    %106 = vector.extract_strided_slice %44 {offsets = [10, 0], sizes = [1, 32], strides = [1, 1]} : vector<16x32xf32> to vector<1x32xf32>
    %107 = arith.truncf %106 : vector<1x32xf32> to vector<1x32xbf16>
    %c10 = arith.constant 10 : index
    %c0_61 = arith.constant 0 : index
    %c0_62 = arith.constant 0 : index
    %108 = vector.load %arg9[%c10, %c0_61, %c0_62] : memref<16x32x128xbf16, #tpu.memory_space<vmem>>, vector<1x32x128xbf16>
    %109 = vector.shape_cast %108 : vector<1x32x128xbf16> to vector<32x128xbf16>
    %cst_63 = arith.constant dense<0.000000e+00> : vector<1x128xf32>
    %110 = tpu.matmul %107, %109, %cst_63 {dimension_numbers = #tpu.dot_dimension_numbers<[1], [0], [0], [1], [0, 0, 1, 1], [], []>} : vector<1x32xbf16>, vector<32x128xbf16>, vector<1x128xf32> -> vector<1x128xf32>
    %111 = arith.addf %105, %110 : vector<1x128xf32>
    %112 = vector.extract_strided_slice %44 {offsets = [11, 0], sizes = [1, 32], strides = [1, 1]} : vector<16x32xf32> to vector<1x32xf32>
    %113 = arith.truncf %112 : vector<1x32xf32> to vector<1x32xbf16>
    %c11 = arith.constant 11 : index
    %c0_64 = arith.constant 0 : index
    %c0_65 = arith.constant 0 : index
    %114 = vector.load %arg9[%c11, %c0_64, %c0_65] : memref<16x32x128xbf16, #tpu.memory_space<vmem>>, vector<1x32x128xbf16>
    %115 = vector.shape_cast %114 : vector<1x32x128xbf16> to vector<32x128xbf16>
    %cst_66 = arith.constant dense<0.000000e+00> : vector<1x128xf32>
    %116 = tpu.matmul %113, %115, %cst_66 {dimension_numbers = #tpu.dot_dimension_numbers<[1], [0], [0], [1], [0, 0, 1, 1], [], []>} : vector<1x32xbf16>, vector<32x128xbf16>, vector<1x128xf32> -> vector<1x128xf32>
    %117 = arith.addf %111, %116 : vector<1x128xf32>
    %118 = vector.extract_strided_slice %44 {offsets = [12, 0], sizes = [1, 32], strides = [1, 1]} : vector<16x32xf32> to vector<1x32xf32>
    %119 = arith.truncf %118 : vector<1x32xf32> to vector<1x32xbf16>
    %c12 = arith.constant 12 : index
    %c0_67 = arith.constant 0 : index
    %c0_68 = arith.constant 0 : index
    %120 = vector.load %arg9[%c12, %c0_67, %c0_68] : memref<16x32x128xbf16, #tpu.memory_space<vmem>>, vector<1x32x128xbf16>
    %121 = vector.shape_cast %120 : vector<1x32x128xbf16> to vector<32x128xbf16>
    %cst_69 = arith.constant dense<0.000000e+00> : vector<1x128xf32>
    %122 = tpu.matmul %119, %121, %cst_69 {dimension_numbers = #tpu.dot_dimension_numbers<[1], [0], [0], [1], [0, 0, 1, 1], [], []>} : vector<1x32xbf16>, vector<32x128xbf16>, vector<1x128xf32> -> vector<1x128xf32>
    %123 = arith.addf %117, %122 : vector<1x128xf32>
    %124 = vector.extract_strided_slice %44 {offsets = [13, 0], sizes = [1, 32], strides = [1, 1]} : vector<16x32xf32> to vector<1x32xf32>
    %125 = arith.truncf %124 : vector<1x32xf32> to vector<1x32xbf16>
    %c13 = arith.constant 13 : index
    %c0_70 = arith.constant 0 : index
    %c0_71 = arith.constant 0 : index
    %126 = vector.load %arg9[%c13, %c0_70, %c0_71] : memref<16x32x128xbf16, #tpu.memory_space<vmem>>, vector<1x32x128xbf16>
    %127 = vector.shape_cast %126 : vector<1x32x128xbf16> to vector<32x128xbf16>
    %cst_72 = arith.constant dense<0.000000e+00> : vector<1x128xf32>
    %128 = tpu.matmul %125, %127, %cst_72 {dimension_numbers = #tpu.dot_dimension_numbers<[1], [0], [0], [1], [0, 0, 1, 1], [], []>} : vector<1x32xbf16>, vector<32x128xbf16>, vector<1x128xf32> -> vector<1x128xf32>
    %129 = arith.addf %123, %128 : vector<1x128xf32>
    %130 = vector.extract_strided_slice %44 {offsets = [14, 0], sizes = [1, 32], strides = [1, 1]} : vector<16x32xf32> to vector<1x32xf32>
    %131 = arith.truncf %130 : vector<1x32xf32> to vector<1x32xbf16>
    %c14 = arith.constant 14 : index
    %c0_73 = arith.constant 0 : index
    %c0_74 = arith.constant 0 : index
    %132 = vector.load %arg9[%c14, %c0_73, %c0_74] : memref<16x32x128xbf16, #tpu.memory_space<vmem>>, vector<1x32x128xbf16>
    %133 = vector.shape_cast %132 : vector<1x32x128xbf16> to vector<32x128xbf16>
    %cst_75 = arith.constant dense<0.000000e+00> : vector<1x128xf32>
    %134 = tpu.matmul %131, %133, %cst_75 {dimension_numbers = #tpu.dot_dimension_numbers<[1], [0], [0], [1], [0, 0, 1, 1], [], []>} : vector<1x32xbf16>, vector<32x128xbf16>, vector<1x128xf32> -> vector<1x128xf32>
    %135 = arith.addf %129, %134 : vector<1x128xf32>
    %136 = vector.extract_strided_slice %44 {offsets = [15, 0], sizes = [1, 32], strides = [1, 1]} : vector<16x32xf32> to vector<1x32xf32>
    %137 = arith.truncf %136 : vector<1x32xf32> to vector<1x32xbf16>
    %c15 = arith.constant 15 : index
    %c0_76 = arith.constant 0 : index
    %c0_77 = arith.constant 0 : index
    %138 = vector.load %arg9[%c15, %c0_76, %c0_77] : memref<16x32x128xbf16, #tpu.memory_space<vmem>>, vector<1x32x128xbf16>
    %139 = vector.shape_cast %138 : vector<1x32x128xbf16> to vector<32x128xbf16>
    %cst_78 = arith.constant dense<0.000000e+00> : vector<1x128xf32>
    %140 = tpu.matmul %137, %139, %cst_78 {dimension_numbers = #tpu.dot_dimension_numbers<[1], [0], [0], [1], [0, 0, 1, 1], [], []>} : vector<1x32xbf16>, vector<32x128xbf16>, vector<1x128xf32> -> vector<1x128xf32>
    %141 = arith.addf %135, %140 : vector<1x128xf32>
    %c0_79 = arith.constant 0 : index
    %c0_80 = arith.constant 0 : index
    %c0_81 = arith.constant 0 : index
    %142 = vector.load %arg11[%c0_79, %c0_80, %c0_81] : memref<2x1x128xf32, #tpu.memory_space<vmem>>, vector<1x1x128xf32>
    %143 = vector.shape_cast %142 : vector<1x1x128xf32> to vector<1x128xf32>
    %144 = vector.shape_cast %141 : vector<1x128xf32> to vector<1x1x128xf32>
    tpu.vector_store %arg11[%c0_79, %c0_80, %c0_81], %144 {strides = array<i32>} : memref<2x1x128xf32, #tpu.memory_space<vmem>>, vector<1x1x128xf32>,
    %c1_82 = arith.constant 1 : index
    %c0_83 = arith.constant 0 : index
    %c0_84 = arith.constant 0 : index
    %145 = vector.load %arg1[%c1_82, %c0_83, %c0_84] : memref<2x16x32xf32, #tpu.memory_space<vmem>>, vector<1x16x32xf32>
    %146 = vector.shape_cast %145 : vector<1x16x32xf32> to vector<16x32xf32>
    %147 = arith.truncf %146 : vector<16x32xf32> to vector<16x32xbf16>
    %c1_85 = arith.constant 1 : index
    %c0_86 = arith.constant 0 : index
    %c0_87 = arith.constant 0 : index
    %148 = vector.load %arg2[%c1_85, %c0_86, %c0_87] : memref<2x16x32xf32, #tpu.memory_space<vmem>>, vector<1x16x32xf32>
    %149 = vector.shape_cast %148 : vector<1x16x32xf32> to vector<16x32xf32>
    %150 = arith.truncf %149 : vector<16x32xf32> to vector<16x32xbf16>
    %cst_88 = arith.constant dense<0.000000e+00> : vector<16x32xf32>
    %151 = tpu.matmul %147, %0, %cst_88 {dimension_numbers = #tpu.dot_dimension_numbers<[1], [0], [0], [1], [0, 0, 1, 1], [], []>} : vector<16x32xbf16>, vector<32x32xbf16>, vector<16x32xf32> -> vector<16x32xf32>
    %152 = vector.broadcast %3 : vector<1x32xf32> to vector<16x32xf32>
    %153 = arith.addf %151, %152 : vector<16x32xf32>
    %cst_89 = arith.constant dense<0.000000e+00> : vector<16x32xf32>
    %154 = tpu.matmul %147, %1, %cst_89 {dimension_numbers = #tpu.dot_dimension_numbers<[1], [0], [0], [1], [0, 0, 1, 1], [], []>} : vector<16x32xbf16>, vector<32x32xbf16>, vector<16x32xf32> -> vector<16x32xf32>
    %155 = vector.broadcast %4 : vector<1x32xf32> to vector<16x32xf32>
    %156 = arith.addf %154, %155 : vector<16x32xf32>
    %cst_90 = arith.constant dense<0.000000e+00> : vector<16x32xf32>
    %157 = tpu.matmul %150, %2, %cst_90 {dimension_numbers = #tpu.dot_dimension_numbers<[1], [0], [0], [1], [0, 0, 1, 1], [], []>} : vector<16x32xbf16>, vector<32x32xbf16>, vector<16x32xf32> -> vector<16x32xf32>
    %158 = vector.broadcast %5 : vector<1x32xf32> to vector<16x32xf32>
    %159 = arith.addf %157, %158 : vector<16x32xf32>
    %160 = arith.truncf %153 : vector<16x32xf32> to vector<16x32xbf16>
    %161 = arith.truncf %156 : vector<16x32xf32> to vector<16x32xbf16>
    %cst_91 = arith.constant dense<0.000000e+00> : vector<16x16xf32>
    %162 = tpu.matmul %160, %161, %cst_91 {dimension_numbers = #tpu.dot_dimension_numbers<[1], [1], [0], [0], [0, 0, 1, 0], [], []>} : vector<16x32xbf16>, vector<16x32xbf16>, vector<16x16xf32> -> vector<16x16xf32>
    %cst_92 = arith.constant 0.176776692 : f32
    %163 = vector.broadcast %cst_92 : f32 to vector<16x16xf32>
    %164 = arith.mulf %162, %163 : vector<16x16xf32>
    %cst_93 = arith.constant dense<0xFF800000> : vector<16xf32>
    %165 = vector.multi_reduction <maximumf>, %164, %cst_93 [1] : vector<16x16xf32> to vector<16xf32>
    %166 = vector.shape_cast %165 : vector<16xf32> to vector<16x1xf32>
    %167 = vector.broadcast %166 : vector<16x1xf32> to vector<16x16xf32>
    %168 = arith.subf %164, %167 : vector<16x16xf32>
    %169 = math.exp %168 : vector<16x16xf32>
    %cst_94 = arith.constant dense<0.000000e+00> : vector<16xf32>
    %170 = vector.multi_reduction <add>, %169, %cst_94 [1] : vector<16x16xf32> to vector<16xf32>
    %171 = vector.shape_cast %170 : vector<16xf32> to vector<16x1xf32>
    %172 = tpu.reciprocal %171 {approx = true} : vector<16x1xf32> -> vector<16x1xf32>
    %173 = vector.broadcast %172 : vector<16x1xf32> to vector<16x16xf32>
    %174 = arith.mulf %169, %173 : vector<16x16xf32>
    %c1_95 = arith.constant 1 : index
    %c0_96 = arith.constant 0 : index
    %c0_97 = arith.constant 0 : index
    %175 = vector.load %arg12[%c1_95, %c0_96, %c0_97] : memref<2x16x16xf32, #tpu.memory_space<vmem>>, vector<1x16x16xf32>
    %176 = vector.shape_cast %175 : vector<1x16x16xf32> to vector<16x16xf32>
    %177 = vector.shape_cast %174 : vector<16x16xf32> to vector<1x16x16xf32>
    tpu.vector_store %arg12[%c1_95, %c0_96, %c0_97], %177 {strides = array<i32>} : memref<2x16x16xf32, #tpu.memory_space<vmem>>, vector<1x16x16xf32>,
    %178 = arith.truncf %174 : vector<16x16xf32> to vector<16x16xbf16>
    %179 = arith.truncf %159 : vector<16x32xf32> to vector<16x32xbf16>
    %cst_98 = arith.constant dense<0.000000e+00> : vector<16x32xf32>
    %180 = tpu.matmul %178, %179, %cst_98 {dimension_numbers = #tpu.dot_dimension_numbers<[1], [0], [0], [1], [0, 0, 1, 1], [], []>} : vector<16x16xbf16>, vector<16x32xbf16>, vector<16x32xf32> -> vector<16x32xf32>
    %181 = arith.addf %146, %180 : vector<16x32xf32>
    %cst_99 = arith.constant 6.250000e-02 : f32
    %182 = vector.broadcast %cst_99 : f32 to vector<16x32xf32>
    %183 = arith.mulf %181, %182 : vector<16x32xf32>
    %c0_100 = arith.constant 0 : index
    %c0_101 = arith.constant 0 : index
    %184 = vector.load %arg10[%c0_100, %c0_101] : memref<1x128xf32, #tpu.memory_space<vmem>>, vector<1x128xf32>
    %185 = vector.extract_strided_slice %183 {offsets = [0, 0], sizes = [1, 32], strides = [1, 1]} : vector<16x32xf32> to vector<1x32xf32>
    %186 = arith.truncf %185 : vector<1x32xf32> to vector<1x32xbf16>
    %c0_102 = arith.constant 0 : index
    %c0_103 = arith.constant 0 : index
    %c0_104 = arith.constant 0 : index
    %187 = vector.load %arg9[%c0_102, %c0_103, %c0_104] : memref<16x32x128xbf16, #tpu.memory_space<vmem>>, vector<1x32x128xbf16>
    %188 = vector.shape_cast %187 : vector<1x32x128xbf16> to vector<32x128xbf16>
    %cst_105 = arith.constant dense<0.000000e+00> : vector<1x128xf32>
    %189 = tpu.matmul %186, %188, %cst_105 {dimension_numbers = #tpu.dot_dimension_numbers<[1], [0], [0], [1], [0, 0, 1, 1], [], []>} : vector<1x32xbf16>, vector<32x128xbf16>, vector<1x128xf32> -> vector<1x128xf32>
    %190 = arith.addf %184, %189 : vector<1x128xf32>
    %191 = vector.extract_strided_slice %183 {offsets = [1, 0], sizes = [1, 32], strides = [1, 1]} : vector<16x32xf32> to vector<1x32xf32>
    %192 = arith.truncf %191 : vector<1x32xf32> to vector<1x32xbf16>
    %c1_106 = arith.constant 1 : index
    %c0_107 = arith.constant 0 : index
    %c0_108 = arith.constant 0 : index
    %193 = vector.load %arg9[%c1_106, %c0_107, %c0_108] : memref<16x32x128xbf16, #tpu.memory_space<vmem>>, vector<1x32x128xbf16>
    %194 = vector.shape_cast %193 : vector<1x32x128xbf16> to vector<32x128xbf16>
    %cst_109 = arith.constant dense<0.000000e+00> : vector<1x128xf32>
    %195 = tpu.matmul %192, %194, %cst_109 {dimension_numbers = #tpu.dot_dimension_numbers<[1], [0], [0], [1], [0, 0, 1, 1], [], []>} : vector<1x32xbf16>, vector<32x128xbf16>, vector<1x128xf32> -> vector<1x128xf32>
    %196 = arith.addf %190, %195 : vector<1x128xf32>
    %197 = vector.extract_strided_slice %183 {offsets = [2, 0], sizes = [1, 32], strides = [1, 1]} : vector<16x32xf32> to vector<1x32xf32>
    %198 = arith.truncf %197 : vector<1x32xf32> to vector<1x32xbf16>
    %c2_110 = arith.constant 2 : index
    %c0_111 = arith.constant 0 : index
    %c0_112 = arith.constant 0 : index
    %199 = vector.load %arg9[%c2_110, %c0_111, %c0_112] : memref<16x32x128xbf16, #tpu.memory_space<vmem>>, vector<1x32x128xbf16>
    %200 = vector.shape_cast %199 : vector<1x32x128xbf16> to vector<32x128xbf16>
    %cst_113 = arith.constant dense<0.000000e+00> : vector<1x128xf32>
    %201 = tpu.matmul %198, %200, %cst_113 {dimension_numbers = #tpu.dot_dimension_numbers<[1], [0], [0], [1], [0, 0, 1, 1], [], []>} : vector<1x32xbf16>, vector<32x128xbf16>, vector<1x128xf32> -> vector<1x128xf32>
    %202 = arith.addf %196, %201 : vector<1x128xf32>
    %203 = vector.extract_strided_slice %183 {offsets = [3, 0], sizes = [1, 32], strides = [1, 1]} : vector<16x32xf32> to vector<1x32xf32>
    %204 = arith.truncf %203 : vector<1x32xf32> to vector<1x32xbf16>
    %c3_114 = arith.constant 3 : index
    %c0_115 = arith.constant 0 : index
    %c0_116 = arith.constant 0 : index
    %205 = vector.load %arg9[%c3_114, %c0_115, %c0_116] : memref<16x32x128xbf16, #tpu.memory_space<vmem>>, vector<1x32x128xbf16>
    %206 = vector.shape_cast %205 : vector<1x32x128xbf16> to vector<32x128xbf16>
    %cst_117 = arith.constant dense<0.000000e+00> : vector<1x128xf32>
    %207 = tpu.matmul %204, %206, %cst_117 {dimension_numbers = #tpu.dot_dimension_numbers<[1], [0], [0], [1], [0, 0, 1, 1], [], []>} : vector<1x32xbf16>, vector<32x128xbf16>, vector<1x128xf32> -> vector<1x128xf32>
    %208 = arith.addf %202, %207 : vector<1x128xf32>
    %209 = vector.extract_strided_slice %183 {offsets = [4, 0], sizes = [1, 32], strides = [1, 1]} : vector<16x32xf32> to vector<1x32xf32>
    %210 = arith.truncf %209 : vector<1x32xf32> to vector<1x32xbf16>
    %c4_118 = arith.constant 4 : index
    %c0_119 = arith.constant 0 : index
    %c0_120 = arith.constant 0 : index
    %211 = vector.load %arg9[%c4_118, %c0_119, %c0_120] : memref<16x32x128xbf16, #tpu.memory_space<vmem>>, vector<1x32x128xbf16>
    %212 = vector.shape_cast %211 : vector<1x32x128xbf16> to vector<32x128xbf16>
    %cst_121 = arith.constant dense<0.000000e+00> : vector<1x128xf32>
    %213 = tpu.matmul %210, %212, %cst_121 {dimension_numbers = #tpu.dot_dimension_numbers<[1], [0], [0], [1], [0, 0, 1, 1], [], []>} : vector<1x32xbf16>, vector<32x128xbf16>, vector<1x128xf32> -> vector<1x128xf32>
    %214 = arith.addf %208, %213 : vector<1x128xf32>
    %215 = vector.extract_strided_slice %183 {offsets = [5, 0], sizes = [1, 32], strides = [1, 1]} : vector<16x32xf32> to vector<1x32xf32>
    %216 = arith.truncf %215 : vector<1x32xf32> to vector<1x32xbf16>
    %c5_122 = arith.constant 5 : index
    %c0_123 = arith.constant 0 : index
    %c0_124 = arith.constant 0 : index
    %217 = vector.load %arg9[%c5_122, %c0_123, %c0_124] : memref<16x32x128xbf16, #tpu.memory_space<vmem>>, vector<1x32x128xbf16>
    %218 = vector.shape_cast %217 : vector<1x32x128xbf16> to vector<32x128xbf16>
    %cst_125 = arith.constant dense<0.000000e+00> : vector<1x128xf32>
    %219 = tpu.matmul %216, %218, %cst_125 {dimension_numbers = #tpu.dot_dimension_numbers<[1], [0], [0], [1], [0, 0, 1, 1], [], []>} : vector<1x32xbf16>, vector<32x128xbf16>, vector<1x128xf32> -> vector<1x128xf32>
    %220 = arith.addf %214, %219 : vector<1x128xf32>
    %221 = vector.extract_strided_slice %183 {offsets = [6, 0], sizes = [1, 32], strides = [1, 1]} : vector<16x32xf32> to vector<1x32xf32>
    %222 = arith.truncf %221 : vector<1x32xf32> to vector<1x32xbf16>
    %c6_126 = arith.constant 6 : index
    %c0_127 = arith.constant 0 : index
    %c0_128 = arith.constant 0 : index
    %223 = vector.load %arg9[%c6_126, %c0_127, %c0_128] : memref<16x32x128xbf16, #tpu.memory_space<vmem>>, vector<1x32x128xbf16>
    %224 = vector.shape_cast %223 : vector<1x32x128xbf16> to vector<32x128xbf16>
    %cst_129 = arith.constant dense<0.000000e+00> : vector<1x128xf32>
    %225 = tpu.matmul %222, %224, %cst_129 {dimension_numbers = #tpu.dot_dimension_numbers<[1], [0], [0], [1], [0, 0, 1, 1], [], []>} : vector<1x32xbf16>, vector<32x128xbf16>, vector<1x128xf32> -> vector<1x128xf32>
    %226 = arith.addf %220, %225 : vector<1x128xf32>
    %227 = vector.extract_strided_slice %183 {offsets = [7, 0], sizes = [1, 32], strides = [1, 1]} : vector<16x32xf32> to vector<1x32xf32>
    %228 = arith.truncf %227 : vector<1x32xf32> to vector<1x32xbf16>
    %c7_130 = arith.constant 7 : index
    %c0_131 = arith.constant 0 : index
    %c0_132 = arith.constant 0 : index
    %229 = vector.load %arg9[%c7_130, %c0_131, %c0_132] : memref<16x32x128xbf16, #tpu.memory_space<vmem>>, vector<1x32x128xbf16>
    %230 = vector.shape_cast %229 : vector<1x32x128xbf16> to vector<32x128xbf16>
    %cst_133 = arith.constant dense<0.000000e+00> : vector<1x128xf32>
    %231 = tpu.matmul %228, %230, %cst_133 {dimension_numbers = #tpu.dot_dimension_numbers<[1], [0], [0], [1], [0, 0, 1, 1], [], []>} : vector<1x32xbf16>, vector<32x128xbf16>, vector<1x128xf32> -> vector<1x128xf32>
    %232 = arith.addf %226, %231 : vector<1x128xf32>
    %233 = vector.extract_strided_slice %183 {offsets = [8, 0], sizes = [1, 32], strides = [1, 1]} : vector<16x32xf32> to vector<1x32xf32>
    %234 = arith.truncf %233 : vector<1x32xf32> to vector<1x32xbf16>
    %c8_134 = arith.constant 8 : index
    %c0_135 = arith.constant 0 : index
    %c0_136 = arith.constant 0 : index
    %235 = vector.load %arg9[%c8_134, %c0_135, %c0_136] : memref<16x32x128xbf16, #tpu.memory_space<vmem>>, vector<1x32x128xbf16>
    %236 = vector.shape_cast %235 : vector<1x32x128xbf16> to vector<32x128xbf16>
    %cst_137 = arith.constant dense<0.000000e+00> : vector<1x128xf32>
    %237 = tpu.matmul %234, %236, %cst_137 {dimension_numbers = #tpu.dot_dimension_numbers<[1], [0], [0], [1], [0, 0, 1, 1], [], []>} : vector<1x32xbf16>, vector<32x128xbf16>, vector<1x128xf32> -> vector<1x128xf32>
    %238 = arith.addf %232, %237 : vector<1x128xf32>
    %239 = vector.extract_strided_slice %183 {offsets = [9, 0], sizes = [1, 32], strides = [1, 1]} : vector<16x32xf32> to vector<1x32xf32>
    %240 = arith.truncf %239 : vector<1x32xf32> to vector<1x32xbf16>
    %c9_138 = arith.constant 9 : index
    %c0_139 = arith.constant 0 : index
    %c0_140 = arith.constant 0 : index
    %241 = vector.load %arg9[%c9_138, %c0_139, %c0_140] : memref<16x32x128xbf16, #tpu.memory_space<vmem>>, vector<1x32x128xbf16>
    %242 = vector.shape_cast %241 : vector<1x32x128xbf16> to vector<32x128xbf16>
    %cst_141 = arith.constant dense<0.000000e+00> : vector<1x128xf32>
    %243 = tpu.matmul %240, %242, %cst_141 {dimension_numbers = #tpu.dot_dimension_numbers<[1], [0], [0], [1], [0, 0, 1, 1], [], []>} : vector<1x32xbf16>, vector<32x128xbf16>, vector<1x128xf32> -> vector<1x128xf32>
    %244 = arith.addf %238, %243 : vector<1x128xf32>
    %245 = vector.extract_strided_slice %183 {offsets = [10, 0], sizes = [1, 32], strides = [1, 1]} : vector<16x32xf32> to vector<1x32xf32>
    %246 = arith.truncf %245 : vector<1x32xf32> to vector<1x32xbf16>
    %c10_142 = arith.constant 10 : index
    %c0_143 = arith.constant 0 : index
    %c0_144 = arith.constant 0 : index
    %247 = vector.load %arg9[%c10_142, %c0_143, %c0_144] : memref<16x32x128xbf16, #tpu.memory_space<vmem>>, vector<1x32x128xbf16>
    %248 = vector.shape_cast %247 : vector<1x32x128xbf16> to vector<32x128xbf16>
    %cst_145 = arith.constant dense<0.000000e+00> : vector<1x128xf32>
    %249 = tpu.matmul %246, %248, %cst_145 {dimension_numbers = #tpu.dot_dimension_numbers<[1], [0], [0], [1], [0, 0, 1, 1], [], []>} : vector<1x32xbf16>, vector<32x128xbf16>, vector<1x128xf32> -> vector<1x128xf32>
    %250 = arith.addf %244, %249 : vector<1x128xf32>
    %251 = vector.extract_strided_slice %183 {offsets = [11, 0], sizes = [1, 32], strides = [1, 1]} : vector<16x32xf32> to vector<1x32xf32>
    %252 = arith.truncf %251 : vector<1x32xf32> to vector<1x32xbf16>
    %c11_146 = arith.constant 11 : index
    %c0_147 = arith.constant 0 : index
    %c0_148 = arith.constant 0 : index
    %253 = vector.load %arg9[%c11_146, %c0_147, %c0_148] : memref<16x32x128xbf16, #tpu.memory_space<vmem>>, vector<1x32x128xbf16>
    %254 = vector.shape_cast %253 : vector<1x32x128xbf16> to vector<32x128xbf16>
    %cst_149 = arith.constant dense<0.000000e+00> : vector<1x128xf32>
    %255 = tpu.matmul %252, %254, %cst_149 {dimension_numbers = #tpu.dot_dimension_numbers<[1], [0], [0], [1], [0, 0, 1, 1], [], []>} : vector<1x32xbf16>, vector<32x128xbf16>, vector<1x128xf32> -> vector<1x128xf32>
    %256 = arith.addf %250, %255 : vector<1x128xf32>
    %257 = vector.extract_strided_slice %183 {offsets = [12, 0], sizes = [1, 32], strides = [1, 1]} : vector<16x32xf32> to vector<1x32xf32>
    %258 = arith.truncf %257 : vector<1x32xf32> to vector<1x32xbf16>
    %c12_150 = arith.constant 12 : index
    %c0_151 = arith.constant 0 : index
    %c0_152 = arith.constant 0 : index
    %259 = vector.load %arg9[%c12_150, %c0_151, %c0_152] : memref<16x32x128xbf16, #tpu.memory_space<vmem>>, vector<1x32x128xbf16>
    %260 = vector.shape_cast %259 : vector<1x32x128xbf16> to vector<32x128xbf16>
    %cst_153 = arith.constant dense<0.000000e+00> : vector<1x128xf32>
    %261 = tpu.matmul %258, %260, %cst_153 {dimension_numbers = #tpu.dot_dimension_numbers<[1], [0], [0], [1], [0, 0, 1, 1], [], []>} : vector<1x32xbf16>, vector<32x128xbf16>, vector<1x128xf32> -> vector<1x128xf32>
    %262 = arith.addf %256, %261 : vector<1x128xf32>
    %263 = vector.extract_strided_slice %183 {offsets = [13, 0], sizes = [1, 32], strides = [1, 1]} : vector<16x32xf32> to vector<1x32xf32>
    %264 = arith.truncf %263 : vector<1x32xf32> to vector<1x32xbf16>
    %c13_154 = arith.constant 13 : index
    %c0_155 = arith.constant 0 : index
    %c0_156 = arith.constant 0 : index
    %265 = vector.load %arg9[%c13_154, %c0_155, %c0_156] : memref<16x32x128xbf16, #tpu.memory_space<vmem>>, vector<1x32x128xbf16>
    %266 = vector.shape_cast %265 : vector<1x32x128xbf16> to vector<32x128xbf16>
    %cst_157 = arith.constant dense<0.000000e+00> : vector<1x128xf32>
    %267 = tpu.matmul %264, %266, %cst_157 {dimension_numbers = #tpu.dot_dimension_numbers<[1], [0], [0], [1], [0, 0, 1, 1], [], []>} : vector<1x32xbf16>, vector<32x128xbf16>, vector<1x128xf32> -> vector<1x128xf32>
    %268 = arith.addf %262, %267 : vector<1x128xf32>
    %269 = vector.extract_strided_slice %183 {offsets = [14, 0], sizes = [1, 32], strides = [1, 1]} : vector<16x32xf32> to vector<1x32xf32>
    %270 = arith.truncf %269 : vector<1x32xf32> to vector<1x32xbf16>
    %c14_158 = arith.constant 14 : index
    %c0_159 = arith.constant 0 : index
    %c0_160 = arith.constant 0 : index
    %271 = vector.load %arg9[%c14_158, %c0_159, %c0_160] : memref<16x32x128xbf16, #tpu.memory_space<vmem>>, vector<1x32x128xbf16>
    %272 = vector.shape_cast %271 : vector<1x32x128xbf16> to vector<32x128xbf16>
    %cst_161 = arith.constant dense<0.000000e+00> : vector<1x128xf32>
    %273 = tpu.matmul %270, %272, %cst_161 {dimension_numbers = #tpu.dot_dimension_numbers<[1], [0], [0], [1], [0, 0, 1, 1], [], []>} : vector<1x32xbf16>, vector<32x128xbf16>, vector<1x128xf32> -> vector<1x128xf32>
    %274 = arith.addf %268, %273 : vector<1x128xf32>
    %275 = vector.extract_strided_slice %183 {offsets = [15, 0], sizes = [1, 32], strides = [1, 1]} : vector<16x32xf32> to vector<1x32xf32>
    %276 = arith.truncf %275 : vector<1x32xf32> to vector<1x32xbf16>
    %c15_162 = arith.constant 15 : index
    %c0_163 = arith.constant 0 : index
    %c0_164 = arith.constant 0 : index
    %277 = vector.load %arg9[%c15_162, %c0_163, %c0_164] : memref<16x32x128xbf16, #tpu.memory_space<vmem>>, vector<1x32x128xbf16>
    %278 = vector.shape_cast %277 : vector<1x32x128xbf16> to vector<32x128xbf16>
    %cst_165 = arith.constant dense<0.000000e+00> : vector<1x128xf32>
    %279 = tpu.matmul %276, %278, %cst_165 {dimension_numbers = #tpu.dot_dimension_numbers<[1], [0], [0], [1], [0, 0, 1, 1], [], []>} : vector<1x32xbf16>, vector<32x128xbf16>, vector<1x128xf32> -> vector<1x128xf32>
    %280 = arith.addf %274, %279 : vector<1x128xf32>
    %c1_166 = arith.constant 1 : index
    %c0_167 = arith.constant 0 : index
    %c0_168 = arith.constant 0 : index
    %281 = vector.load %arg11[%c1_166, %c0_167, %c0_168] : memref<2x1x128xf32, #tpu.memory_space<vmem>>, vector<1x1x128xf32>
    %282 = vector.shape_cast %281 : vector<1x1x128xf32> to vector<1x128xf32>
    %283 = vector.shape_cast %280 : vector<1x128xf32> to vector<1x1x128xf32>
    tpu.vector_store %arg11[%c1_166, %c0_167, %c0_168], %283 {strides = array<i32>} : memref<2x1x128xf32, #tpu.memory_space<vmem>>, vector<1x1x128xf32>,
    return
  }
  func.func @transform_0(%arg0: i32) -> (i32, i32, i32) {
    %c0_i32 = arith.constant 0 : i32
    %c0_i32_0 = arith.constant 0 : i32
    %c0_i32_1 = arith.constant 0 : i32
    %c0_i32_2 = arith.constant 0 : i32
    return %c0_i32, %c0_i32_0, %c0_i32_1 : i32, i32, i32
  }
  func.func @transform_1(%arg0: i32) -> (i32, i32, i32) {
    %c0_i32 = arith.constant 0 : i32
    %c0_i32_0 = arith.constant 0 : i32
    %c0_i32_1 = arith.constant 0 : i32
    %c0_i32_2 = arith.constant 0 : i32
    return %c0_i32, %c0_i32_0, %c0_i32_1 : i32, i32, i32
  }
  func.func @transform_2(%arg0: i32) -> (i32, i32) {
    %c0_i32 = arith.constant 0 : i32
    %c0_i32_0 = arith.constant 0 : i32
    %c0_i32_1 = arith.constant 0 : i32
    return %c0_i32, %c0_i32_0 : i32, i32
  }
  func.func @transform_3(%arg0: i32) -> (i32, i32) {
    %c0_i32 = arith.constant 0 : i32
    %c0_i32_0 = arith.constant 0 : i32
    %c0_i32_1 = arith.constant 0 : i32
    return %c0_i32, %c0_i32_0 : i32, i32
  }
  func.func @transform_4(%arg0: i32) -> (i32, i32) {
    %c0_i32 = arith.constant 0 : i32
    %c0_i32_0 = arith.constant 0 : i32
    %c0_i32_1 = arith.constant 0 : i32
    return %c0_i32, %c0_i32_0 : i32, i32
  }
  func.func @transform_5(%arg0: i32) -> (i32, i32) {
    %c0_i32 = arith.constant 0 : i32
    %c0_i32_0 = arith.constant 0 : i32
    %c0_i32_1 = arith.constant 0 : i32
    return %c0_i32, %c0_i32_0 : i32, i32
  }
  func.func @transform_6(%arg0: i32) -> (i32, i32) {
    %c0_i32 = arith.constant 0 : i32
    %c0_i32_0 = arith.constant 0 : i32
    %c0_i32_1 = arith.constant 0 : i32
    return %c0_i32, %c0_i32_0 : i32, i32
  }
  func.func @transform_7(%arg0: i32) -> (i32, i32) {
    %c0_i32 = arith.constant 0 : i32
    %c0_i32_0 = arith.constant 0 : i32
    %c0_i32_1 = arith.constant 0 : i32
    return %c0_i32, %c0_i32_0 : i32, i32
  }
  func.func @transform_8(%arg0: i32) -> (i32, i32, i32) {
    %c0_i32 = arith.constant 0 : i32
    %c0_i32_0 = arith.constant 0 : i32
    %c0_i32_1 = arith.constant 0 : i32
    %c0_i32_2 = arith.constant 0 : i32
    return %c0_i32, %c0_i32_0, %c0_i32_1 : i32, i32, i32
  }
  func.func @transform_9(%arg0: i32) -> (i32, i32) {
    %c0_i32 = arith.constant 0 : i32
    %c0_i32_0 = arith.constant 0 : i32
    %c0_i32_1 = arith.constant 0 : i32
    return %c0_i32, %c0_i32_0 : i32, i32
  }
  func.func @transform_10(%arg0: i32) -> (i32, i32, i32) {
    %c0_i32 = arith.constant 0 : i32
    %c0_i32_0 = arith.constant 0 : i32
    %c0_i32_1 = arith.constant 0 : i32
    %c0_i32_2 = arith.constant 0 : i32
    return %c0_i32, %c0_i32_0, %c0_i32_1 : i32, i32, i32
  }
  func.func @transform_11(%arg0: i32) -> (i32, i32, i32) {
    %c0_i32 = arith.constant 0 : i32
    %c0_i32_0 = arith.constant 0 : i32
    %c0_i32_1 = arith.constant 0 : i32
    %c0_i32_2 = arith.constant 0 : i32
    return %c0_i32, %c0_i32_0, %c0_i32_1 : i32, i32, i32
  }
}

</mosaic_0001>

<llo_original>
// kernel: forward.3
$region0: #{forward.3}
  #allocation0 [shape = 'u32[]', space=smem, size = 0x4, offset = 0x4, fixed_abs, tag = 'smem constant byte address 0x4 - core index']
  #allocation1 [shape = 'u32[144,128]{1,0:T(1,128)}', space=vmem, size = 0x12000, scoped, tag = 'internal scratch']
  #allocation2 [shape = 'f32[32,128]{1,0:T(8,128)}', space=vmem, size = 0x4000, scoped, tag = 'scratch operand']
  %s0 = inlined_call_operand.vmem [shape: f32[32,128], index: 0, kind: input, shape index: {}]
  %s1 = inlined_call_operand.vmem [shape: bf16[128,128], index: 1, kind: input, shape index: {}]
  %s2 = inlined_call_operand.vmem [shape: f32[1,128], index: 2, kind: input, shape index: {}]
  %s3 = inlined_call_operand.vmem [shape: f32[32,128], index: 3, kind: output, shape index: {}]
  %s4 = sld [smem:[#allocation0]]
  $region30: #{forward.3} parent=0
    _
  %s6 = ssub.s32 1, %s4
  %s7 = scalar_select 0, %s6, %s4
  // Predicated region
  $region2: #{forward.3} parent=0 // pred_check
    _
  $region3: #{forward.3} parent=0 // pred_check_branch
    %9 = sbr.rel (0) target = $region5
  $region4: #{forward.3} parent=0 // pred_region
    _
  $region5: #{forward.3} parent=0 // pred_fallthru
    _
  // Predicated region
  $region6: #{forward.3} parent=0 // pred_check
    _
  $region7: #{forward.3} parent=0 // pred_check_branch
    %11 = sbr.rel (0) target = $region9
  $region8: #{forward.3} parent=0 // pred_region
    _
  $region9: #{forward.3} parent=0 // pred_fallthru
    _
  // Predicated region
  $region10: #{forward.3} parent=0 // pred_check
    _
  $region11: #{forward.3} parent=0 // pred_check_branch
    %13 = sbr.rel (0) target = $region13
  $region12: #{forward.3} parent=0 // pred_region
    _
  $region13: #{forward.3} parent=0 // pred_fallthru
    _
  %p15 = scmp.eq.s32.totalorder 0, 0
  // Predicated region
  $region14: #{forward.3} parent=0 // pred_check
    %p16 = pneg %p15
  $region15: #{forward.3} parent=0 // pred_check_branch
    %18 = sbr.rel (%p16) target = $region17
  $region16: #{forward.3} parent=0 // pred_region
    %19 = vst [vmem:[#allocation2] sm:$0xff] 0.0
    %20 = vst [vmem:[#allocation2 + $0x8] sm:$0xff] 0.0
    %21 = vst [vmem:[#allocation2 + $0x10] sm:$0xff] 0.0
    %22 = vst [vmem:[#allocation2 + $0x18] sm:$0xff] 0.0
  $region17: #{forward.3} parent=0 // pred_fallthru
    _
  %v23 = vld [vmem:[#allocation2] sm:$0xff]
  %v24 = vld [vmem:[#allocation2 + $0x8] sm:$0xff]
  %v25 = vld [vmem:[#allocation2 + $0x10] sm:$0xff]
  %v26 = vld [vmem:[#allocation2 + $0x18] sm:$0xff]
  %v27 = vld [vmem:[%s0] sm:$0xff]
  %v28 = vld [vmem:[%s0 + $0x8] sm:$0xff]
  %v29 = vld [vmem:[%s0 + $0x10] sm:$0xff]
  %v30 = vld [vmem:[%s0 + $0x18] sm:$0xff]
  %v31 = vpack.c.bf16 %v28, %v27
  %v32 = vpack.c.bf16 %v30, %v29
  %v33 = vld [vmem:[%s1] sm:$0xf]
  %v34 = vld [vmem:[%s1 + $0x4] sm:$0xf]
  %v35 = vld [vmem:[%s1 + $0x8] sm:$0xf]
  %v36 = vld [vmem:[%s1 + $0xc] sm:$0xf]
  %v37 = vld [vmem:[%s1 + $0x10] sm:$0xf]
  %v38 = vld [vmem:[%s1 + $0x14] sm:$0xf]
  %v39 = vld [vmem:[%s1 + $0x18] sm:$0xf]
  %v40 = vld [vmem:[%s1 + $0x1c] sm:$0xf]
  %v41 = vld [vmem:[%s1 + $0x20] sm:$0xf]
  %v42 = vld [vmem:[%s1 + $0x24] sm:$0xf]
  %v43 = vld [vmem:[%s1 + $0x28] sm:$0xf]
  %v44 = vld [vmem:[%s1 + $0x2c] sm:$0xf]
  %v45 = vld [vmem:[%s1 + $0x30] sm:$0xf]
  %v46 = vld [vmem:[%s1 + $0x34] sm:$0xf]
  %v47 = vld [vmem:[%s1 + $0x38] sm:$0xf]
  %v48 = vld [vmem:[%s1 + $0x3c] sm:$0xf]
  %v65 = vunpack.c.l.b16 %v33
  %v66 = vunpack.c.l.b16 %v34
  %v67 = vunpack.c.l.b16 %v35
  %v68 = vunpack.c.l.b16 %v36
  %v69 = vunpack.c.l.b16 %v37
  %v70 = vunpack.c.l.b16 %v38
  %v71 = vunpack.c.l.b16 %v39
  %v72 = vunpack.c.l.b16 %v40
  %v73 = vunpack.c.l.b16 %v41
  %v74 = vunpack.c.l.b16 %v42
  %v75 = vunpack.c.l.b16 %v43
  %v76 = vunpack.c.l.b16 %v44
  %v77 = vunpack.c.l.b16 %v45
  %v78 = vunpack.c.l.b16 %v46
  %v79 = vunpack.c.l.b16 %v47
  %v80 = vunpack.c.l.b16 %v48
  %v81 = vpack.c.b16 %v66, %v65
  %v82 = vpack.c.b16 %v68, %v67
  %v83 = vpack.c.b16 %v70, %v69
  %v84 = vpack.c.b16 %v72, %v71
  %v85 = vpack.c.b16 %v74, %v73
  %v86 = vpack.c.b16 %v76, %v75
  %v87 = vpack.c.b16 %v78, %v77
  %v88 = vpack.c.b16 %v80, %v79
  %97 = vmatprep.subr.bf16.mxu0 0
  %98 = vmatpush1.bf16.msra.mxu0 %v81
  %99 = vmatprep.subr.bf16.mxu0 0
  %100 = vmatpush1.bf16.msra.mxu0 %v82
  %101 = vmatprep.subr.bf16.mxu0 0
  %102 = vmatpush1.bf16.msra.mxu0 %v83
  %103 = vmatprep.subr.bf16.mxu0 0
  %104 = vmatpush1.bf16.msra.mxu0 %v84
  %105 = vmatprep.subr.bf16.mxu0 0
  %106 = vmatpush1.bf16.msra.mxu0 %v85
  %107 = vmatprep.subr.bf16.mxu0 0
  %108 = vmatpush1.bf16.msra.mxu0 %v86
  %109 = vmatprep.subr.bf16.mxu0 0
  %110 = vmatpush1.bf16.msra.mxu0 %v87
  %111 = vmatprep.subr.bf16.mxu0 0
  %112 = vmatpush1.bf16.msra.mxu0 %v88
  %113 = vmatprep.subr.bf16.mxu0 0
  %114 = vmatpush1.bf16.msra.mxu0 0
  %115 = vmatprep.subr.bf16.mxu0 0
  %116 = vmatpush1.bf16.msra.mxu0 0
  %117 = vmatprep.subr.bf16.mxu0 0
  %118 = vmatpush1.bf16.msra.mxu0 0
  %119 = vmatprep.subr.bf16.mxu0 0
  %120 = vmatpush1.bf16.msra.mxu0 0
  %121 = vmatprep.subr.bf16.mxu0 0
  %122 = vmatpush1.bf16.msra.mxu0 0
  %123 = vmatprep.subr.bf16.mxu0 0
  %124 = vmatpush1.bf16.msra.mxu0 0
  %125 = vmatprep.subr.bf16.mxu0 0
  %126 = vmatpush1.bf16.msra.mxu0 0
  %127 = vmatprep.subr.bf16.mxu0 0
  %128 = vmatpush1.bf16.msra.mxu0 0
  %129 = vmatprep.mubr.bf16.mxu0 0
  %130 = vmatmul.mubr.bf16.gmra.mrb[0].mxu0 %v31
  %v131 = vpop.f32.mrb[0].mxu0
  %v132 = vadd.f32 0.0, %v131
  %v133 = vpop.f32.mrb[0].mxu0
  %v134 = vpop.f32.mrb[0].mxu0
  %v135 = vadd.f32 0.0, %v134
  %v136 = vpop.f32.mrb[0].mxu0
  %137 = vmatprep.mubr.bf16.mxu0 0
  %138 = vmatmul.mubr.bf16.gmra.mrb[0].mxu0 %v32
  %v139 = vpop.f32.mrb[0].mxu0
  %v140 = vadd.f32 0.0, %v139
  %v141 = vpop.f32.mrb[0].mxu0
  %v142 = vpop.f32.mrb[0].mxu0
  %v143 = vadd.f32 0.0, %v142
  %v144 = vpop.f32.mrb[0].mxu0
  %145 = vdwg.mxu0
  %v146 = vadd.f32 %v23, %v132
  %v147 = vadd.f32 %v24, %v135
  %v148 = vadd.f32 %v25, %v140
  %v149 = vadd.f32 %v26, %v143
  %150 = vst [vmem:[#allocation2] sm:$0xff] %v146
  %151 = vst [vmem:[#allocation2 + $0x8] sm:$0xff] %v147
  %152 = vst [vmem:[#allocation2 + $0x10] sm:$0xff] %v148
  %153 = vst [vmem:[#allocation2 + $0x18] sm:$0xff] %v149
  // Predicated region
  $region18: #{forward.3} parent=0 // pred_check
    %p154 = pneg %p15
  $region19: #{forward.3} parent=0 // pred_check_branch
    %156 = sbr.rel (%p154) target = $region21
  $region20: #{forward.3} parent=0 // pred_region
    %v157 = vld [vmem:[#allocation2] sm:$0xff]
    %v158 = vld [vmem:[#allocation2 + $0x8] sm:$0xff]
    %v159 = vld [vmem:[#allocation2 + $0x10] sm:$0xff]
    %v160 = vld [vmem:[#allocation2 + $0x18] sm:$0xff]
    %v161 = vld [vmem:[%s2] sm:$0x1]
    %v163 = vlaneseq
    %v164 = vshrl.u32 %v163, 7
    %v165 = vsub.s32 0, %v164
    %v166 = vrot.slane %v161, %v165
    %v168 = vadd.f32 %v157, %v166
    %v169 = vadd.f32 %v158, %v166
    %v170 = vadd.f32 %v159, %v166
    %v171 = vadd.f32 %v160, %v166
    %v172 = vmax.f32 %v168, 0.0
    %v173 = vmax.f32 %v169, 0.0
    %v174 = vmax.f32 %v170, 0.0
    %v175 = vmax.f32 %v171, 0.0
    %176 = vst [vmem:[%s3] sm:$0xff] %v172
    %177 = vst [vmem:[%s3 + $0x8] sm:$0xff] %v173
    %178 = vst [vmem:[%s3 + $0x10] sm:$0xff] %v174
    %179 = vst [vmem:[%s3 + $0x18] sm:$0xff] %v175
  $region21: #{forward.3} parent=0 // pred_fallthru
    _
  // Predicated region
  $region22: #{forward.3} parent=0 // pred_check
    _
  $region23: #{forward.3} parent=0 // pred_check_branch
    %181 = sbr.rel (0) target = $region25
  $region24: #{forward.3} parent=0 // pred_region
    _
  $region25: #{forward.3} parent=0 // pred_fallthru
    _
  // Predicated region
  $region26: #{forward.3} parent=0 // pred_check
    _
  $region27: #{forward.3} parent=0 // pred_check_branch
    %183 = sbr.rel (0) target = $region29
  $region28: #{forward.3} parent=0 // pred_region
    _
  $region29: #{forward.3} parent=0 // pred_fallthru
    _

// kernel: forward.4
$region0: #{forward.4}
  #allocation0 [shape = 'u32[]', space=smem, size = 0x4, offset = 0x4, fixed_abs, tag = 'smem constant byte address 0x4 - core index']
  #allocation1 [shape = 'u32[144,128]{1,0:T(1,128)}', space=vmem, size = 0x12000, scoped, tag = 'internal scratch']
  %s0 = inlined_call_operand.vmem [shape: f32[32,128], index: 0, kind: input, shape index: {}]
  %s1 = inlined_call_operand.vmem [shape: bf16[128,128], index: 1, kind: input, shape index: {}]
  %s2 = inlined_call_operand.vmem [shape: f32[1,128], index: 2, kind: input, shape index: {}]
  %s3 = inlined_call_operand.vmem [shape: bf16[128,128], index: 3, kind: input, shape index: {}]
  %s4 = inlined_call_operand.vmem [shape: f32[1,128], index: 4, kind: input, shape index: {}]
  %s5 = inlined_call_operand.vmem [shape: f32[32,128], index: 5, kind: output, shape index: {}]
  %s6 = sld [smem:[#allocation0]]
  $region30: #{forward.4} parent=0
    _
  %s8 = ssub.s32 1, %s6
  %s9 = scalar_select 0, %s8, %s6
  // Predicated region
  $region2: #{forward.4} parent=0 // pred_check
    _
  $region3: #{forward.4} parent=0 // pred_check_branch
    %11 = sbr.rel (0) target = $region5
  $region4: #{forward.4} parent=0 // pred_region
    _
  $region5: #{forward.4} parent=0 // pred_fallthru
    _
  // Predicated region
  $region6: #{forward.4} parent=0 // pred_check
    _
  $region7: #{forward.4} parent=0 // pred_check_branch
    %13 = sbr.rel (0) target = $region9
  $region8: #{forward.4} parent=0 // pred_region
    _
  $region9: #{forward.4} parent=0 // pred_fallthru
    _
  // Predicated region
  $region10: #{forward.4} parent=0 // pred_check
    _
  $region11: #{forward.4} parent=0 // pred_check_branch
    %15 = sbr.rel (0) target = $region13
  $region12: #{forward.4} parent=0 // pred_region
    _
  $region13: #{forward.4} parent=0 // pred_fallthru
    _
  // Predicated region
  $region14: #{forward.4} parent=0 // pred_check
    _
  $region15: #{forward.4} parent=0 // pred_check_branch
    %17 = sbr.rel (0) target = $region17
  $region16: #{forward.4} parent=0 // pred_region
    _
  $region17: #{forward.4} parent=0 // pred_fallthru
    _
  // Predicated region
  $region18: #{forward.4} parent=0 // pred_check
    _
  $region19: #{forward.4} parent=0 // pred_check_branch
    %19 = sbr.rel (0) target = $region21
  $region20: #{forward.4} parent=0 // pred_region
    _
  $region21: #{forward.4} parent=0 // pred_fallthru
    _
  %v21 = vld [vmem:[%s0] sm:$0xff]
  %v22 = vld [vmem:[%s0 + $0x8] sm:$0xff]
  %v23 = vld [vmem:[%s0 + $0x10] sm:$0xff]
  %v24 = vld [vmem:[%s0 + $0x18] sm:$0xff]
  %v25 = vpack.c.bf16 %v22, %v21
  %v26 = vpack.c.bf16 %v24, %v23
  %v27 = vld [vmem:[%s1] sm:$0xf]
  %v28 = vld [vmem:[%s1 + $0x4] sm:$0xf]
  %v29 = vld [vmem:[%s1 + $0x8] sm:$0xf]
  %v30 = vld [vmem:[%s1 + $0xc] sm:$0xf]
  %v31 = vld [vmem:[%s1 + $0x10] sm:$0xf]
  %v32 = vld [vmem:[%s1 + $0x14] sm:$0xf]
  %v33 = vld [vmem:[%s1 + $0x18] sm:$0xf]
  %v34 = vld [vmem:[%s1 + $0x1c] sm:$0xf]
  %v35 = vld [vmem:[%s1 + $0x20] sm:$0xf]
  %v36 = vld [vmem:[%s1 + $0x24] sm:$0xf]
  %v37 = vld [vmem:[%s1 + $0x28] sm:$0xf]
  %v38 = vld [vmem:[%s1 + $0x2c] sm:$0xf]
  %v39 = vld [vmem:[%s1 + $0x30] sm:$0xf]
  %v40 = vld [vmem:[%s1 + $0x34] sm:$0xf]
  %v41 = vld [vmem:[%s1 + $0x38] sm:$0xf]
  %v42 = vld [vmem:[%s1 + $0x3c] sm:$0xf]
  %v43 = vld [vmem:[%s2] sm:$0x1]
  %v45 = vlaneseq
  %v46 = vshrl.u32 %v45, 7
  %v47 = vsub.s32 0, %v46
  %v48 = vrot.slane %v43, %v47
  %v66 = vunpack.c.l.b16 %v27
  %v67 = vunpack.c.l.b16 %v28
  %v68 = vunpack.c.l.b16 %v29
  %v69 = vunpack.c.l.b16 %v30
  %v70 = vunpack.c.l.b16 %v31
  %v71 = vunpack.c.l.b16 %v32
  %v72 = vunpack.c.l.b16 %v33
  %v73 = vunpack.c.l.b16 %v34
  %v74 = vunpack.c.l.b16 %v35
  %v75 = vunpack.c.l.b16 %v36
  %v76 = vunpack.c.l.b16 %v37
  %v77 = vunpack.c.l.b16 %v38
  %v78 = vunpack.c.l.b16 %v39
  %v79 = vunpack.c.l.b16 %v40
  %v80 = vunpack.c.l.b16 %v41
  %v81 = vunpack.c.l.b16 %v42
  %v82 = vpack.c.b16 %v67, %v66
  %v83 = vpack.c.b16 %v69, %v68
  %v84 = vpack.c.b16 %v71, %v70
  %v85 = vpack.c.b16 %v73, %v72
  %v86 = vpack.c.b16 %v75, %v74
  %v87 = vpack.c.b16 %v77, %v76
  %v88 = vpack.c.b16 %v79, %v78
  %v89 = vpack.c.b16 %v81, %v80
  %98 = vmatprep.subr.bf16.mxu0 0
  %99 = vmatpush1.bf16.msra.mxu0 %v82
  %100 = vmatprep.subr.bf16.mxu0 0
  %101 = vmatpush1.bf16.msra.mxu0 %v83
  %102 = vmatprep.subr.bf16.mxu0 0
  %103 = vmatpush1.bf16.msra.mxu0 %v84
  %104 = vmatprep.subr.bf16.mxu0 0
  %105 = vmatpush1.bf16.msra.mxu0 %v85
  %106 = vmatprep.subr.bf16.mxu0 0
  %107 = vmatpush1.bf16.msra.mxu0 %v86
  %108 = vmatprep.subr.bf16.mxu0 0
  %109 = vmatpush1.bf16.msra.mxu0 %v87
  %110 = vmatprep.subr.bf16.mxu0 0
  %111 = vmatpush1.bf16.msra.mxu0 %v88
  %112 = vmatprep.subr.bf16.mxu0 0
  %113 = vmatpush1.bf16.msra.mxu0 %v89
  %114 = vmatprep.subr.bf16.mxu0 0
  %115 = vmatpush1.bf16.msra.mxu0 0
  %116 = vmatprep.subr.bf16.mxu0 0
  %117 = vmatpush1.bf16.msra.mxu0 0
  %118 = vmatprep.subr.bf16.mxu0 0
  %119 = vmatpush1.bf16.msra.mxu0 0
  %120 = vmatprep.subr.bf16.mxu0 0
  %121 = vmatpush1.bf16.msra.mxu0 0
  %122 = vmatprep.subr.bf16.mxu0 0
  %123 = vmatpush1.bf16.msra.mxu0 0
  %124 = vmatprep.subr.bf16.mxu0 0
  %125 = vmatpush1.bf16.msra.mxu0 0
  %126 = vmatprep.subr.bf16.mxu0 0
  %127 = vmatpush1.bf16.msra.mxu0 0
  %128 = vmatprep.subr.bf16.mxu0 0
  %129 = vmatpush1.bf16.msra.mxu0 0
  %130 = vmatprep.mubr.bf16.mxu0 0
  %131 = vmatmul.mubr.bf16.gmra.mrb[0].mxu0 %v25
  %v132 = vpop.f32.mrb[0].mxu0
  %v133 = vadd.f32 %v48, %v132
  %v134 = vpop.f32.mrb[0].mxu0
  %v135 = vpop.f32.mrb[0].mxu0
  %v136 = vadd.f32 %v48, %v135
  %v137 = vpop.f32.mrb[0].mxu0
  %138 = vmatprep.mubr.bf16.mxu0 0
  %139 = vmatmul.mubr.bf16.gmra.mrb[0].mxu0 %v26
  %v140 = vpop.f32.mrb[0].mxu0
  %v141 = vadd.f32 %v48, %v140
  %v142 = vpop.f32.mrb[0].mxu0
  %v143 = vpop.f32.mrb[0].mxu0
  %v144 = vadd.f32 %v48, %v143
  %v145 = vpop.f32.mrb[0].mxu0
  %146 = vdwg.mxu0
  %v147 = vmax.f32 %v133, 0.0
  %v148 = vmax.f32 %v136, 0.0
  %v149 = vmax.f32 %v141, 0.0
  %v150 = vmax.f32 %v144, 0.0
  %v151 = vpack.c.bf16 %v148, %v147
  %v152 = vpack.c.bf16 %v150, %v149
  %v153 = vld [vmem:[%s3] sm:$0xf]
  %v154 = vld [vmem:[%s3 + $0x4] sm:$0xf]
  %v155 = vld [vmem:[%s3 + $0x8] sm:$0xf]
  %v156 = vld [vmem:[%s3 + $0xc] sm:$0xf]
  %v157 = vld [vmem:[%s3 + $0x10] sm:$0xf]
  %v158 = vld [vmem:[%s3 + $0x14] sm:$0xf]
  %v159 = vld [vmem:[%s3 + $0x18] sm:$0xf]
  %v160 = vld [vmem:[%s3 + $0x1c] sm:$0xf]
  %v161 = vld [vmem:[%s3 + $0x20] sm:$0xf]
  %v162 = vld [vmem:[%s3 + $0x24] sm:$0xf]
  %v163 = vld [vmem:[%s3 + $0x28] sm:$0xf]
  %v164 = vld [vmem:[%s3 + $0x2c] sm:$0xf]
  %v165 = vld [vmem:[%s3 + $0x30] sm:$0xf]
  %v166 = vld [vmem:[%s3 + $0x34] sm:$0xf]
  %v167 = vld [vmem:[%s3 + $0x38] sm:$0xf]
  %v168 = vld [vmem:[%s3 + $0x3c] sm:$0xf]
  %v169 = vld [vmem:[%s4] sm:$0x1]
  %v171 = vlaneseq
  %v172 = vshrl.u32 %v171, 7
  %v173 = vsub.s32 0, %v172
  %v174 = vrot.slane %v169, %v173
  %v192 = vunpack.c.l.b16 %v153
  %v193 = vunpack.c.l.b16 %v154
  %v194 = vunpack.c.l.b16 %v155
  %v195 = vunpack.c.l.b16 %v156
  %v196 = vunpack.c.l.b16 %v157
  %v197 = vunpack.c.l.b16 %v158
  %v198 = vunpack.c.l.b16 %v159
  %v199 = vunpack.c.l.b16 %v160
  %v200 = vunpack.c.l.b16 %v161
  %v201 = vunpack.c.l.b16 %v162
  %v202 = vunpack.c.l.b16 %v163
  %v203 = vunpack.c.l.b16 %v164
  %v204 = vunpack.c.l.b16 %v165
  %v205 = vunpack.c.l.b16 %v166
  %v206 = vunpack.c.l.b16 %v167
  %v207 = vunpack.c.l.b16 %v168
  %v208 = vpack.c.b16 %v193, %v192
  %v209 = vpack.c.b16 %v195, %v194
  %v210 = vpack.c.b16 %v197, %v196
  %v211 = vpack.c.b16 %v199, %v198
  %v212 = vpack.c.b16 %v201, %v200
  %v213 = vpack.c.b16 %v203, %v202
  %v214 = vpack.c.b16 %v205, %v204
  %v215 = vpack.c.b16 %v207, %v206
  %224 = vmatprep.subr.bf16.mxu0 0
  %225 = vmatpush1.bf16.msra.mxu0 %v208
  %226 = vmatprep.subr.bf16.mxu0 0
  %227 = vmatpush1.bf16.msra.mxu0 %v209
  %228 = vmatprep.subr.bf16.mxu0 0
  %229 = vmatpush1.bf16.msra.mxu0 %v210
  %230 = vmatprep.subr.bf16.mxu0 0
  %231 = vmatpush1.bf16.msra.mxu0 %v211
  %232 = vmatprep.subr.bf16.mxu0 0
  %233 = vmatpush1.bf16.msra.mxu0 %v212
  %234 = vmatprep.subr.bf16.mxu0 0
  %235 = vmatpush1.bf16.msra.mxu0 %v213
  %236 = vmatprep.subr.bf16.mxu0 0
  %237 = vmatpush1.bf16.msra.mxu0 %v214
  %238 = vmatprep.subr.bf16.mxu0 0
  %239 = vmatpush1.bf16.msra.mxu0 %v215
  %240 = vmatprep.subr.bf16.mxu0 0
  %241 = vmatpush1.bf16.msra.mxu0 0
  %242 = vmatprep.subr.bf16.mxu0 0
  %243 = vmatpush1.bf16.msra.mxu0 0
  %244 = vmatprep.subr.bf16.mxu0 0
  %245 = vmatpush1.bf16.msra.mxu0 0
  %246 = vmatprep.subr.bf16.mxu0 0
  %247 = vmatpush1.bf16.msra.mxu0 0
  %248 = vmatprep.subr.bf16.mxu0 0
  %249 = vmatpush1.bf16.msra.mxu0 0
  %250 = vmatprep.subr.bf16.mxu0 0
  %251 = vmatpush1.bf16.msra.mxu0 0
  %252 = vmatprep.subr.bf16.mxu0 0
  %253 = vmatpush1.bf16.msra.mxu0 0
  %254 = vmatprep.subr.bf16.mxu0 0
  %255 = vmatpush1.bf16.msra.mxu0 0
  %256 = vmatprep.mubr.bf16.mxu0 0
  %257 = vmatmul.mubr.bf16.gmra.mrb[0].mxu0 %v151
  %v258 = vpop.f32.mrb[0].mxu0
  %v259 = vadd.f32 %v174, %v258
  %v260 = vpop.f32.mrb[0].mxu0
  %v261 = vpop.f32.mrb[0].mxu0
  %v262 = vadd.f32 %v174, %v261
  %v263 = vpop.f32.mrb[0].mxu0
  %264 = vmatprep.mubr.bf16.mxu0 0
  %265 = vmatmul.mubr.bf16.gmra.mrb[0].mxu0 %v152
  %v266 = vpop.f32.mrb[0].mxu0
  %v267 = vadd.f32 %v174, %v266
  %v268 = vpop.f32.mrb[0].mxu0
  %v269 = vpop.f32.mrb[0].mxu0
  %v270 = vadd.f32 %v174, %v269
  %v271 = vpop.f32.mrb[0].mxu0
  %272 = vdwg.mxu0
  %273 = vst [vmem:[%s5] sm:$0xff] %v259
  %274 = vst [vmem:[%s5 + $0x8] sm:$0xff] %v262
  %275 = vst [vmem:[%s5 + $0x10] sm:$0xff] %v267
  %276 = vst [vmem:[%s5 + $0x18] sm:$0xff] %v270
  // Predicated region
  $region22: #{forward.4} parent=0 // pred_check
    _
  $region23: #{forward.4} parent=0 // pred_check_branch
    %278 = sbr.rel (0) target = $region25
  $region24: #{forward.4} parent=0 // pred_region
    _
  $region25: #{forward.4} parent=0 // pred_fallthru
    _
  // Predicated region
  $region26: #{forward.4} parent=0 // pred_check
    _
  $region27: #{forward.4} parent=0 // pred_check_branch
    %280 = sbr.rel (0) target = $region29
  $region28: #{forward.4} parent=0 // pred_region
    _
  $region29: #{forward.4} parent=0 // pred_fallthru
    _

// kernel: forward.5
$region0: #{forward.5}
  #allocation0 [shape = 'u32[]', space=smem, size = 0x4, offset = 0x4, fixed_abs, tag = 'smem constant byte address 0x4 - core index']
  #allocation1 [shape = 'u32[144,128]{1,0:T(1,128)}', space=vmem, size = 0x12000, scoped, tag = 'internal scratch']
  %s0 = inlined_call_operand.vmem [shape: f32[2,16,32], index: 0, kind: input, shape index: {}]
  %s1 = inlined_call_operand.vmem [shape: f32[2,16,32], index: 1, kind: input, shape index: {}]
  %s2 = inlined_call_operand.vmem [shape: bf16[32,32], index: 2, kind: input, shape index: {}]
  %s3 = inlined_call_operand.vmem [shape: bf16[32,32], index: 3, kind: input, shape index: {}]
  %s4 = inlined_call_operand.vmem [shape: bf16[32,32], index: 4, kind: input, shape index: {}]
  %s5 = inlined_call_operand.vmem [shape: f32[1,32], index: 5, kind: input, shape index: {}]
  %s6 = inlined_call_operand.vmem [shape: f32[1,32], index: 6, kind: input, shape index: {}]
  %s7 = inlined_call_operand.vmem [shape: f32[1,32], index: 7, kind: input, shape index: {}]
  %s8 = inlined_call_operand.vmem [shape: bf16[16,32,128], index: 8, kind: input, shape index: {}]
  %s9 = inlined_call_operand.vmem [shape: f32[1,128], index: 9, kind: input, shape index: {}]
  %s10 = inlined_call_operand.hbm [shape: f32[2,1,128], index: 10, kind: output, shape index: {0}]
  %s11 = inlined_call_operand.hbm [shape: f32[2,16,16], index: 11, kind: output, shape index: {1}]
  %12 = xla_tuple %s10, %s11
  %s13 = sld [smem:[#allocation0]]
  $region58: #{forward.5} parent=0
    _
  %s15 = ssub.s32 1, %s13
  %s16 = scalar_select 0, %s15, %s13
  $region1: #{forward.5} parent=0
    #allocation2 [shape = 'u8[1024]{0}', space=vmem, size = 0x400, scoped, tag = 'output window, operand 0, single buffered']
    #allocation3 [shape = 's32[1]{0}', space=sflag, size = 0x4, scoped, tag = 'scoped memory for forward.5']
    #allocation4 [shape = 'u8[16384]{0}', space=vmem, size = 0x4000, scoped, tag = 'output window, operand 1, single buffered']
    #allocation5 [shape = 's32[1]{0}', space=sflag, size = 0x4, scoped, tag = 'scoped memory for forward.5']
    %17 = vsyncpa [#allocation3], 0
    %18 = vsyncpa [#allocation5], 0
    // Predicated region
    $region2: #{forward.5} parent=1 // pred_check
      _
    $region3: #{forward.5} parent=1 // pred_check_branch
      %20 = sbr.rel (0) target = $region5
    $region4: #{forward.5} parent=1 // pred_region
      _
    $region5: #{forward.5} parent=1 // pred_fallthru
      _
    // Predicated region
    $region6: #{forward.5} parent=1 // pred_check
      _
    $region7: #{forward.5} parent=1 // pred_check_branch
      %22 = sbr.rel (0) target = $region9
    $region8: #{forward.5} parent=1 // pred_region
      _
    $region9: #{forward.5} parent=1 // pred_fallthru
      _
    // Predicated region
    $region10: #{forward.5} parent=1 // pred_check
      _
    $region11: #{forward.5} parent=1 // pred_check_branch
      %24 = sbr.rel (0) target = $region13
    $region12: #{forward.5} parent=1 // pred_region
      _
    $region13: #{forward.5} parent=1 // pred_fallthru
      _
    // Predicated region
    $region14: #{forward.5} parent=1 // pred_check
      _
    $region15: #{forward.5} parent=1 // pred_check_branch
      %26 = sbr.rel (0) target = $region17
    $region16: #{forward.5} parent=1 // pred_region
      _
    $region17: #{forward.5} parent=1 // pred_fallthru
      _
    // Predicated region
    $region18: #{forward.5} parent=1 // pred_check
      _
    $region19: #{forward.5} parent=1 // pred_check_branch
      %28 = sbr.rel (0) target = $region21
    $region20: #{forward.5} parent=1 // pred_region
      _
    $region21: #{forward.5} parent=1 // pred_fallthru
      _
    // Predicated region
    $region22: #{forward.5} parent=1 // pred_check
      _
    $region23: #{forward.5} parent=1 // pred_check_branch
      %30 = sbr.rel (0) target = $region25
    $region24: #{forward.5} parent=1 // pred_region
      _
    $region25: #{forward.5} parent=1 // pred_fallthru
      _
    // Predicated region
    $region26: #{forward.5} parent=1 // pred_check
      _
    $region27: #{forward.5} parent=1 // pred_check_branch
      %32 = sbr.rel (0) target = $region29
    $region28: #{forward.5} parent=1 // pred_region
      _
    $region29: #{forward.5} parent=1 // pred_fallthru
      _
    // Predicated region
    $region30: #{forward.5} parent=1 // pred_check
      _
    $region31: #{forward.5} parent=1 // pred_check_branch
      %34 = sbr.rel (0) target = $region33
    $region32: #{forward.5} parent=1 // pred_region
      _
    $region33: #{forward.5} parent=1 // pred_fallthru
      _
    // Predicated region
    $region34: #{forward.5} parent=1 // pred_check
      _
    $region35: #{forward.5} parent=1 // pred_check_branch
      %36 = sbr.rel (0) target = $region37
    $region36: #{forward.5} parent=1 // pred_region
      _
    $region37: #{forward.5} parent=1 // pred_fallthru
      _
    // Predicated region
    $region38: #{forward.5} parent=1 // pred_check
      _
    $region39: #{forward.5} parent=1 // pred_check_branch
      %38 = sbr.rel (0) target = $region41
    $region40: #{forward.5} parent=1 // pred_region
      _
    $region41: #{forward.5} parent=1 // pred_fallthru
      _
    %v40 = vld [vmem:[%s2] sm:$0xf]
    %v41 = vld [vmem:[%s2 + $0x4] sm:$0xf]
    %v42 = vld [vmem:[%s2 + $0x8] sm:$0xf]
    %v43 = vld [vmem:[%s2 + $0xc] sm:$0xf]
    %v44 = vld [vmem:[%s3] sm:$0xf]
    %v45 = vld [vmem:[%s3 + $0x4] sm:$0xf]
    %v46 = vld [vmem:[%s3 + $0x8] sm:$0xf]
    %v47 = vld [vmem:[%s3 + $0xc] sm:$0xf]
    %v48 = vld [vmem:[%s4] sm:$0xf]
    %v49 = vld [vmem:[%s4 + $0x4] sm:$0xf]
    %v50 = vld [vmem:[%s4 + $0x8] sm:$0xf]
    %v51 = vld [vmem:[%s4 + $0xc] sm:$0xf]
    %v52 = vld [vmem:[%s5] sm:$0x1]
    %v53 = vld [vmem:[%s6] sm:$0x1]
    %v54 = vld [vmem:[%s7] sm:$0x1]
    %v55 = vld [vmem:[%s0] sm:$0xff]
    %v56 = vld [vmem:[%s0 + $0x8] sm:$0xff]
    %v57 = vpack.c.bf16 %v56, %v55
    %v58 = vld [vmem:[%s1] sm:$0xff]
    %v59 = vld [vmem:[%s1 + $0x8] sm:$0xff]
    %v60 = vpack.c.bf16 %v59, %v58
    %v62 = vlaneseq
    %v63 = vshrl.u32 %v62, 7
    %v64 = vsub.s32 0, %v63
    %v65 = vrot.slane %v52, %v64
    %v71 = vunpack.c.l.b16 %v40
    %v72 = vunpack.c.l.b16 %v41
    %v73 = vunpack.c.l.b16 %v42
    %v74 = vunpack.c.l.b16 %v43
    %v75 = vpack.c.b16 %v72, %v71
    %v76 = vpack.c.b16 %v74, %v73
    %vm79 = vcmask 261120
    %v81 = vsel %vm79, %v57, 0
    %83 = vmatprep.subr.bf16.mxu0 0
    %84 = vmatpush1.bf16.msra.mxu0 %v75
    %85 = vmatprep.subr.bf16.mxu0 0
    %86 = vmatpush1.bf16.msra.mxu0 %v76
    %87 = vmatprep.subr.bf16.mxu0 0
    %88 = vmatpush1.bf16.msra.mxu0 0
    %89 = vmatprep.subr.bf16.mxu0 0
    %90 = vmatpush1.bf16.msra.mxu0 0
    %91 = vmatprep.subr.bf16.mxu0 0
    %92 = vmatpush1.bf16.msra.mxu0 0
    %93 = vmatprep.subr.bf16.mxu0 0
    %94 = vmatpush1.bf16.msra.mxu0 0
    %95 = vmatprep.subr.bf16.mxu0 0
    %96 = vmatpush1.bf16.msra.mxu0 0
    %97 = vmatprep.subr.bf16.mxu0 0
    %98 = vmatpush1.bf16.msra.mxu0 0
    %99 = vmatprep.subr.bf16.mxu0 0
    %100 = vmatpush1.bf16.msra.mxu0 0
    %101 = vmatprep.subr.bf16.mxu0 0
    %102 = vmatpush1.bf16.msra.mxu0 0
    %103 = vmatprep.subr.bf16.mxu0 0
    %104 = vmatpush1.bf16.msra.mxu0 0
    %105 = vmatprep.subr.bf16.mxu0 0
    %106 = vmatpush1.bf16.msra.mxu0 0
    %107 = vmatprep.subr.bf16.mxu0 0
    %108 = vmatpush1.bf16.msra.mxu0 0
    %109 = vmatprep.subr.bf16.mxu0 0
    %110 = vmatpush1.bf16.msra.mxu0 0
    %111 = vmatprep.subr.bf16.mxu0 0
    %112 = vmatpush1.bf16.msra.mxu0 0
    %113 = vmatprep.subr.bf16.mxu0 0
    %114 = vmatpush1.bf16.msra.mxu0 0
    %115 = vmatprep.mubr.bf16.mxu0 0
    %116 = vmatmul.mubr.bf16.gmra.mrb[0].mxu0 %v81
    %v117 = vpop.f32.mrb[0].mxu0
    %v118 = vadd.f32 %v65, %v117
    %v119 = vpop.f32.mrb[0].mxu0
    %v120 = vpop.f32.mrb[0].mxu0
    %v121 = vadd.f32 %v65, %v120
    %v122 = vpop.f32.mrb[0].mxu0
    %123 = vdwg.mxu0
    %v125 = vlaneseq
    %v126 = vshrl.u32 %v125, 7
    %v127 = vsub.s32 0, %v126
    %v128 = vrot.slane %v53, %v127
    %v134 = vunpack.c.l.b16 %v44
    %v135 = vunpack.c.l.b16 %v45
    %v136 = vunpack.c.l.b16 %v46
    %v137 = vunpack.c.l.b16 %v47
    %v138 = vpack.c.b16 %v135, %v134
    %v139 = vpack.c.b16 %v137, %v136
    %142 = vmatprep.subr.bf16.mxu0 0
    %143 = vmatpush1.bf16.msra.mxu0 %v138
    %144 = vmatprep.subr.bf16.mxu0 0
    %145 = vmatpush1.bf16.msra.mxu0 %v139
    %146 = vmatprep.subr.bf16.mxu0 0
    %147 = vmatpush1.bf16.msra.mxu0 0
    %148 = vmatprep.subr.bf16.mxu0 0
    %149 = vmatpush1.bf16.msra.mxu0 0
    %150 = vmatprep.subr.bf16.mxu0 0
    %151 = vmatpush1.bf16.msra.mxu0 0
    %152 = vmatprep.subr.bf16.mxu0 0
    %153 = vmatpush1.bf16.msra.mxu0 0
    %154 = vmatprep.subr.bf16.mxu0 0
    %155 = vmatpush1.bf16.msra.mxu0 0
    %156 = vmatprep.subr.bf16.mxu0 0
    %157 = vmatpush1.bf16.msra.mxu0 0
    %158 = vmatprep.subr.bf16.mxu0 0
    %159 = vmatpush1.bf16.msra.mxu0 0
    %160 = vmatprep.subr.bf16.mxu0 0
    %161 = vmatpush1.bf16.msra.mxu0 0
    %162 = vmatprep.subr.bf16.mxu0 0
    %163 = vmatpush1.bf16.msra.mxu0 0
    %164 = vmatprep.subr.bf16.mxu0 0
    %165 = vmatpush1.bf16.msra.mxu0 0
    %166 = vmatprep.subr.bf16.mxu0 0
    %167 = vmatpush1.bf16.msra.mxu0 0
    %168 = vmatprep.subr.bf16.mxu0 0
    %169 = vmatpush1.bf16.msra.mxu0 0
    %170 = vmatprep.subr.bf16.mxu0 0
    %171 = vmatpush1.bf16.msra.mxu0 0
    %172 = vmatprep.subr.bf16.mxu0 0
    %173 = vmatpush1.bf16.msra.mxu0 0
    %174 = vmatprep.mubr.bf16.mxu0 0
    %175 = vmatmul.mubr.bf16.gmra.mrb[0].mxu0 %v81
    %v176 = vpop.f32.mrb[0].mxu0
    %v177 = vadd.f32 %v128, %v176
    %v178 = vpop.f32.mrb[0].mxu0
    %v179 = vpop.f32.mrb[0].mxu0
    %v180 = vadd.f32 %v128, %v179
    %v181 = vpop.f32.mrb[0].mxu0
    %182 = vdwg.mxu0
    %v184 = vlaneseq
    %v185 = vshrl.u32 %v184, 7
    %v186 = vsub.s32 0, %v185
    %v187 = vrot.slane %v54, %v186
    %v193 = vunpack.c.l.b16 %v48
    %v194 = vunpack.c.l.b16 %v49
    %v195 = vunpack.c.l.b16 %v50
    %v196 = vunpack.c.l.b16 %v51
    %v197 = vpack.c.b16 %v194, %v193
    %v198 = vpack.c.b16 %v196, %v195
    %v202 = vsel %vm79, %v60, 0
    %204 = vmatprep.subr.bf16.mxu0 0
    %205 = vmatpush1.bf16.msra.mxu0 %v197
    %206 = vmatprep.subr.bf16.mxu0 0
    %207 = vmatpush1.bf16.msra.mxu0 %v198
    %208 = vmatprep.subr.bf16.mxu0 0
    %209 = vmatpush1.bf16.msra.mxu0 0
    %210 = vmatprep.subr.bf16.mxu0 0
    %211 = vmatpush1.bf16.msra.mxu0 0
    %212 = vmatprep.subr.bf16.mxu0 0
    %213 = vmatpush1.bf16.msra.mxu0 0
    %214 = vmatprep.subr.bf16.mxu0 0
    %215 = vmatpush1.bf16.msra.mxu0 0
    %216 = vmatprep.subr.bf16.mxu0 0
    %217 = vmatpush1.bf16.msra.mxu0 0
    %218 = vmatprep.subr.bf16.mxu0 0
    %219 = vmatpush1.bf16.msra.mxu0 0
    %220 = vmatprep.subr.bf16.mxu0 0
    %221 = vmatpush1.bf16.msra.mxu0 0
    %222 = vmatprep.subr.bf16.mxu0 0
    %223 = vmatpush1.bf16.msra.mxu0 0
    %224 = vmatprep.subr.bf16.mxu0 0
    %225 = vmatpush1.bf16.msra.mxu0 0
    %226 = vmatprep.subr.bf16.mxu0 0
    %227 = vmatpush1.bf16.msra.mxu0 0
    %228 = vmatprep.subr.bf16.mxu0 0
    %229 = vmatpush1.bf16.msra.mxu0 0
    %230 = vmatprep.subr.bf16.mxu0 0
    %231 = vmatpush1.bf16.msra.mxu0 0
    %232 = vmatprep.subr.bf16.mxu0 0
    %233 = vmatpush1.bf16.msra.mxu0 0
    %234 = vmatprep.subr.bf16.mxu0 0
    %235 = vmatpush1.bf16.msra.mxu0 0
    %236 = vmatprep.mubr.bf16.mxu0 0
    %237 = vmatmul.mubr.bf16.gmra.mrb[0].mxu0 %v202
    %v238 = vpop.f32.mrb[0].mxu0
    %v239 = vadd.f32 %v187, %v238
    %v240 = vpop.f32.mrb[0].mxu0
    %v241 = vpop.f32.mrb[0].mxu0
    %v242 = vadd.f32 %v187, %v241
    %v243 = vpop.f32.mrb[0].mxu0
    %244 = vdwg.mxu0
    %v245 = vpack.c.bf16 %v121, %v118
    %v246 = vpack.c.bf16 %v180, %v177
    %v248 = vsel %vm79, %v245, 0
    %v251 = vsel %vm79, %v246, 0
    %253 = vmatprep.subr.bf16.mxu0 0
    %254 = vmatpush1.bf16.xpose.msra.mxu0 %v251
    %255 = vmatprep.subr.bf16.mxu0 0
    %256 = vmatpush1.bf16.xpose.msra.mxu0 0
    %257 = vmatprep.subr.bf16.mxu0 0
    %258 = vmatpush1.bf16.xpose.msra.mxu0 0
    %259 = vmatprep.subr.bf16.mxu0 0
    %260 = vmatpush1.bf16.xpose.msra.mxu0 0
    %261 = vmatprep.subr.bf16.mxu0 0
    %262 = vmatpush1.bf16.xpose.msra.mxu0 0
    %263 = vmatprep.subr.bf16.mxu0 0
    %264 = vmatpush1.bf16.xpose.msra.mxu0 0
    %265 = vmatprep.subr.bf16.mxu0 0
    %266 = vmatpush1.bf16.xpose.msra.mxu0 0
    %267 = vmatprep.subr.bf16.mxu0 0
    %268 = vmatpush1.bf16.xpose.msra.mxu0 0
    %269 = vmatprep.subr.bf16.mxu0 0
    %270 = vmatpush1.bf16.xpose.msra.mxu0 0
    %271 = vmatprep.subr.bf16.mxu0 0
    %272 = vmatpush1.bf16.xpose.msra.mxu0 0
    %273 = vmatprep.subr.bf16.mxu0 0
    %274 = vmatpush1.bf16.xpose.msra.mxu0 0
    %275 = vmatprep.subr.bf16.mxu0 0
    %276 = vmatpush1.bf16.xpose.msra.mxu0 0
    %277 = vmatprep.subr.bf16.mxu0 0
    %278 = vmatpush1.bf16.xpose.msra.mxu0 0
    %279 = vmatprep.subr.bf16.mxu0 0
    %280 = vmatpush1.bf16.xpose.msra.mxu0 0
    %281 = vmatprep.subr.bf16.mxu0 0
    %282 = vmatpush1.bf16.xpose.msra.mxu0 0
    %283 = vmatprep.subr.bf16.mxu0 0
    %284 = vmatpush1.bf16.xpose.msra.mxu0 0
    %285 = vmatprep.mubr.bf16.mxu0 0
    %286 = vmatmul.mubr.bf16.gmra.mrb[0].mxu0 %v248
    %v287 = vpop.f32.mrb[0].mxu0
    %v288 = vadd.f32 0.0, %v287
    %v289 = vpop.f32.mrb[0].mxu0
    %v290 = vpop.f32.mrb[0].mxu0
    %v291 = vadd.f32 0.0, %v290
    %v292 = vpop.f32.mrb[0].mxu0
    %293 = vdwg.mxu0
    %v294 = vmul.f32 %v288, 0.17677669
    %v295 = vmul.f32 %v291, 0.17677669
    %vm296 = vcmask 130048
    %v297 = vsel %vm296, %v294, -inf
    %298 = vmax.xlane.f32.xlu0 %v297
    %v299 = vpop.xlane.xlu0 %298
    %v300 = vsel %vm296, %v295, -inf
    %301 = vmax.xlane.f32.xlu0 %v300
    %v302 = vpop.xlane.xlu0 %301
    %v303 = vsub.f32 %v294, %v299
    %v304 = vsub.f32 %v295, %v302
    %v305 = vmul.f32 %v303, 1.442695
    %v306 = vpow.pop %v305
    %v307 = vmul.f32 %v304, 1.442695
    %v308 = vpow.pop %v307
    %v309 = vsel %vm296, %v306, 0.0
    %310 = vadd.xlane.f32.xlu0 %v309
    %v311 = vpop.xlane.xlu0 %310
    %v312 = vsel %vm296, %v308, 0.0
    %313 = vadd.xlane.f32.xlu0 %v312
    %v314 = vpop.xlane.xlu0 %313
    %v315 = vrcp.pop %v311
    %v316 = vrcp.pop %v314
    %v317 = vmul.f32 %v306, %v315
    %v318 = vmul.f32 %v308, %v316
    %319 = vst.msk [vmem:[#allocation4] sm:$0xff] %vm296, %v317
    %320 = vst.msk [vmem:[#allocation4 + $0x8] sm:$0xff] %vm296, %v318
    %v321 = vpack.c.bf16 %v318, %v317
    %v322 = vpack.c.bf16 %v242, %v239
    %v324 = vsel %vm296, %v321, 0
    %326 = vmatprep.subr.bf16.mxu0 0
    %327 = vmatpush1.bf16.msra.mxu0 %v322
    %328 = vmatprep.subr.bf16.mxu0 0
    %329 = vmatpush1.bf16.msra.mxu0 0
    %330 = vmatprep.subr.bf16.mxu0 0
    %331 = vmatpush1.bf16.msra.mxu0 0
    %332 = vmatprep.subr.bf16.mxu0 0
    %333 = vmatpush1.bf16.msra.mxu0 0
    %334 = vmatprep.subr.bf16.mxu0 0
    %335 = vmatpush1.bf16.msra.mxu0 0
    %336 = vmatprep.subr.bf16.mxu0 0
    %337 = vmatpush1.bf16.msra.mxu0 0
    %338 = vmatprep.subr.bf16.mxu0 0
    %339 = vmatpush1.bf16.msra.mxu0 0
    %340 = vmatprep.subr.bf16.mxu0 0
    %341 = vmatpush1.bf16.msra.mxu0 0
    %342 = vmatprep.subr.bf16.mxu0 0
    %343 = vmatpush1.bf16.msra.mxu0 0
    %344 = vmatprep.subr.bf16.mxu0 0
    %345 = vmatpush1.bf16.msra.mxu0 0
    %346 = vmatprep.subr.bf16.mxu0 0
    %347 = vmatpush1.bf16.msra.mxu0 0
    %348 = vmatprep.subr.bf16.mxu0 0
    %349 = vmatpush1.bf16.msra.mxu0 0
    %350 = vmatprep.subr.bf16.mxu0 0
    %351 = vmatpush1.bf16.msra.mxu0 0
    %352 = vmatprep.subr.bf16.mxu0 0
    %353 = vmatpush1.bf16.msra.mxu0 0
    %354 = vmatprep.subr.bf16.mxu0 0
    %355 = vmatpush1.bf16.msra.mxu0 0
    %356 = vmatprep.subr.bf16.mxu0 0
    %357 = vmatpush1.bf16.msra.mxu0 0
    %358 = vmatprep.mubr.bf16.mxu0 0
    %359 = vmatmul.mubr.bf16.gmra.mrb[0].mxu0 %v324
    %v360 = vpop.f32.mrb[0].mxu0
    %v361 = vadd.f32 0.0, %v360
    %v362 = vpop.f32.mrb[0].mxu0
    %v363 = vpop.f32.mrb[0].mxu0
    %v364 = vadd.f32 0.0, %v363
    %v365 = vpop.f32.mrb[0].mxu0
    %366 = vdwg.mxu0
    %v367 = vadd.f32 %v55, %v361
    %v368 = vadd.f32 %v56, %v364
    %v369 = vmul.f32 %v367, 0.0625
    %v370 = vmul.f32 %v368, 0.0625
    %v371 = vld [vmem:[%s9] sm:$0x1]
    %v372 = vpack.c.bf16 %v369, %v369
    %v373 = vld [vmem:[%s8] sm:$0xf]
    %v374 = vld [vmem:[%s8 + $0x4] sm:$0xf]
    %v375 = vld [vmem:[%s8 + $0x8] sm:$0xf]
    %v376 = vld [vmem:[%s8 + $0xc] sm:$0xf]
    %v381 = vunpack.c.l.b16 %v373
    %v382 = vunpack.c.l.b16 %v374
    %v383 = vunpack.c.l.b16 %v375
    %v384 = vunpack.c.l.b16 %v376
    %v385 = vpack.c.b16 %v382, %v381
    %v386 = vpack.c.b16 %v384, %v383
    %v390 = vsel %vm79, %v372, 0
    %392 = vmatprep.subr.bf16.mxu0 0
    %393 = vmatpush1.bf16.msra.mxu0 %v385
    %394 = vmatprep.subr.bf16.mxu0 0
    %395 = vmatpush1.bf16.msra.mxu0 %v386
    %396 = vmatprep.subr.bf16.mxu0 0
    %397 = vmatpush1.bf16.msra.mxu0 0
    %398 = vmatprep.subr.bf16.mxu0 0
    %399 = vmatpush1.bf16.msra.mxu0 0
    %400 = vmatprep.subr.bf16.mxu0 0
    %401 = vmatpush1.bf16.msra.mxu0 0
    %402 = vmatprep.subr.bf16.mxu0 0
    %403 = vmatpush1.bf16.msra.mxu0 0
    %404 = vmatprep.subr.bf16.mxu0 0
    %405 = vmatpush1.bf16.msra.mxu0 0
    %406 = vmatprep.subr.bf16.mxu0 0
    %407 = vmatpush1.bf16.msra.mxu0 0
    %408 = vmatprep.subr.bf16.mxu0 0
    %409 = vmatpush1.bf16.msra.mxu0 0
    %410 = vmatprep.subr.bf16.mxu0 0
    %411 = vmatpush1.bf16.msra.mxu0 0
    %412 = vmatprep.subr.bf16.mxu0 0
    %413 = vmatpush1.bf16.msra.mxu0 0
    %414 = vmatprep.subr.bf16.mxu0 0
    %415 = vmatpush1.bf16.msra.mxu0 0
    %416 = vmatprep.subr.bf16.mxu0 0
    %417 = vmatpush1.bf16.msra.mxu0 0
    %418 = vmatprep.subr.bf16.mxu0 0
    %419 = vmatpush1.bf16.msra.mxu0 0
    %420 = vmatprep.subr.bf16.mxu0 0
    %421 = vmatpush1.bf16.msra.mxu0 0
    %422 = vmatprep.subr.bf16.mxu0 0
    %423 = vmatpush1.bf16.msra.mxu0 0
    %424 = vmatprep.mubr.bf16.mxu0 0
    %425 = vmatmul.mubr.bf16.gmra.mrb[0].mxu0 %v390
    %v426 = vpop.f32.mrb[0].mxu0
    %v427 = vadd.f32 0.0, %v426
    %v428 = vpop.f32.mrb[0].mxu0
    %v429 = vpop.f32.mrb[0].mxu0
    %v430 = vpop.f32.mrb[0].mxu0
    %431 = vdwg.mxu0
    %v432 = vadd.f32 %v371, %v427
    %s433 = scalar_lea.vmem %s8, 16
    %v434 = vld [vmem:[%s433] sm:$0xf]
    %v435 = vld [vmem:[%s433 + $0x4] sm:$0xf]
    %v436 = vld [vmem:[%s433 + $0x8] sm:$0xf]
    %v437 = vld [vmem:[%s433 + $0xc] sm:$0xf]
    %v438 = vshrl.u32 %v372, 16
    %v444 = vunpack.c.l.b16 %v434
    %v445 = vunpack.c.l.b16 %v435
    %v446 = vunpack.c.l.b16 %v436
    %v447 = vunpack.c.l.b16 %v437
    %v448 = vpack.c.b16 %v445, %v444
    %v449 = vpack.c.b16 %v447, %v446
    %v453 = vsel %vm79, %v438, 0
    %455 = vmatprep.subr.bf16.mxu0 0
    %456 = vmatpush1.bf16.msra.mxu0 %v448
    %457 = vmatprep.subr.bf16.mxu0 0
    %458 = vmatpush1.bf16.msra.mxu0 %v449
    %459 = vmatprep.subr.bf16.mxu0 0
    %460 = vmatpush1.bf16.msra.mxu0 0
    %461 = vmatprep.subr.bf16.mxu0 0
    %462 = vmatpush1.bf16.msra.mxu0 0
    %463 = vmatprep.subr.bf16.mxu0 0
    %464 = vmatpush1.bf16.msra.mxu0 0
    %465 = vmatprep.subr.bf16.mxu0 0
    %466 = vmatpush1.bf16.msra.mxu0 0
    %467 = vmatprep.subr.bf16.mxu0 0
    %468 = vmatpush1.bf16.msra.mxu0 0
    %469 = vmatprep.subr.bf16.mxu0 0
    %470 = vmatpush1.bf16.msra.mxu0 0
    %471 = vmatprep.subr.bf16.mxu0 0
    %472 = vmatpush1.bf16.msra.mxu0 0
    %473 = vmatprep.subr.bf16.mxu0 0
    %474 = vmatpush1.bf16.msra.mxu0 0
    %475 = vmatprep.subr.bf16.mxu0 0
    %476 = vmatpush1.bf16.msra.mxu0 0
    %477 = vmatprep.subr.bf16.mxu0 0
    %478 = vmatpush1.bf16.msra.mxu0 0
    %479 = vmatprep.subr.bf16.mxu0 0
    %480 = vmatpush1.bf16.msra.mxu0 0
    %481 = vmatprep.subr.bf16.mxu0 0
    %482 = vmatpush1.bf16.msra.mxu0 0
    %483 = vmatprep.subr.bf16.mxu0 0
    %484 = vmatpush1.bf16.msra.mxu0 0
    %485 = vmatprep.subr.bf16.mxu0 0
    %486 = vmatpush1.bf16.msra.mxu0 0
    %487 = vmatprep.mubr.bf16.mxu0 0
    %488 = vmatmul.mubr.bf16.gmra.mrb[0].mxu0 %v453
    %v489 = vpop.f32.mrb[0].mxu0
    %v490 = vadd.f32 0.0, %v489
    %v491 = vpop.f32.mrb[0].mxu0
    %v492 = vpop.f32.mrb[0].mxu0
    %v493 = vpop.f32.mrb[0].mxu0
    %494 = vdwg.mxu0
    %v495 = vadd.f32 %v432, %v490
    %s496 = scalar_lea.vmem %s8, 32
    %v497 = vld [vmem:[%s496] sm:$0xf]
    %v498 = vld [vmem:[%s496 + $0x4] sm:$0xf]
    %v499 = vld [vmem:[%s496 + $0x8] sm:$0xf]
    %v500 = vld [vmem:[%s496 + $0xc] sm:$0xf]
    %v502 = vrot.slane %v372, 1
    %v507 = vunpack.c.l.b16 %v497
    %v508 = vunpack.c.l.b16 %v498
    %v509 = vunpack.c.l.b16 %v499
    %v510 = vunpack.c.l.b16 %v500
    %v511 = vpack.c.b16 %v508, %v507
    %v512 = vpack.c.b16 %v510, %v509
    %v516 = vsel %vm79, %v502, 0
    %518 = vmatprep.subr.bf16.mxu0 0
    %519 = vmatpush1.bf16.msra.mxu0 %v511
    %520 = vmatprep.subr.bf16.mxu0 0
    %521 = vmatpush1.bf16.msra.mxu0 %v512
    %522 = vmatprep.subr.bf16.mxu0 0
    %523 = vmatpush1.bf16.msra.mxu0 0
    %524 = vmatprep.subr.bf16.mxu0 0
    %525 = vmatpush1.bf16.msra.mxu0 0
    %526 = vmatprep.subr.bf16.mxu0 0
    %527 = vmatpush1.bf16.msra.mxu0 0
    %528 = vmatprep.subr.bf16.mxu0 0
    %529 = vmatpush1.bf16.msra.mxu0 0
    %530 = vmatprep.subr.bf16.mxu0 0
    %531 = vmatpush1.bf16.msra.mxu0 0
    %532 = vmatprep.subr.bf16.mxu0 0
    %533 = vmatpush1.bf16.msra.mxu0 0
    %534 = vmatprep.subr.bf16.mxu0 0
    %535 = vmatpush1.bf16.msra.mxu0 0
    %536 = vmatprep.subr.bf16.mxu0 0
    %537 = vmatpush1.bf16.msra.mxu0 0
    %538 = vmatprep.subr.bf16.mxu0 0
    %539 = vmatpush1.bf16.msra.mxu0 0
    %540 = vmatprep.subr.bf16.mxu0 0
    %541 = vmatpush1.bf16.msra.mxu0 0
    %542 = vmatprep.subr.bf16.mxu0 0
    %543 = vmatpush1.bf16.msra.mxu0 0
    %544 = vmatprep.subr.bf16.mxu0 0
    %545 = vmatpush1.bf16.msra.mxu0 0
    %546 = vmatprep.subr.bf16.mxu0 0
    %547 = vmatpush1.bf16.msra.mxu0 0
    %548 = vmatprep.subr.bf16.mxu0 0
    %549 = vmatpush1.bf16.msra.mxu0 0
    %550 = vmatprep.mubr.bf16.mxu0 0
    %551 = vmatmul.mubr.bf16.gmra.mrb[0].mxu0 %v516
    %v552 = vpop.f32.mrb[0].mxu0
    %v553 = vadd.f32 0.0, %v552
    %v554 = vpop.f32.mrb[0].mxu0
    %v555 = vpop.f32.mrb[0].mxu0
    %v556 = vpop.f32.mrb[0].mxu0
    %557 = vdwg.mxu0
    %v558 = vadd.f32 %v495, %v553
    %s559 = scalar_lea.vmem %s8, 48
    %v560 = vld [vmem:[%s559] sm:$0xf]
    %v561 = vld [vmem:[%s559 + $0x4] sm:$0xf]
    %v562 = vld [vmem:[%s559 + $0x8] sm:$0xf]
    %v563 = vld [vmem:[%s559 + $0xc] sm:$0xf]
    %v564 = vrot.slane %v438, 1
    %v569 = vunpack.c.l.b16 %v560
    %v570 = vunpack.c.l.b16 %v561
    %v571 = vunpack.c.l.b16 %v562
    %v572 = vunpack.c.l.b16 %v563
    %v573 = vpack.c.b16 %v570, %v569
    %v574 = vpack.c.b16 %v572, %v571
    %v578 = vsel %vm79, %v564, 0
    %580 = vmatprep.subr.bf16.mxu0 0
    %581 = vmatpush1.bf16.msra.mxu0 %v573
    %582 = vmatprep.subr.bf16.mxu0 0
    %583 = vmatpush1.bf16.msra.mxu0 %v574
    %584 = vmatprep.subr.bf16.mxu0 0
    %585 = vmatpush1.bf16.msra.mxu0 0
    %586 = vmatprep.subr.bf16.mxu0 0
    %587 = vmatpush1.bf16.msra.mxu0 0
    %588 = vmatprep.subr.bf16.mxu0 0
    %589 = vmatpush1.bf16.msra.mxu0 0
    %590 = vmatprep.subr.bf16.mxu0 0
    %591 = vmatpush1.bf16.msra.mxu0 0
    %592 = vmatprep.subr.bf16.mxu0 0
    %593 = vmatpush1.bf16.msra.mxu0 0
    %594 = vmatprep.subr.bf16.mxu0 0
    %595 = vmatpush1.bf16.msra.mxu0 0
    %596 = vmatprep.subr.bf16.mxu0 0
    %597 = vmatpush1.bf16.msra.mxu0 0
    %598 = vmatprep.subr.bf16.mxu0 0
    %599 = vmatpush1.bf16.msra.mxu0 0
    %600 = vmatprep.subr.bf16.mxu0 0
    %601 = vmatpush1.bf16.msra.mxu0 0
    %602 = vmatprep.subr.bf16.mxu0 0
    %603 = vmatpush1.bf16.msra.mxu0 0
    %604 = vmatprep.subr.bf16.mxu0 0
    %605 = vmatpush1.bf16.msra.mxu0 0
    %606 = vmatprep.subr.bf16.mxu0 0
    %607 = vmatpush1.bf16.msra.mxu0 0
    %608 = vmatprep.subr.bf16.mxu0 0
    %609 = vmatpush1.bf16.msra.mxu0 0
    %610 = vmatprep.subr.bf16.mxu0 0
    %611 = vmatpush1.bf16.msra.mxu0 0
    %612 = vmatprep.mubr.bf16.mxu0 0
    %613 = vmatmul.mubr.bf16.gmra.mrb[0].mxu0 %v578
    %v614 = vpop.f32.mrb[0].mxu0
    %v615 = vadd.f32 0.0, %v614
    %v616 = vpop.f32.mrb[0].mxu0
    %v617 = vpop.f32.mrb[0].mxu0
    %v618 = vpop.f32.mrb[0].mxu0
    %619 = vdwg.mxu0
    %v620 = vadd.f32 %v558, %v615
    %s621 = scalar_lea.vmem %s8, 64
    %v622 = vld [vmem:[%s621] sm:$0xf]
    %v623 = vld [vmem:[%s621 + $0x4] sm:$0xf]
    %v624 = vld [vmem:[%s621 + $0x8] sm:$0xf]
    %v625 = vld [vmem:[%s621 + $0xc] sm:$0xf]
    %v626 = vrot.slane %v372, 2
    %v631 = vunpack.c.l.b16 %v622
    %v632 = vunpack.c.l.b16 %v623
    %v633 = vunpack.c.l.b16 %v624
    %v634 = vunpack.c.l.b16 %v625
    %v635 = vpack.c.b16 %v632, %v631
    %v636 = vpack.c.b16 %v634, %v633
    %v640 = vsel %vm79, %v626, 0
    %642 = vmatprep.subr.bf16.mxu0 0
    %643 = vmatpush1.bf16.msra.mxu0 %v635
    %644 = vmatprep.subr.bf16.mxu0 0
    %645 = vmatpush1.bf16.msra.mxu0 %v636
    %646 = vmatprep.subr.bf16.mxu0 0
    %647 = vmatpush1.bf16.msra.mxu0 0
    %648 = vmatprep.subr.bf16.mxu0 0
    %649 = vmatpush1.bf16.msra.mxu0 0
    %650 = vmatprep.subr.bf16.mxu0 0
    %651 = vmatpush1.bf16.msra.mxu0 0
    %652 = vmatprep.subr.bf16.mxu0 0
    %653 = vmatpush1.bf16.msra.mxu0 0
    %654 = vmatprep.subr.bf16.mxu0 0
    %655 = vmatpush1.bf16.msra.mxu0 0
    %656 = vmatprep.subr.bf16.mxu0 0
    %657 = vmatpush1.bf16.msra.mxu0 0
    %658 = vmatprep.subr.bf16.mxu0 0
    %659 = vmatpush1.bf16.msra.mxu0 0
    %660 = vmatprep.subr.bf16.mxu0 0
    %661 = vmatpush1.bf16.msra.mxu0 0
    %662 = vmatprep.subr.bf16.mxu0 0
    %663 = vmatpush1.bf16.msra.mxu0 0
    %664 = vmatprep.subr.bf16.mxu0 0
    %665 = vmatpush1.bf16.msra.mxu0 0
    %666 = vmatprep.subr.bf16.mxu0 0
    %667 = vmatpush1.bf16.msra.mxu0 0
    %668 = vmatprep.subr.bf16.mxu0 0
    %669 = vmatpush1.bf16.msra.mxu0 0
    %670 = vmatprep.subr.bf16.mxu0 0
    %671 = vmatpush1.bf16.msra.mxu0 0
    %672 = vmatprep.subr.bf16.mxu0 0
    %673 = vmatpush1.bf16.msra.mxu0 0
    %674 = vmatprep.mubr.bf16.mxu0 0
    %675 = vmatmul.mubr.bf16.gmra.mrb[0].mxu0 %v640
    %v676 = vpop.f32.mrb[0].mxu0
    %v677 = vadd.f32 0.0, %v676
    %v678 = vpop.f32.mrb[0].mxu0
    %v679 = vpop.f32.mrb[0].mxu0
    %v680 = vpop.f32.mrb[0].mxu0
    %681 = vdwg.mxu0
    %v682 = vadd.f32 %v620, %v677
    %s683 = scalar_lea.vmem %s8, 80
    %v684 = vld [vmem:[%s683] sm:$0xf]
    %v685 = vld [vmem:[%s683 + $0x4] sm:$0xf]
    %v686 = vld [vmem:[%s683 + $0x8] sm:$0xf]
    %v687 = vld [vmem:[%s683 + $0xc] sm:$0xf]
    %v688 = vrot.slane %v438, 2
    %v693 = vunpack.c.l.b16 %v684
    %v694 = vunpack.c.l.b16 %v685
    %v695 = vunpack.c.l.b16 %v686
    %v696 = vunpack.c.l.b16 %v687
    %v697 = vpack.c.b16 %v694, %v693
    %v698 = vpack.c.b16 %v696, %v695
    %v702 = vsel %vm79, %v688, 0
    %704 = vmatprep.subr.bf16.mxu0 0
    %705 = vmatpush1.bf16.msra.mxu0 %v697
    %706 = vmatprep.subr.bf16.mxu0 0
    %707 = vmatpush1.bf16.msra.mxu0 %v698
    %708 = vmatprep.subr.bf16.mxu0 0
    %709 = vmatpush1.bf16.msra.mxu0 0
    %710 = vmatprep.subr.bf16.mxu0 0
    %711 = vmatpush1.bf16.msra.mxu0 0
    %712 = vmatprep.subr.bf16.mxu0 0
    %713 = vmatpush1.bf16.msra.mxu0 0
    %714 = vmatprep.subr.bf16.mxu0 0
    %715 = vmatpush1.bf16.msra.mxu0 0
    %716 = vmatprep.subr.bf16.mxu0 0
    %717 = vmatpush1.bf16.msra.mxu0 0
    %718 = vmatprep.subr.bf16.mxu0 0
    %719 = vmatpush1.bf16.msra.mxu0 0
    %720 = vmatprep.subr.bf16.mxu0 0
    %721 = vmatpush1.bf16.msra.mxu0 0
    %722 = vmatprep.subr.bf16.mxu0 0
    %723 = vmatpush1.bf16.msra.mxu0 0
    %724 = vmatprep.subr.bf16.mxu0 0
    %725 = vmatpush1.bf16.msra.mxu0 0
    %726 = vmatprep.subr.bf16.mxu0 0
    %727 = vmatpush1.bf16.msra.mxu0 0
    %728 = vmatprep.subr.bf16.mxu0 0
    %729 = vmatpush1.bf16.msra.mxu0 0
    %730 = vmatprep.subr.bf16.mxu0 0
    %731 = vmatpush1.bf16.msra.mxu0 0
    %732 = vmatprep.subr.bf16.mxu0 0
    %733 = vmatpush1.bf16.msra.mxu0 0
    %734 = vmatprep.subr.bf16.mxu0 0
    %735 = vmatpush1.bf16.msra.mxu0 0
    %736 = vmatprep.mubr.bf16.mxu0 0
    %737 = vmatmul.mubr.bf16.gmra.mrb[0].mxu0 %v702
    %v738 = vpop.f32.mrb[0].mxu0
    %v739 = vadd.f32 0.0, %v738
    %v740 = vpop.f32.mrb[0].mxu0
    %v741 = vpop.f32.mrb[0].mxu0
    %v742 = vpop.f32.mrb[0].mxu0
    %743 = vdwg.mxu0
    %v744 = vadd.f32 %v682, %v739
    %s745 = scalar_lea.vmem %s8, 96
    %v746 = vld [vmem:[%s745] sm:$0xf]
    %v747 = vld [vmem:[%s745 + $0x4] sm:$0xf]
    %v748 = vld [vmem:[%s745 + $0x8] sm:$0xf]
    %v749 = vld [vmem:[%s745 + $0xc] sm:$0xf]
    %v750 = vrot.slane %v372, 3
    %v755 = vunpack.c.l.b16 %v746
    %v756 = vunpack.c.l.b16 %v747
    %v757 = vunpack.c.l.b16 %v748
    %v758 = vunpack.c.l.b16 %v749
    %v759 = vpack.c.b16 %v756, %v755
    %v760 = vpack.c.b16 %v758, %v757
    %v764 = vsel %vm79, %v750, 0
    %766 = vmatprep.subr.bf16.mxu0 0
    %767 = vmatpush1.bf16.msra.mxu0 %v759
    %768 = vmatprep.subr.bf16.mxu0 0
    %769 = vmatpush1.bf16.msra.mxu0 %v760
    %770 = vmatprep.subr.bf16.mxu0 0
    %771 = vmatpush1.bf16.msra.mxu0 0
    %772 = vmatprep.subr.bf16.mxu0 0
    %773 = vmatpush1.bf16.msra.mxu0 0
    %774 = vmatprep.subr.bf16.mxu0 0
    %775 = vmatpush1.bf16.msra.mxu0 0
    %776 = vmatprep.subr.bf16.mxu0 0
    %777 = vmatpush1.bf16.msra.mxu0 0
    %778 = vmatprep.subr.bf16.mxu0 0
    %779 = vmatpush1.bf16.msra.mxu0 0
    %780 = vmatprep.subr.bf16.mxu0 0
    %781 = vmatpush1.bf16.msra.mxu0 0
    %782 = vmatprep.subr.bf16.mxu0 0
    %783 = vmatpush1.bf16.msra.mxu0 0
    %784 = vmatprep.subr.bf16.mxu0 0
    %785 = vmatpush1.bf16.msra.mxu0 0
    %786 = vmatprep.subr.bf16.mxu0 0
    %787 = vmatpush1.bf16.msra.mxu0 0
    %788 = vmatprep.subr.bf16.mxu0 0
    %789 = vmatpush1.bf16.msra.mxu0 0
    %790 = vmatprep.subr.bf16.mxu0 0
    %791 = vmatpush1.bf16.msra.mxu0 0
    %792 = vmatprep.subr.bf16.mxu0 0
    %793 = vmatpush1.bf16.msra.mxu0 0
    %794 = vmatprep.subr.bf16.mxu0 0
    %795 = vmatpush1.bf16.msra.mxu0 0
    %796 = vmatprep.subr.bf16.mxu0 0
    %797 = vmatpush1.bf16.msra.mxu0 0
    %798 = vmatprep.mubr.bf16.mxu0 0
    %799 = vmatmul.mubr.bf16.gmra.mrb[0].mxu0 %v764
    %v800 = vpop.f32.mrb[0].mxu0
    %v801 = vadd.f32 0.0, %v800
    %v802 = vpop.f32.mrb[0].mxu0
    %v803 = vpop.f32.mrb[0].mxu0
    %v804 = vpop.f32.mrb[0].mxu0
    %805 = vdwg.mxu0
    %v806 = vadd.f32 %v744, %v801
    %s807 = scalar_lea.vmem %s8, 112
    %v808 = vld [vmem:[%s807] sm:$0xf]
    %v809 = vld [vmem:[%s807 + $0x4] sm:$0xf]
    %v810 = vld [vmem:[%s807 + $0x8] sm:$0xf]
    %v811 = vld [vmem:[%s807 + $0xc] sm:$0xf]
    %v812 = vrot.slane %v438, 3
    %v817 = vunpack.c.l.b16 %v808
    %v818 = vunpack.c.l.b16 %v809
    %v819 = vunpack.c.l.b16 %v810
    %v820 = vunpack.c.l.b16 %v811
    %v821 = vpack.c.b16 %v818, %v817
    %v822 = vpack.c.b16 %v820, %v819
    %v826 = vsel %vm79, %v812, 0
    %828 = vmatprep.subr.bf16.mxu0 0
    %829 = vmatpush1.bf16.msra.mxu0 %v821
    %830 = vmatprep.subr.bf16.mxu0 0
    %831 = vmatpush1.bf16.msra.mxu0 %v822
    %832 = vmatprep.subr.bf16.mxu0 0
    %833 = vmatpush1.bf16.msra.mxu0 0
    %834 = vmatprep.subr.bf16.mxu0 0
    %835 = vmatpush1.bf16.msra.mxu0 0
    %836 = vmatprep.subr.bf16.mxu0 0
    %837 = vmatpush1.bf16.msra.mxu0 0
    %838 = vmatprep.subr.bf16.mxu0 0
    %839 = vmatpush1.bf16.msra.mxu0 0
    %840 = vmatprep.subr.bf16.mxu0 0
    %841 = vmatpush1.bf16.msra.mxu0 0
    %842 = vmatprep.subr.bf16.mxu0 0
    %843 = vmatpush1.bf16.msra.mxu0 0
    %844 = vmatprep.subr.bf16.mxu0 0
    %845 = vmatpush1.bf16.msra.mxu0 0
    %846 = vmatprep.subr.bf16.mxu0 0
    %847 = vmatpush1.bf16.msra.mxu0 0
    %848 = vmatprep.subr.bf16.mxu0 0
    %849 = vmatpush1.bf16.msra.mxu0 0
    %850 = vmatprep.subr.bf16.mxu0 0
    %851 = vmatpush1.bf16.msra.mxu0 0
    %852 = vmatprep.subr.bf16.mxu0 0
    %853 = vmatpush1.bf16.msra.mxu0 0
    %854 = vmatprep.subr.bf16.mxu0 0
    %855 = vmatpush1.bf16.msra.mxu0 0
    %856 = vmatprep.subr.bf16.mxu0 0
    %857 = vmatpush1.bf16.msra.mxu0 0
    %858 = vmatprep.subr.bf16.mxu0 0
    %859 = vmatpush1.bf16.msra.mxu0 0
    %860 = vmatprep.mubr.bf16.mxu0 0
    %861 = vmatmul.mubr.bf16.gmra.mrb[0].mxu0 %v826
    %v862 = vpop.f32.mrb[0].mxu0
    %v863 = vadd.f32 0.0, %v862
    %v864 = vpop.f32.mrb[0].mxu0
    %v865 = vpop.f32.mrb[0].mxu0
    %v866 = vpop.f32.mrb[0].mxu0
    %867 = vdwg.mxu0
    %v868 = vadd.f32 %v806, %v863
    %v869 = vpack.c.bf16 %v370, %v370
    %s870 = scalar_lea.vmem %s8, 128
    %v871 = vld [vmem:[%s870] sm:$0xf]
    %v872 = vld [vmem:[%s870 + $0x4] sm:$0xf]
    %v873 = vld [vmem:[%s870 + $0x8] sm:$0xf]
    %v874 = vld [vmem:[%s870 + $0xc] sm:$0xf]
    %v879 = vunpack.c.l.b16 %v871
    %v880 = vunpack.c.l.b16 %v872
    %v881 = vunpack.c.l.b16 %v873
    %v882 = vunpack.c.l.b16 %v874
    %v883 = vpack.c.b16 %v880, %v879
    %v884 = vpack.c.b16 %v882, %v881
    %v888 = vsel %vm79, %v869, 0
    %890 = vmatprep.subr.bf16.mxu0 0
    %891 = vmatpush1.bf16.msra.mxu0 %v883
    %892 = vmatprep.subr.bf16.mxu0 0
    %893 = vmatpush1.bf16.msra.mxu0 %v884
    %894 = vmatprep.subr.bf16.mxu0 0
    %895 = vmatpush1.bf16.msra.mxu0 0
    %896 = vmatprep.subr.bf16.mxu0 0
    %897 = vmatpush1.bf16.msra.mxu0 0
    %898 = vmatprep.subr.bf16.mxu0 0
    %899 = vmatpush1.bf16.msra.mxu0 0
    %900 = vmatprep.subr.bf16.mxu0 0
    %901 = vmatpush1.bf16.msra.mxu0 0
    %902 = vmatprep.subr.bf16.mxu0 0
    %903 = vmatpush1.bf16.msra.mxu0 0
    %904 = vmatprep.subr.bf16.mxu0 0
    %905 = vmatpush1.bf16.msra.mxu0 0
    %906 = vmatprep.subr.bf16.mxu0 0
    %907 = vmatpush1.bf16.msra.mxu0 0
    %908 = vmatprep.subr.bf16.mxu0 0
    %909 = vmatpush1.bf16.msra.mxu0 0
    %910 = vmatprep.subr.bf16.mxu0 0
    %911 = vmatpush1.bf16.msra.mxu0 0
    %912 = vmatprep.subr.bf16.mxu0 0
    %913 = vmatpush1.bf16.msra.mxu0 0
    %914 = vmatprep.subr.bf16.mxu0 0
    %915 = vmatpush1.bf16.msra.mxu0 0
    %916 = vmatprep.subr.bf16.mxu0 0
    %917 = vmatpush1.bf16.msra.mxu0 0
    %918 = vmatprep.subr.bf16.mxu0 0
    %919 = vmatpush1.bf16.msra.mxu0 0
    %920 = vmatprep.subr.bf16.mxu0 0
    %921 = vmatpush1.bf16.msra.mxu0 0
    %922 = vmatprep.mubr.bf16.mxu0 0
    %923 = vmatmul.mubr.bf16.gmra.mrb[0].mxu0 %v888
    %v924 = vpop.f32.mrb[0].mxu0
    %v925 = vadd.f32 0.0, %v924
    %v926 = vpop.f32.mrb[0].mxu0
    %v927 = vpop.f32.mrb[0].mxu0
    %v928 = vpop.f32.mrb[0].mxu0
    %929 = vdwg.mxu0
    %v930 = vadd.f32 %v868, %v925
    %s931 = scalar_lea.vmem %s8, 144
    %v932 = vld [vmem:[%s931] sm:$0xf]
    %v933 = vld [vmem:[%s931 + $0x4] sm:$0xf]
    %v934 = vld [vmem:[%s931 + $0x8] sm:$0xf]
    %v935 = vld [vmem:[%s931 + $0xc] sm:$0xf]
    %v936 = vshrl.u32 %v869, 16
    %v942 = vunpack.c.l.b16 %v932
    %v943 = vunpack.c.l.b16 %v933
    %v944 = vunpack.c.l.b16 %v934
    %v945 = vunpack.c.l.b16 %v935
    %v946 = vpack.c.b16 %v943, %v942
    %v947 = vpack.c.b16 %v945, %v944
    %v951 = vsel %vm79, %v936, 0
    %953 = vmatprep.subr.bf16.mxu0 0
    %954 = vmatpush1.bf16.msra.mxu0 %v946
    %955 = vmatprep.subr.bf16.mxu0 0
    %956 = vmatpush1.bf16.msra.mxu0 %v947
    %957 = vmatprep.subr.bf16.mxu0 0
    %958 = vmatpush1.bf16.msra.mxu0 0
    %959 = vmatprep.subr.bf16.mxu0 0
    %960 = vmatpush1.bf16.msra.mxu0 0
    %961 = vmatprep.subr.bf16.mxu0 0
    %962 = vmatpush1.bf16.msra.mxu0 0
    %963 = vmatprep.subr.bf16.mxu0 0
    %964 = vmatpush1.bf16.msra.mxu0 0
    %965 = vmatprep.subr.bf16.mxu0 0
    %966 = vmatpush1.bf16.msra.mxu0 0
    %967 = vmatprep.subr.bf16.mxu0 0
    %968 = vmatpush1.bf16.msra.mxu0 0
    %969 = vmatprep.subr.bf16.mxu0 0
    %970 = vmatpush1.bf16.msra.mxu0 0
    %971 = vmatprep.subr.bf16.mxu0 0
    %972 = vmatpush1.bf16.msra.mxu0 0
    %973 = vmatprep.subr.bf16.mxu0 0
    %974 = vmatpush1.bf16.msra.mxu0 0
    %975 = vmatprep.subr.bf16.mxu0 0
    %976 = vmatpush1.bf16.msra.mxu0 0
    %977 = vmatprep.subr.bf16.mxu0 0
    %978 = vmatpush1.bf16.msra.mxu0 0
    %979 = vmatprep.subr.bf16.mxu0 0
    %980 = vmatpush1.bf16.msra.mxu0 0
    %981 = vmatprep.subr.bf16.mxu0 0
    %982 = vmatpush1.bf16.msra.mxu0 0
    %983 = vmatprep.subr.bf16.mxu0 0
    %984 = vmatpush1.bf16.msra.mxu0 0
    %985 = vmatprep.mubr.bf16.mxu0 0
    %986 = vmatmul.mubr.bf16.gmra.mrb[0].mxu0 %v951
    %v987 = vpop.f32.mrb[0].mxu0
    %v988 = vadd.f32 0.0, %v987
    %v989 = vpop.f32.mrb[0].mxu0
    %v990 = vpop.f32.mrb[0].mxu0
    %v991 = vpop.f32.mrb[0].mxu0
    %992 = vdwg.mxu0
    %v993 = vadd.f32 %v930, %v988
    %s994 = scalar_lea.vmem %s8, 160
    %v995 = vld [vmem:[%s994] sm:$0xf]
    %v996 = vld [vmem:[%s994 + $0x4] sm:$0xf]
    %v997 = vld [vmem:[%s994 + $0x8] sm:$0xf]
    %v998 = vld [vmem:[%s994 + $0xc] sm:$0xf]
    %v1000 = vrot.slane %v869, 1
    %v1005 = vunpack.c.l.b16 %v995
    %v1006 = vunpack.c.l.b16 %v996
    %v1007 = vunpack.c.l.b16 %v997
    %v1008 = vunpack.c.l.b16 %v998
    %v1009 = vpack.c.b16 %v1006, %v1005
    %v1010 = vpack.c.b16 %v1008, %v1007
    %v1014 = vsel %vm79, %v1000, 0
    %1016 = vmatprep.subr.bf16.mxu0 0
    %1017 = vmatpush1.bf16.msra.mxu0 %v1009
    %1018 = vmatprep.subr.bf16.mxu0 0
    %1019 = vmatpush1.bf16.msra.mxu0 %v1010
    %1020 = vmatprep.subr.bf16.mxu0 0
    %1021 = vmatpush1.bf16.msra.mxu0 0
    %1022 = vmatprep.subr.bf16.mxu0 0
    %1023 = vmatpush1.bf16.msra.mxu0 0
    %1024 = vmatprep.subr.bf16.mxu0 0
    %1025 = vmatpush1.bf16.msra.mxu0 0
    %1026 = vmatprep.subr.bf16.mxu0 0
    %1027 = vmatpush1.bf16.msra.mxu0 0
    %1028 = vmatprep.subr.bf16.mxu0 0
    %1029 = vmatpush1.bf16.msra.mxu0 0
    %1030 = vmatprep.subr.bf16.mxu0 0
    %1031 = vmatpush1.bf16.msra.mxu0 0
    %1032 = vmatprep.subr.bf16.mxu0 0
    %1033 = vmatpush1.bf16.msra.mxu0 0
    %1034 = vmatprep.subr.bf16.mxu0 0
    %1035 = vmatpush1.bf16.msra.mxu0 0
    %1036 = vmatprep.subr.bf16.mxu0 0
    %1037 = vmatpush1.bf16.msra.mxu0 0
    %1038 = vmatprep.subr.bf16.mxu0 0
    %1039 = vmatpush1.bf16.msra.mxu0 0
    %1040 = vmatprep.subr.bf16.mxu0 0
    %1041 = vmatpush1.bf16.msra.mxu0 0
    %1042 = vmatprep.subr.bf16.mxu0 0
    %1043 = vmatpush1.bf16.msra.mxu0 0
    %1044 = vmatprep.subr.bf16.mxu0 0
    %1045 = vmatpush1.bf16.msra.mxu0 0
    %1046 = vmatprep.subr.bf16.mxu0 0
    %1047 = vmatpush1.bf16.msra.mxu0 0
    %1048 = vmatprep.mubr.bf16.mxu0 0
    %1049 = vmatmul.mubr.bf16.gmra.mrb[0].mxu0 %v1014
    %v1050 = vpop.f32.mrb[0].mxu0
    %v1051 = vadd.f32 0.0, %v1050
    %v1052 = vpop.f32.mrb[0].mxu0
    %v1053 = vpop.f32.mrb[0].mxu0
    %v1054 = vpop.f32.mrb[0].mxu0
    %1055 = vdwg.mxu0
    %v1056 = vadd.f32 %v993, %v1051
    %s1057 = scalar_lea.vmem %s8, 176
    %v1058 = vld [vmem:[%s1057] sm:$0xf]
    %v1059 = vld [vmem:[%s1057 + $0x4] sm:$0xf]
    %v1060 = vld [vmem:[%s1057 + $0x8] sm:$0xf]
    %v1061 = vld [vmem:[%s1057 + $0xc] sm:$0xf]
    %v1062 = vrot.slane %v936, 1
    %v1067 = vunpack.c.l.b16 %v1058
    %v1068 = vunpack.c.l.b16 %v1059
    %v1069 = vunpack.c.l.b16 %v1060
    %v1070 = vunpack.c.l.b16 %v1061
    %v1071 = vpack.c.b16 %v1068, %v1067
    %v1072 = vpack.c.b16 %v1070, %v1069
    %v1076 = vsel %vm79, %v1062, 0
    %1078 = vmatprep.subr.bf16.mxu0 0
    %1079 = vmatpush1.bf16.msra.mxu0 %v1071
    %1080 = vmatprep.subr.bf16.mxu0 0
    %1081 = vmatpush1.bf16.msra.mxu0 %v1072
    %1082 = vmatprep.subr.bf16.mxu0 0
    %1083 = vmatpush1.bf16.msra.mxu0 0
    %1084 = vmatprep.subr.bf16.mxu0 0
    %1085 = vmatpush1.bf16.msra.mxu0 0
    %1086 = vmatprep.subr.bf16.mxu0 0
    %1087 = vmatpush1.bf16.msra.mxu0 0
    %1088 = vmatprep.subr.bf16.mxu0 0
    %1089 = vmatpush1.bf16.msra.mxu0 0
    %1090 = vmatprep.subr.bf16.mxu0 0
    %1091 = vmatpush1.bf16.msra.mxu0 0
    %1092 = vmatprep.subr.bf16.mxu0 0
    %1093 = vmatpush1.bf16.msra.mxu0 0
    %1094 = vmatprep.subr.bf16.mxu0 0
    %1095 = vmatpush1.bf16.msra.mxu0 0
    %1096 = vmatprep.subr.bf16.mxu0 0
    %1097 = vmatpush1.bf16.msra.mxu0 0
    %1098 = vmatprep.subr.bf16.mxu0 0
    %1099 = vmatpush1.bf16.msra.mxu0 0
    %1100 = vmatprep.subr.bf16.mxu0 0
    %1101 = vmatpush1.bf16.msra.mxu0 0
    %1102 = vmatprep.subr.bf16.mxu0 0
    %1103 = vmatpush1.bf16.msra.mxu0 0
    %1104 = vmatprep.subr.bf16.mxu0 0
    %1105 = vmatpush1.bf16.msra.mxu0 0
    %1106 = vmatprep.subr.bf16.mxu0 0
    %1107 = vmatpush1.bf16.msra.mxu0 0
    %1108 = vmatprep.subr.bf16.mxu0 0
    %1109 = vmatpush1.bf16.msra.mxu0 0
    %1110 = vmatprep.mubr.bf16.mxu0 0
    %1111 = vmatmul.mubr.bf16.gmra.mrb[0].mxu0 %v1076
    %v1112 = vpop.f32.mrb[0].mxu0
    %v1113 = vadd.f32 0.0, %v1112
    %v1114 = vpop.f32.mrb[0].mxu0
    %v1115 = vpop.f32.mrb[0].mxu0
    %v1116 = vpop.f32.mrb[0].mxu0
    %1117 = vdwg.mxu0
    %v1118 = vadd.f32 %v1056, %v1113
    %s1119 = scalar_lea.vmem %s8, 192
    %v1120 = vld [vmem:[%s1119] sm:$0xf]
    %v1121 = vld [vmem:[%s1119 + $0x4] sm:$0xf]
    %v1122 = vld [vmem:[%s1119 + $0x8] sm:$0xf]
    %v1123 = vld [vmem:[%s1119 + $0xc] sm:$0xf]
    %v1124 = vrot.slane %v869, 2
    %v1129 = vunpack.c.l.b16 %v1120
    %v1130 = vunpack.c.l.b16 %v1121
    %v1131 = vunpack.c.l.b16 %v1122
    %v1132 = vunpack.c.l.b16 %v1123
    %v1133 = vpack.c.b16 %v1130, %v1129
    %v1134 = vpack.c.b16 %v1132, %v1131
    %v1138 = vsel %vm79, %v1124, 0
    %1140 = vmatprep.subr.bf16.mxu0 0
    %1141 = vmatpush1.bf16.msra.mxu0 %v1133
    %1142 = vmatprep.subr.bf16.mxu0 0
    %1143 = vmatpush1.bf16.msra.mxu0 %v1134
    %1144 = vmatprep.subr.bf16.mxu0 0
    %1145 = vmatpush1.bf16.msra.mxu0 0
    %1146 = vmatprep.subr.bf16.mxu0 0
    %1147 = vmatpush1.bf16.msra.mxu0 0
    %1148 = vmatprep.subr.bf16.mxu0 0
    %1149 = vmatpush1.bf16.msra.mxu0 0
    %1150 = vmatprep.subr.bf16.mxu0 0
    %1151 = vmatpush1.bf16.msra.mxu0 0
    %1152 = vmatprep.subr.bf16.mxu0 0
    %1153 = vmatpush1.bf16.msra.mxu0 0
    %1154 = vmatprep.subr.bf16.mxu0 0
    %1155 = vmatpush1.bf16.msra.mxu0 0
    %1156 = vmatprep.subr.bf16.mxu0 0
    %1157 = vmatpush1.bf16.msra.mxu0 0
    %1158 = vmatprep.subr.bf16.mxu0 0
    %1159 = vmatpush1.bf16.msra.mxu0 0
    %1160 = vmatprep.subr.bf16.mxu0 0
    %1161 = vmatpush1.bf16.msra.mxu0 0
    %1162 = vmatprep.subr.bf16.mxu0 0
    %1163 = vmatpush1.bf16.msra.mxu0 0
    %1164 = vmatprep.subr.bf16.mxu0 0
    %1165 = vmatpush1.bf16.msra.mxu0 0
    %1166 = vmatprep.subr.bf16.mxu0 0
    %1167 = vmatpush1.bf16.msra.mxu0 0
    %1168 = vmatprep.subr.bf16.mxu0 0
    %1169 = vmatpush1.bf16.msra.mxu0 0
    %1170 = vmatprep.subr.bf16.mxu0 0
    %1171 = vmatpush1.bf16.msra.mxu0 0
    %1172 = vmatprep.mubr.bf16.mxu0 0
    %1173 = vmatmul.mubr.bf16.gmra.mrb[0].mxu0 %v1138
    %v1174 = vpop.f32.mrb[0].mxu0
    %v1175 = vadd.f32 0.0, %v1174
    %v1176 = vpop.f32.mrb[0].mxu0
    %v1177 = vpop.f32.mrb[0].mxu0
    %v1178 = vpop.f32.mrb[0].mxu0
    %1179 = vdwg.mxu0
    %v1180 = vadd.f32 %v1118, %v1175
    %s1181 = scalar_lea.vmem %s8, 208
    %v1182 = vld [vmem:[%s1181] sm:$0xf]
    %v1183 = vld [vmem:[%s1181 + $0x4] sm:$0xf]
    %v1184 = vld [vmem:[%s1181 + $0x8] sm:$0xf]
    %v1185 = vld [vmem:[%s1181 + $0xc] sm:$0xf]
    %v1186 = vrot.slane %v936, 2
    %v1191 = vunpack.c.l.b16 %v1182
    %v1192 = vunpack.c.l.b16 %v1183
    %v1193 = vunpack.c.l.b16 %v1184
    %v1194 = vunpack.c.l.b16 %v1185
    %v1195 = vpack.c.b16 %v1192, %v1191
    %v1196 = vpack.c.b16 %v1194, %v1193
    %v1200 = vsel %vm79, %v1186, 0
    %1202 = vmatprep.subr.bf16.mxu0 0
    %1203 = vmatpush1.bf16.msra.mxu0 %v1195
    %1204 = vmatprep.subr.bf16.mxu0 0
    %1205 = vmatpush1.bf16.msra.mxu0 %v1196
    %1206 = vmatprep.subr.bf16.mxu0 0
    %1207 = vmatpush1.bf16.msra.mxu0 0
    %1208 = vmatprep.subr.bf16.mxu0 0
    %1209 = vmatpush1.bf16.msra.mxu0 0
    %1210 = vmatprep.subr.bf16.mxu0 0
    %1211 = vmatpush1.bf16.msra.mxu0 0
    %1212 = vmatprep.subr.bf16.mxu0 0
    %1213 = vmatpush1.bf16.msra.mxu0 0
    %1214 = vmatprep.subr.bf16.mxu0 0
    %1215 = vmatpush1.bf16.msra.mxu0 0
    %1216 = vmatprep.subr.bf16.mxu0 0
    %1217 = vmatpush1.bf16.msra.mxu0 0
    %1218 = vmatprep.subr.bf16.mxu0 0
    %1219 = vmatpush1.bf16.msra.mxu0 0
    %1220 = vmatprep.subr.bf16.mxu0 0
    %1221 = vmatpush1.bf16.msra.mxu0 0
    %1222 = vmatprep.subr.bf16.mxu0 0
    %1223 = vmatpush1.bf16.msra.mxu0 0
    %1224 = vmatprep.subr.bf16.mxu0 0
    %1225 = vmatpush1.bf16.msra.mxu0 0
    %1226 = vmatprep.subr.bf16.mxu0 0
    %1227 = vmatpush1.bf16.msra.mxu0 0
    %1228 = vmatprep.subr.bf16.mxu0 0
    %1229 = vmatpush1.bf16.msra.mxu0 0
    %1230 = vmatprep.subr.bf16.mxu0 0
    %1231 = vmatpush1.bf16.msra.mxu0 0
    %1232 = vmatprep.subr.bf16.mxu0 0
    %1233 = vmatpush1.bf16.msra.mxu0 0
    %1234 = vmatprep.mubr.bf16.mxu0 0
    %1235 = vmatmul.mubr.bf16.gmra.mrb[0].mxu0 %v1200
    %v1236 = vpop.f32.mrb[0].mxu0
    %v1237 = vadd.f32 0.0, %v1236
    %v1238 = vpop.f32.mrb[0].mxu0
    %v1239 = vpop.f32.mrb[0].mxu0
    %v1240 = vpop.f32.mrb[0].mxu0
    %1241 = vdwg.mxu0
    %v1242 = vadd.f32 %v1180, %v1237
    %s1243 = scalar_lea.vmem %s8, 224
    %v1244 = vld [vmem:[%s1243] sm:$0xf]
    %v1245 = vld [vmem:[%s1243 + $0x4] sm:$0xf]
    %v1246 = vld [vmem:[%s1243 + $0x8] sm:$0xf]
    %v1247 = vld [vmem:[%s1243 + $0xc] sm:$0xf]
    %v1248 = vrot.slane %v869, 3
    %v1253 = vunpack.c.l.b16 %v1244
    %v1254 = vunpack.c.l.b16 %v1245
    %v1255 = vunpack.c.l.b16 %v1246
    %v1256 = vunpack.c.l.b16 %v1247
    %v1257 = vpack.c.b16 %v1254, %v1253
    %v1258 = vpack.c.b16 %v1256, %v1255
    %v1262 = vsel %vm79, %v1248, 0
    %1264 = vmatprep.subr.bf16.mxu0 0
    %1265 = vmatpush1.bf16.msra.mxu0 %v1257
    %1266 = vmatprep.subr.bf16.mxu0 0
    %1267 = vmatpush1.bf16.msra.mxu0 %v1258
    %1268 = vmatprep.subr.bf16.mxu0 0
    %1269 = vmatpush1.bf16.msra.mxu0 0
    %1270 = vmatprep.subr.bf16.mxu0 0
    %1271 = vmatpush1.bf16.msra.mxu0 0
    %1272 = vmatprep.subr.bf16.mxu0 0
    %1273 = vmatpush1.bf16.msra.mxu0 0
    %1274 = vmatprep.subr.bf16.mxu0 0
    %1275 = vmatpush1.bf16.msra.mxu0 0
    %1276 = vmatprep.subr.bf16.mxu0 0
    %1277 = vmatpush1.bf16.msra.mxu0 0
    %1278 = vmatprep.subr.bf16.mxu0 0
    %1279 = vmatpush1.bf16.msra.mxu0 0
    %1280 = vmatprep.subr.bf16.mxu0 0
    %1281 = vmatpush1.bf16.msra.mxu0 0
    %1282 = vmatprep.subr.bf16.mxu0 0
    %1283 = vmatpush1.bf16.msra.mxu0 0
    %1284 = vmatprep.subr.bf16.mxu0 0
    %1285 = vmatpush1.bf16.msra.mxu0 0
    %1286 = vmatprep.subr.bf16.mxu0 0
    %1287 = vmatpush1.bf16.msra.mxu0 0
    %1288 = vmatprep.subr.bf16.mxu0 0
    %1289 = vmatpush1.bf16.msra.mxu0 0
    %1290 = vmatprep.subr.bf16.mxu0 0
    %1291 = vmatpush1.bf16.msra.mxu0 0
    %1292 = vmatprep.subr.bf16.mxu0 0
    %1293 = vmatpush1.bf16.msra.mxu0 0
    %1294 = vmatprep.subr.bf16.mxu0 0
    %1295 = vmatpush1.bf16.msra.mxu0 0
    %1296 = vmatprep.mubr.bf16.mxu0 0
    %1297 = vmatmul.mubr.bf16.gmra.mrb[0].mxu0 %v1262
    %v1298 = vpop.f32.mrb[0].mxu0
    %v1299 = vadd.f32 0.0, %v1298
    %v1300 = vpop.f32.mrb[0].mxu0
    %v1301 = vpop.f32.mrb[0].mxu0
    %v1302 = vpop.f32.mrb[0].mxu0
    %1303 = vdwg.mxu0
    %v1304 = vadd.f32 %v1242, %v1299
    %s1305 = scalar_lea.vmem %s8, 240
    %v1306 = vld [vmem:[%s1305] sm:$0xf]
    %v1307 = vld [vmem:[%s1305 + $0x4] sm:$0xf]
    %v1308 = vld [vmem:[%s1305 + $0x8] sm:$0xf]
    %v1309 = vld [vmem:[%s1305 + $0xc] sm:$0xf]
    %v1310 = vrot.slane %v936, 3
    %v1315 = vunpack.c.l.b16 %v1306
    %v1316 = vunpack.c.l.b16 %v1307
    %v1317 = vunpack.c.l.b16 %v1308
    %v1318 = vunpack.c.l.b16 %v1309
    %v1319 = vpack.c.b16 %v1316, %v1315
    %v1320 = vpack.c.b16 %v1318, %v1317
    %v1324 = vsel %vm79, %v1310, 0
    %1326 = vmatprep.subr.bf16.mxu0 0
    %1327 = vmatpush1.bf16.msra.mxu0 %v1319
    %1328 = vmatprep.subr.bf16.mxu0 0
    %1329 = vmatpush1.bf16.msra.mxu0 %v1320
    %1330 = vmatprep.subr.bf16.mxu0 0
    %1331 = vmatpush1.bf16.msra.mxu0 0
    %1332 = vmatprep.subr.bf16.mxu0 0
    %1333 = vmatpush1.bf16.msra.mxu0 0
    %1334 = vmatprep.subr.bf16.mxu0 0
    %1335 = vmatpush1.bf16.msra.mxu0 0
    %1336 = vmatprep.subr.bf16.mxu0 0
    %1337 = vmatpush1.bf16.msra.mxu0 0
    %1338 = vmatprep.subr.bf16.mxu0 0
    %1339 = vmatpush1.bf16.msra.mxu0 0
    %1340 = vmatprep.subr.bf16.mxu0 0
    %1341 = vmatpush1.bf16.msra.mxu0 0
    %1342 = vmatprep.subr.bf16.mxu0 0
    %1343 = vmatpush1.bf16.msra.mxu0 0
    %1344 = vmatprep.subr.bf16.mxu0 0
    %1345 = vmatpush1.bf16.msra.mxu0 0
    %1346 = vmatprep.subr.bf16.mxu0 0
    %1347 = vmatpush1.bf16.msra.mxu0 0
    %1348 = vmatprep.subr.bf16.mxu0 0
    %1349 = vmatpush1.bf16.msra.mxu0 0
    %1350 = vmatprep.subr.bf16.mxu0 0
    %1351 = vmatpush1.bf16.msra.mxu0 0
    %1352 = vmatprep.subr.bf16.mxu0 0
    %1353 = vmatpush1.bf16.msra.mxu0 0
    %1354 = vmatprep.subr.bf16.mxu0 0
    %1355 = vmatpush1.bf16.msra.mxu0 0
    %1356 = vmatprep.subr.bf16.mxu0 0
    %1357 = vmatpush1.bf16.msra.mxu0 0
    %1358 = vmatprep.mubr.bf16.mxu0 0
    %1359 = vmatmul.mubr.bf16.gmra.mrb[0].mxu0 %v1324
    %v1360 = vpop.f32.mrb[0].mxu0
    %v1361 = vadd.f32 0.0, %v1360
    %v1362 = vpop.f32.mrb[0].mxu0
    %v1363 = vpop.f32.mrb[0].mxu0
    %v1364 = vpop.f32.mrb[0].mxu0
    %1365 = vdwg.mxu0
    %v1366 = vadd.f32 %v1304, %v1361
    %1367 = vst [vmem:[#allocation2] sm:$0x1] %v1366
    %s1368 = scalar_lea.vmem %s0, 16
    %v1369 = vld [vmem:[%s1368] sm:$0xff]
    %v1370 = vld [vmem:[%s1368 + $0x8] sm:$0xff]
    %v1371 = vpack.c.bf16 %v1370, %v1369
    %s1372 = scalar_lea.vmem %s1, 16
    %v1373 = vld [vmem:[%s1372] sm:$0xff]
    %v1374 = vld [vmem:[%s1372 + $0x8] sm:$0xff]
    %v1375 = vpack.c.bf16 %v1374, %v1373
    %v1377 = vsel %vm79, %v1371, 0
    %1379 = vmatprep.subr.bf16.mxu0 0
    %1380 = vmatpush1.bf16.msra.mxu0 %v75
    %1381 = vmatprep.subr.bf16.mxu0 0
    %1382 = vmatpush1.bf16.msra.mxu0 %v76
    %1383 = vmatprep.subr.bf16.mxu0 0
    %1384 = vmatpush1.bf16.msra.mxu0 0
    %1385 = vmatprep.subr.bf16.mxu0 0
    %1386 = vmatpush1.bf16.msra.mxu0 0
    %1387 = vmatprep.subr.bf16.mxu0 0
    %1388 = vmatpush1.bf16.msra.mxu0 0
    %1389 = vmatprep.subr.bf16.mxu0 0
    %1390 = vmatpush1.bf16.msra.mxu0 0
    %1391 = vmatprep.subr.bf16.mxu0 0
    %1392 = vmatpush1.bf16.msra.mxu0 0
    %1393 = vmatprep.subr.bf16.mxu0 0
    %1394 = vmatpush1.bf16.msra.mxu0 0
    %1395 = vmatprep.subr.bf16.mxu0 0
    %1396 = vmatpush1.bf16.msra.mxu0 0
    %1397 = vmatprep.subr.bf16.mxu0 0
    %1398 = vmatpush1.bf16.msra.mxu0 0
    %1399 = vmatprep.subr.bf16.mxu0 0
    %1400 = vmatpush1.bf16.msra.mxu0 0
    %1401 = vmatprep.subr.bf16.mxu0 0
    %1402 = vmatpush1.bf16.msra.mxu0 0
    %1403 = vmatprep.subr.bf16.mxu0 0
    %1404 = vmatpush1.bf16.msra.mxu0 0
    %1405 = vmatprep.subr.bf16.mxu0 0
    %1406 = vmatpush1.bf16.msra.mxu0 0
    %1407 = vmatprep.subr.bf16.mxu0 0
    %1408 = vmatpush1.bf16.msra.mxu0 0
    %1409 = vmatprep.subr.bf16.mxu0 0
    %1410 = vmatpush1.bf16.msra.mxu0 0
    %1411 = vmatprep.mubr.bf16.mxu0 0
    %1412 = vmatmul.mubr.bf16.gmra.mrb[0].mxu0 %v1377
    %v1413 = vpop.f32.mrb[0].mxu0
    %v1414 = vadd.f32 %v65, %v1413
    %v1415 = vpop.f32.mrb[0].mxu0
    %v1416 = vpop.f32.mrb[0].mxu0
    %v1417 = vadd.f32 %v65, %v1416
    %v1418 = vpop.f32.mrb[0].mxu0
    %1419 = vdwg.mxu0
    %1420 = vmatprep.subr.bf16.mxu0 0
    %1421 = vmatpush1.bf16.msra.mxu0 %v138
    %1422 = vmatprep.subr.bf16.mxu0 0
    %1423 = vmatpush1.bf16.msra.mxu0 %v139
    %1424 = vmatprep.subr.bf16.mxu0 0
    %1425 = vmatpush1.bf16.msra.mxu0 0
    %1426 = vmatprep.subr.bf16.mxu0 0
    %1427 = vmatpush1.bf16.msra.mxu0 0
    %1428 = vmatprep.subr.bf16.mxu0 0
    %1429 = vmatpush1.bf16.msra.mxu0 0
    %1430 = vmatprep.subr.bf16.mxu0 0
    %1431 = vmatpush1.bf16.msra.mxu0 0
    %1432 = vmatprep.subr.bf16.mxu0 0
    %1433 = vmatpush1.bf16.msra.mxu0 0
    %1434 = vmatprep.subr.bf16.mxu0 0
    %1435 = vmatpush1.bf16.msra.mxu0 0
    %1436 = vmatprep.subr.bf16.mxu0 0
    %1437 = vmatpush1.bf16.msra.mxu0 0
    %1438 = vmatprep.subr.bf16.mxu0 0
    %1439 = vmatpush1.bf16.msra.mxu0 0
    %1440 = vmatprep.subr.bf16.mxu0 0
    %1441 = vmatpush1.bf16.msra.mxu0 0
    %1442 = vmatprep.subr.bf16.mxu0 0
    %1443 = vmatpush1.bf16.msra.mxu0 0
    %1444 = vmatprep.subr.bf16.mxu0 0
    %1445 = vmatpush1.bf16.msra.mxu0 0
    %1446 = vmatprep.subr.bf16.mxu0 0
    %1447 = vmatpush1.bf16.msra.mxu0 0
    %1448 = vmatprep.subr.bf16.mxu0 0
    %1449 = vmatpush1.bf16.msra.mxu0 0
    %1450 = vmatprep.subr.bf16.mxu0 0
    %1451 = vmatpush1.bf16.msra.mxu0 0
    %1452 = vmatprep.mubr.bf16.mxu0 0
    %1453 = vmatmul.mubr.bf16.gmra.mrb[0].mxu0 %v1377
    %v1454 = vpop.f32.mrb[0].mxu0
    %v1455 = vadd.f32 %v128, %v1454
    %v1456 = vpop.f32.mrb[0].mxu0
    %v1457 = vpop.f32.mrb[0].mxu0
    %v1458 = vadd.f32 %v128, %v1457
    %v1459 = vpop.f32.mrb[0].mxu0
    %1460 = vdwg.mxu0
    %v1462 = vsel %vm79, %v1375, 0
    %1464 = vmatprep.subr.bf16.mxu0 0
    %1465 = vmatpush1.bf16.msra.mxu0 %v197
    %1466 = vmatprep.subr.bf16.mxu0 0
    %1467 = vmatpush1.bf16.msra.mxu0 %v198
    %1468 = vmatprep.subr.bf16.mxu0 0
    %1469 = vmatpush1.bf16.msra.mxu0 0
    %1470 = vmatprep.subr.bf16.mxu0 0
    %1471 = vmatpush1.bf16.msra.mxu0 0
    %1472 = vmatprep.subr.bf16.mxu0 0
    %1473 = vmatpush1.bf16.msra.mxu0 0
    %1474 = vmatprep.subr.bf16.mxu0 0
    %1475 = vmatpush1.bf16.msra.mxu0 0
    %1476 = vmatprep.subr.bf16.mxu0 0
    %1477 = vmatpush1.bf16.msra.mxu0 0
    %1478 = vmatprep.subr.bf16.mxu0 0
    %1479 = vmatpush1.bf16.msra.mxu0 0
    %1480 = vmatprep.subr.bf16.mxu0 0
    %1481 = vmatpush1.bf16.msra.mxu0 0
    %1482 = vmatprep.subr.bf16.mxu0 0
    %1483 = vmatpush1.bf16.msra.mxu0 0
    %1484 = vmatprep.subr.bf16.mxu0 0
    %1485 = vmatpush1.bf16.msra.mxu0 0
    %1486 = vmatprep.subr.bf16.mxu0 0
    %1487 = vmatpush1.bf16.msra.mxu0 0
    %1488 = vmatprep.subr.bf16.mxu0 0
    %1489 = vmatpush1.bf16.msra.mxu0 0
    %1490 = vmatprep.subr.bf16.mxu0 0
    %1491 = vmatpush1.bf16.msra.mxu0 0
    %1492 = vmatprep.subr.bf16.mxu0 0
    %1493 = vmatpush1.bf16.msra.mxu0 0
    %1494 = vmatprep.subr.bf16.mxu0 0
    %1495 = vmatpush1.bf16.msra.mxu0 0
    %1496 = vmatprep.mubr.bf16.mxu0 0
    %1497 = vmatmul.mubr.bf16.gmra.mrb[0].mxu0 %v1462
    %v1498 = vpop.f32.mrb[0].mxu0
    %v1499 = vadd.f32 %v187, %v1498
    %v1500 = vpop.f32.mrb[0].mxu0
    %v1501 = vpop.f32.mrb[0].mxu0
    %v1502 = vadd.f32 %v187, %v1501
    %v1503 = vpop.f32.mrb[0].mxu0
    %1504 = vdwg.mxu0
    %v1505 = vpack.c.bf16 %v1417, %v1414
    %v1506 = vpack.c.bf16 %v1458, %v1455
    %v1508 = vsel %vm79, %v1505, 0
    %v1511 = vsel %vm79, %v1506, 0
    %1513 = vmatprep.subr.bf16.mxu0 0
    %1514 = vmatpush1.bf16.xpose.msra.mxu0 %v1511
    %1515 = vmatprep.subr.bf16.mxu0 0
    %1516 = vmatpush1.bf16.xpose.msra.mxu0 0
    %1517 = vmatprep.subr.bf16.mxu0 0
    %1518 = vmatpush1.bf16.xpose.msra.mxu0 0
    %1519 = vmatprep.subr.bf16.mxu0 0
    %1520 = vmatpush1.bf16.xpose.msra.mxu0 0
    %1521 = vmatprep.subr.bf16.mxu0 0
    %1522 = vmatpush1.bf16.xpose.msra.mxu0 0
    %1523 = vmatprep.subr.bf16.mxu0 0
    %1524 = vmatpush1.bf16.xpose.msra.mxu0 0
    %1525 = vmatprep.subr.bf16.mxu0 0
    %1526 = vmatpush1.bf16.xpose.msra.mxu0 0
    %1527 = vmatprep.subr.bf16.mxu0 0
    %1528 = vmatpush1.bf16.xpose.msra.mxu0 0
    %1529 = vmatprep.subr.bf16.mxu0 0
    %1530 = vmatpush1.bf16.xpose.msra.mxu0 0
    %1531 = vmatprep.subr.bf16.mxu0 0
    %1532 = vmatpush1.bf16.xpose.msra.mxu0 0
    %1533 = vmatprep.subr.bf16.mxu0 0
    %1534 = vmatpush1.bf16.xpose.msra.mxu0 0
    %1535 = vmatprep.subr.bf16.mxu0 0
    %1536 = vmatpush1.bf16.xpose.msra.mxu0 0
    %1537 = vmatprep.subr.bf16.mxu0 0
    %1538 = vmatpush1.bf16.xpose.msra.mxu0 0
    %1539 = vmatprep.subr.bf16.mxu0 0
    %1540 = vmatpush1.bf16.xpose.msra.mxu0 0
    %1541 = vmatprep.subr.bf16.mxu0 0
    %1542 = vmatpush1.bf16.xpose.msra.mxu0 0
    %1543 = vmatprep.subr.bf16.mxu0 0
    %1544 = vmatpush1.bf16.xpose.msra.mxu0 0
    %1545 = vmatprep.mubr.bf16.mxu0 0
    %1546 = vmatmul.mubr.bf16.gmra.mrb[0].mxu0 %v1508
    %v1547 = vpop.f32.mrb[0].mxu0
    %v1548 = vadd.f32 0.0, %v1547
    %v1549 = vpop.f32.mrb[0].mxu0
    %v1550 = vpop.f32.mrb[0].mxu0
    %v1551 = vadd.f32 0.0, %v1550
    %v1552 = vpop.f32.mrb[0].mxu0
    %1553 = vdwg.mxu0
    %v1554 = vmul.f32 %v1548, 0.17677669
    %v1555 = vmul.f32 %v1551, 0.17677669
    %v1556 = vsel %vm296, %v1554, -inf
    %1557 = vmax.xlane.f32.xlu0 %v1556
    %v1558 = vpop.xlane.xlu0 %1557
    %v1559 = vsel %vm296, %v1555, -inf
    %1560 = vmax.xlane.f32.xlu0 %v1559
    %v1561 = vpop.xlane.xlu0 %1560
    %v1562 = vsub.f32 %v1554, %v1558
    %v1563 = vsub.f32 %v1555, %v1561
    %v1564 = vmul.f32 %v1562, 1.442695
    %v1565 = vpow.pop %v1564
    %v1566 = vmul.f32 %v1563, 1.442695
    %v1567 = vpow.pop %v1566
    %v1568 = vsel %vm296, %v1565, 0.0
    %1569 = vadd.xlane.f32.xlu0 %v1568
    %v1570 = vpop.xlane.xlu0 %1569
    %v1571 = vsel %vm296, %v1567, 0.0
    %1572 = vadd.xlane.f32.xlu0 %v1571
    %v1573 = vpop.xlane.xlu0 %1572
    %v1574 = vrcp.pop %v1570
    %v1575 = vrcp.pop %v1573
    %v1576 = vmul.f32 %v1565, %v1574
    %v1577 = vmul.f32 %v1567, %v1575
    %s1578 = scalar_lea.vmem [#allocation4], 16
    %1579 = vst.msk [vmem:[%s1578] sm:$0xff] %vm296, %v1576
    %1580 = vst.msk [vmem:[%s1578 + $0x8] sm:$0xff] %vm296, %v1577
    %v1581 = vpack.c.bf16 %v1577, %v1576
    %v1582 = vpack.c.bf16 %v1502, %v1499
    %v1584 = vsel %vm296, %v1581, 0
    %1586 = vmatprep.subr.bf16.mxu0 0
    %1587 = vmatpush1.bf16.msra.mxu0 %v1582
    %1588 = vmatprep.subr.bf16.mxu0 0
    %1589 = vmatpush1.bf16.msra.mxu0 0
    %1590 = vmatprep.subr.bf16.mxu0 0
    %1591 = vmatpush1.bf16.msra.mxu0 0
    %1592 = vmatprep.subr.bf16.mxu0 0
    %1593 = vmatpush1.bf16.msra.mxu0 0
    %1594 = vmatprep.subr.bf16.mxu0 0
    %1595 = vmatpush1.bf16.msra.mxu0 0
    %1596 = vmatprep.subr.bf16.mxu0 0
    %1597 = vmatpush1.bf16.msra.mxu0 0
    %1598 = vmatprep.subr.bf16.mxu0 0
    %1599 = vmatpush1.bf16.msra.mxu0 0
    %1600 = vmatprep.subr.bf16.mxu0 0
    %1601 = vmatpush1.bf16.msra.mxu0 0
    %1602 = vmatprep.subr.bf16.mxu0 0
    %1603 = vmatpush1.bf16.msra.mxu0 0
    %1604 = vmatprep.subr.bf16.mxu0 0
    %1605 = vmatpush1.bf16.msra.mxu0 0
    %1606 = vmatprep.subr.bf16.mxu0 0
    %1607 = vmatpush1.bf16.msra.mxu0 0
    %1608 = vmatprep.subr.bf16.mxu0 0
    %1609 = vmatpush1.bf16.msra.mxu0 0
    %1610 = vmatprep.subr.bf16.mxu0 0
    %1611 = vmatpush1.bf16.msra.mxu0 0
    %1612 = vmatprep.subr.bf16.mxu0 0
    %1613 = vmatpush1.bf16.msra.mxu0 0
    %1614 = vmatprep.subr.bf16.mxu0 0
    %1615 = vmatpush1.bf16.msra.mxu0 0
    %1616 = vmatprep.subr.bf16.mxu0 0
    %1617 = vmatpush1.bf16.msra.mxu0 0
    %1618 = vmatprep.mubr.bf16.mxu0 0
    %1619 = vmatmul.mubr.bf16.gmra.mrb[0].mxu0 %v1584
    %v1620 = vpop.f32.mrb[0].mxu0
    %v1621 = vadd.f32 0.0, %v1620
    %v1622 = vpop.f32.mrb[0].mxu0
    %v1623 = vpop.f32.mrb[0].mxu0
    %v1624 = vadd.f32 0.0, %v1623
    %v1625 = vpop.f32.mrb[0].mxu0
    %1626 = vdwg.mxu0
    %v1627 = vadd.f32 %v1369, %v1621
    %v1628 = vadd.f32 %v1370, %v1624
    %v1629 = vmul.f32 %v1627, 0.0625
    %v1630 = vmul.f32 %v1628, 0.0625
    %v1631 = vld [vmem:[%s9] sm:$0x1]
    %v1632 = vpack.c.bf16 %v1629, %v1629
    %v1633 = vld [vmem:[%s8] sm:$0xf]
    %v1634 = vld [vmem:[%s8 + $0x4] sm:$0xf]
    %v1635 = vld [vmem:[%s8 + $0x8] sm:$0xf]
    %v1636 = vld [vmem:[%s8 + $0xc] sm:$0xf]
    %v1641 = vunpack.c.l.b16 %v1633
    %v1642 = vunpack.c.l.b16 %v1634
    %v1643 = vunpack.c.l.b16 %v1635
    %v1644 = vunpack.c.l.b16 %v1636
    %v1645 = vpack.c.b16 %v1642, %v1641
    %v1646 = vpack.c.b16 %v1644, %v1643
    %v1650 = vsel %vm79, %v1632, 0
    %1652 = vmatprep.subr.bf16.mxu0 0
    %1653 = vmatpush1.bf16.msra.mxu0 %v1645
    %1654 = vmatprep.subr.bf16.mxu0 0
    %1655 = vmatpush1.bf16.msra.mxu0 %v1646
    %1656 = vmatprep.subr.bf16.mxu0 0
    %1657 = vmatpush1.bf16.msra.mxu0 0
    %1658 = vmatprep.subr.bf16.mxu0 0
    %1659 = vmatpush1.bf16.msra.mxu0 0
    %1660 = vmatprep.subr.bf16.mxu0 0
    %1661 = vmatpush1.bf16.msra.mxu0 0
    %1662 = vmatprep.subr.bf16.mxu0 0
    %1663 = vmatpush1.bf16.msra.mxu0 0
    %1664 = vmatprep.subr.bf16.mxu0 0
    %1665 = vmatpush1.bf16.msra.mxu0 0
    %1666 = vmatprep.subr.bf16.mxu0 0
    %1667 = vmatpush1.bf16.msra.mxu0 0
    %1668 = vmatprep.subr.bf16.mxu0 0
    %1669 = vmatpush1.bf16.msra.mxu0 0
    %1670 = vmatprep.subr.bf16.mxu0 0
    %1671 = vmatpush1.bf16.msra.mxu0 0
    %1672 = vmatprep.subr.bf16.mxu0 0
    %1673 = vmatpush1.bf16.msra.mxu0 0
    %1674 = vmatprep.subr.bf16.mxu0 0
    %1675 = vmatpush1.bf16.msra.mxu0 0
    %1676 = vmatprep.subr.bf16.mxu0 0
    %1677 = vmatpush1.bf16.msra.mxu0 0
    %1678 = vmatprep.subr.bf16.mxu0 0
    %1679 = vmatpush1.bf16.msra.mxu0 0
    %1680 = vmatprep.subr.bf16.mxu0 0
    %1681 = vmatpush1.bf16.msra.mxu0 0
    %1682 = vmatprep.subr.bf16.mxu0 0
    %1683 = vmatpush1.bf16.msra.mxu0 0
    %1684 = vmatprep.mubr.bf16.mxu0 0
    %1685 = vmatmul.mubr.bf16.gmra.mrb[0].mxu0 %v1650
    %v1686 = vpop.f32.mrb[0].mxu0
    %v1687 = vadd.f32 0.0, %v1686
    %v1688 = vpop.f32.mrb[0].mxu0
    %v1689 = vpop.f32.mrb[0].mxu0
    %v1690 = vpop.f32.mrb[0].mxu0
    %1691 = vdwg.mxu0
    %v1692 = vadd.f32 %v1631, %v1687
    %v1693 = vld [vmem:[%s433] sm:$0xf]
    %v1694 = vld [vmem:[%s433 + $0x4] sm:$0xf]
    %v1695 = vld [vmem:[%s433 + $0x8] sm:$0xf]
    %v1696 = vld [vmem:[%s433 + $0xc] sm:$0xf]
    %v1697 = vshrl.u32 %v1632, 16
    %v1703 = vunpack.c.l.b16 %v1693
    %v1704 = vunpack.c.l.b16 %v1694
    %v1705 = vunpack.c.l.b16 %v1695
    %v1706 = vunpack.c.l.b16 %v1696
    %v1707 = vpack.c.b16 %v1704, %v1703
    %v1708 = vpack.c.b16 %v1706, %v1705
    %v1712 = vsel %vm79, %v1697, 0
    %1714 = vmatprep.subr.bf16.mxu0 0
    %1715 = vmatpush1.bf16.msra.mxu0 %v1707
    %1716 = vmatprep.subr.bf16.mxu0 0
    %1717 = vmatpush1.bf16.msra.mxu0 %v1708
    %1718 = vmatprep.subr.bf16.mxu0 0
    %1719 = vmatpush1.bf16.msra.mxu0 0
    %1720 = vmatprep.subr.bf16.mxu0 0
    %1721 = vmatpush1.bf16.msra.mxu0 0
    %1722 = vmatprep.subr.bf16.mxu0 0
    %1723 = vmatpush1.bf16.msra.mxu0 0
    %1724 = vmatprep.subr.bf16.mxu0 0
    %1725 = vmatpush1.bf16.msra.mxu0 0
    %1726 = vmatprep.subr.bf16.mxu0 0
    %1727 = vmatpush1.bf16.msra.mxu0 0
    %1728 = vmatprep.subr.bf16.mxu0 0
    %1729 = vmatpush1.bf16.msra.mxu0 0
    %1730 = vmatprep.subr.bf16.mxu0 0
    %1731 = vmatpush1.bf16.msra.mxu0 0
    %1732 = vmatprep.subr.bf16.mxu0 0
    %1733 = vmatpush1.bf16.msra.mxu0 0
    %1734 = vmatprep.subr.bf16.mxu0 0
    %1735 = vmatpush1.bf16.msra.mxu0 0
    %1736 = vmatprep.subr.bf16.mxu0 0
    %1737 = vmatpush1.bf16.msra.mxu0 0
    %1738 = vmatprep.subr.bf16.mxu0 0
    %1739 = vmatpush1.bf16.msra.mxu0 0
    %1740 = vmatprep.subr.bf16.mxu0 0
    %1741 = vmatpush1.bf16.msra.mxu0 0
    %1742 = vmatprep.subr.bf16.mxu0 0
    %1743 = vmatpush1.bf16.msra.mxu0 0
    %1744 = vmatprep.subr.bf16.mxu0 0
    %1745 = vmatpush1.bf16.msra.mxu0 0
    %1746 = vmatprep.mubr.bf16.mxu0 0
    %1747 = vmatmul.mubr.bf16.gmra.mrb[0].mxu0 %v1712
    %v1748 = vpop.f32.mrb[0].mxu0
    %v1749 = vadd.f32 0.0, %v1748
    %v1750 = vpop.f32.mrb[0].mxu0
    %v1751 = vpop.f32.mrb[0].mxu0
    %v1752 = vpop.f32.mrb[0].mxu0
    %1753 = vdwg.mxu0
    %v1754 = vadd.f32 %v1692, %v1749
    %v1755 = vld [vmem:[%s496] sm:$0xf]
    %v1756 = vld [vmem:[%s496 + $0x4] sm:$0xf]
    %v1757 = vld [vmem:[%s496 + $0x8] sm:$0xf]
    %v1758 = vld [vmem:[%s496 + $0xc] sm:$0xf]
    %v1760 = vrot.slane %v1632, 1
    %v1765 = vunpack.c.l.b16 %v1755
    %v1766 = vunpack.c.l.b16 %v1756
    %v1767 = vunpack.c.l.b16 %v1757
    %v1768 = vunpack.c.l.b16 %v1758
    %v1769 = vpack.c.b16 %v1766, %v1765
    %v1770 = vpack.c.b16 %v1768, %v1767
    %v1774 = vsel %vm79, %v1760, 0
    %1776 = vmatprep.subr.bf16.mxu0 0
    %1777 = vmatpush1.bf16.msra.mxu0 %v1769
    %1778 = vmatprep.subr.bf16.mxu0 0
    %1779 = vmatpush1.bf16.msra.mxu0 %v1770
    %1780 = vmatprep.subr.bf16.mxu0 0
    %1781 = vmatpush1.bf16.msra.mxu0 0
    %1782 = vmatprep.subr.bf16.mxu0 0
    %1783 = vmatpush1.bf16.msra.mxu0 0
    %1784 = vmatprep.subr.bf16.mxu0 0
    %1785 = vmatpush1.bf16.msra.mxu0 0
    %1786 = vmatprep.subr.bf16.mxu0 0
    %1787 = vmatpush1.bf16.msra.mxu0 0
    %1788 = vmatprep.subr.bf16.mxu0 0
    %1789 = vmatpush1.bf16.msra.mxu0 0
    %1790 = vmatprep.subr.bf16.mxu0 0
    %1791 = vmatpush1.bf16.msra.mxu0 0
    %1792 = vmatprep.subr.bf16.mxu0 0
    %1793 = vmatpush1.bf16.msra.mxu0 0
    %1794 = vmatprep.subr.bf16.mxu0 0
    %1795 = vmatpush1.bf16.msra.mxu0 0
    %1796 = vmatprep.subr.bf16.mxu0 0
    %1797 = vmatpush1.bf16.msra.mxu0 0
    %1798 = vmatprep.subr.bf16.mxu0 0
    %1799 = vmatpush1.bf16.msra.mxu0 0
    %1800 = vmatprep.subr.bf16.mxu0 0
    %1801 = vmatpush1.bf16.msra.mxu0 0
    %1802 = vmatprep.subr.bf16.mxu0 0
    %1803 = vmatpush1.bf16.msra.mxu0 0
    %1804 = vmatprep.subr.bf16.mxu0 0
    %1805 = vmatpush1.bf16.msra.mxu0 0
    %1806 = vmatprep.subr.bf16.mxu0 0
    %1807 = vmatpush1.bf16.msra.mxu0 0
    %1808 = vmatprep.mubr.bf16.mxu0 0
    %1809 = vmatmul.mubr.bf16.gmra.mrb[0].mxu0 %v1774
    %v1810 = vpop.f32.mrb[0].mxu0
    %v1811 = vadd.f32 0.0, %v1810
    %v1812 = vpop.f32.mrb[0].mxu0
    %v1813 = vpop.f32.mrb[0].mxu0
    %v1814 = vpop.f32.mrb[0].mxu0
    %1815 = vdwg.mxu0
    %v1816 = vadd.f32 %v1754, %v1811
    %v1817 = vld [vmem:[%s559] sm:$0xf]
    %v1818 = vld [vmem:[%s559 + $0x4] sm:$0xf]
    %v1819 = vld [vmem:[%s559 + $0x8] sm:$0xf]
    %v1820 = vld [vmem:[%s559 + $0xc] sm:$0xf]
    %v1821 = vrot.slane %v1697, 1
    %v1826 = vunpack.c.l.b16 %v1817
    %v1827 = vunpack.c.l.b16 %v1818
    %v1828 = vunpack.c.l.b16 %v1819
    %v1829 = vunpack.c.l.b16 %v1820
    %v1830 = vpack.c.b16 %v1827, %v1826
    %v1831 = vpack.c.b16 %v1829, %v1828
    %v1835 = vsel %vm79, %v1821, 0
    %1837 = vmatprep.subr.bf16.mxu0 0
    %1838 = vmatpush1.bf16.msra.mxu0 %v1830
    %1839 = vmatprep.subr.bf16.mxu0 0
    %1840 = vmatpush1.bf16.msra.mxu0 %v1831
    %1841 = vmatprep.subr.bf16.mxu0 0
    %1842 = vmatpush1.bf16.msra.mxu0 0
    %1843 = vmatprep.subr.bf16.mxu0 0
    %1844 = vmatpush1.bf16.msra.mxu0 0
    %1845 = vmatprep.subr.bf16.mxu0 0
    %1846 = vmatpush1.bf16.msra.mxu0 0
    %1847 = vmatprep.subr.bf16.mxu0 0
    %1848 = vmatpush1.bf16.msra.mxu0 0
    %1849 = vmatprep.subr.bf16.mxu0 0
    %1850 = vmatpush1.bf16.msra.mxu0 0
    %1851 = vmatprep.subr.bf16.mxu0 0
    %1852 = vmatpush1.bf16.msra.mxu0 0
    %1853 = vmatprep.subr.bf16.mxu0 0
    %1854 = vmatpush1.bf16.msra.mxu0 0
    %1855 = vmatprep.subr.bf16.mxu0 0
    %1856 = vmatpush1.bf16.msra.mxu0 0
    %1857 = vmatprep.subr.bf16.mxu0 0
    %1858 = vmatpush1.bf16.msra.mxu0 0
    %1859 = vmatprep.subr.bf16.mxu0 0
    %1860 = vmatpush1.bf16.msra.mxu0 0
    %1861 = vmatprep.subr.bf16.mxu0 0
    %1862 = vmatpush1.bf16.msra.mxu0 0
    %1863 = vmatprep.subr.bf16.mxu0 0
    %1864 = vmatpush1.bf16.msra.mxu0 0
    %1865 = vmatprep.subr.bf16.mxu0 0
    %1866 = vmatpush1.bf16.msra.mxu0 0
    %1867 = vmatprep.subr.bf16.mxu0 0
    %1868 = vmatpush1.bf16.msra.mxu0 0
    %1869 = vmatprep.mubr.bf16.mxu0 0
    %1870 = vmatmul.mubr.bf16.gmra.mrb[0].mxu0 %v1835
    %v1871 = vpop.f32.mrb[0].mxu0
    %v1872 = vadd.f32 0.0, %v1871
    %v1873 = vpop.f32.mrb[0].mxu0
    %v1874 = vpop.f32.mrb[0].mxu0
    %v1875 = vpop.f32.mrb[0].mxu0
    %1876 = vdwg.mxu0
    %v1877 = vadd.f32 %v1816, %v1872
    %v1878 = vld [vmem:[%s621] sm:$0xf]
    %v1879 = vld [vmem:[%s621 + $0x4] sm:$0xf]
    %v1880 = vld [vmem:[%s621 + $0x8] sm:$0xf]
    %v1881 = vld [vmem:[%s621 + $0xc] sm:$0xf]
    %v1882 = vrot.slane %v1632, 2
    %v1887 = vunpack.c.l.b16 %v1878
    %v1888 = vunpack.c.l.b16 %v1879
    %v1889 = vunpack.c.l.b16 %v1880
    %v1890 = vunpack.c.l.b16 %v1881
    %v1891 = vpack.c.b16 %v1888, %v1887
    %v1892 = vpack.c.b16 %v1890, %v1889
    %v1896 = vsel %vm79, %v1882, 0
    %1898 = vmatprep.subr.bf16.mxu0 0
    %1899 = vmatpush1.bf16.msra.mxu0 %v1891
    %1900 = vmatprep.subr.bf16.mxu0 0
    %1901 = vmatpush1.bf16.msra.mxu0 %v1892
    %1902 = vmatprep.subr.bf16.mxu0 0
    %1903 = vmatpush1.bf16.msra.mxu0 0
    %1904 = vmatprep.subr.bf16.mxu0 0
    %1905 = vmatpush1.bf16.msra.mxu0 0
    %1906 = vmatprep.subr.bf16.mxu0 0
    %1907 = vmatpush1.bf16.msra.mxu0 0
    %1908 = vmatprep.subr.bf16.mxu0 0
    %1909 = vmatpush1.bf16.msra.mxu0 0
    %1910 = vmatprep.subr.bf16.mxu0 0
    %1911 = vmatpush1.bf16.msra.mxu0 0
    %1912 = vmatprep.subr.bf16.mxu0 0
    %1913 = vmatpush1.bf16.msra.mxu0 0
    %1914 = vmatprep.subr.bf16.mxu0 0
    %1915 = vmatpush1.bf16.msra.mxu0 0
    %1916 = vmatprep.subr.bf16.mxu0 0
    %1917 = vmatpush1.bf16.msra.mxu0 0
    %1918 = vmatprep.subr.bf16.mxu0 0
    %1919 = vmatpush1.bf16.msra.mxu0 0
    %1920 = vmatprep.subr.bf16.mxu0 0
    %1921 = vmatpush1.bf16.msra.mxu0 0
    %1922 = vmatprep.subr.bf16.mxu0 0
    %1923 = vmatpush1.bf16.msra.mxu0 0
    %1924 = vmatprep.subr.bf16.mxu0 0
    %1925 = vmatpush1.bf16.msra.mxu0 0
    %1926 = vmatprep.subr.bf16.mxu0 0
    %1927 = vmatpush1.bf16.msra.mxu0 0
    %1928 = vmatprep.subr.bf16.mxu0 0
    %1929 = vmatpush1.bf16.msra.mxu0 0
    %1930 = vmatprep.mubr.bf16.mxu0 0
    %1931 = vmatmul.mubr.bf16.gmra.mrb[0].mxu0 %v1896
    %v1932 = vpop.f32.mrb[0].mxu0
    %v1933 = vadd.f32 0.0, %v1932
    %v1934 = vpop.f32.mrb[0].mxu0
    %v1935 = vpop.f32.mrb[0].mxu0
    %v1936 = vpop.f32.mrb[0].mxu0
    %1937 = vdwg.mxu0
    %v1938 = vadd.f32 %v1877, %v1933
    %v1939 = vld [vmem:[%s683] sm:$0xf]
    %v1940 = vld [vmem:[%s683 + $0x4] sm:$0xf]
    %v1941 = vld [vmem:[%s683 + $0x8] sm:$0xf]
    %v1942 = vld [vmem:[%s683 + $0xc] sm:$0xf]
    %v1943 = vrot.slane %v1697, 2
    %v1948 = vunpack.c.l.b16 %v1939
    %v1949 = vunpack.c.l.b16 %v1940
    %v1950 = vunpack.c.l.b16 %v1941
    %v1951 = vunpack.c.l.b16 %v1942
    %v1952 = vpack.c.b16 %v1949, %v1948
    %v1953 = vpack.c.b16 %v1951, %v1950
    %v1957 = vsel %vm79, %v1943, 0
    %1959 = vmatprep.subr.bf16.mxu0 0
    %1960 = vmatpush1.bf16.msra.mxu0 %v1952
    %1961 = vmatprep.subr.bf16.mxu0 0
    %1962 = vmatpush1.bf16.msra.mxu0 %v1953
    %1963 = vmatprep.subr.bf16.mxu0 0
    %1964 = vmatpush1.bf16.msra.mxu0 0
    %1965 = vmatprep.subr.bf16.mxu0 0
    %1966 = vmatpush1.bf16.msra.mxu0 0
    %1967 = vmatprep.subr.bf16.mxu0 0
    %1968 = vmatpush1.bf16.msra.mxu0 0
    %1969 = vmatprep.subr.bf16.mxu0 0
    %1970 = vmatpush1.bf16.msra.mxu0 0
    %1971 = vmatprep.subr.bf16.mxu0 0
    %1972 = vmatpush1.bf16.msra.mxu0 0
    %1973 = vmatprep.subr.bf16.mxu0 0
    %1974 = vmatpush1.bf16.msra.mxu0 0
    %1975 = vmatprep.subr.bf16.mxu0 0
    %1976 = vmatpush1.bf16.msra.mxu0 0
    %1977 = vmatprep.subr.bf16.mxu0 0
    %1978 = vmatpush1.bf16.msra.mxu0 0
    %1979 = vmatprep.subr.bf16.mxu0 0
    %1980 = vmatpush1.bf16.msra.mxu0 0
    %1981 = vmatprep.subr.bf16.mxu0 0
    %1982 = vmatpush1.bf16.msra.mxu0 0
    %1983 = vmatprep.subr.bf16.mxu0 0
    %1984 = vmatpush1.bf16.msra.mxu0 0
    %1985 = vmatprep.subr.bf16.mxu0 0
    %1986 = vmatpush1.bf16.msra.mxu0 0
    %1987 = vmatprep.subr.bf16.mxu0 0
    %1988 = vmatpush1.bf16.msra.mxu0 0
    %1989 = vmatprep.subr.bf16.mxu0 0
    %1990 = vmatpush1.bf16.msra.mxu0 0
    %1991 = vmatprep.mubr.bf16.mxu0 0
    %1992 = vmatmul.mubr.bf16.gmra.mrb[0].mxu0 %v1957
    %v1993 = vpop.f32.mrb[0].mxu0
    %v1994 = vadd.f32 0.0, %v1993
    %v1995 = vpop.f32.mrb[0].mxu0
    %v1996 = vpop.f32.mrb[0].mxu0
    %v1997 = vpop.f32.mrb[0].mxu0
    %1998 = vdwg.mxu0
    %v1999 = vadd.f32 %v1938, %v1994
    %v2000 = vld [vmem:[%s745] sm:$0xf]
    %v2001 = vld [vmem:[%s745 + $0x4] sm:$0xf]
    %v2002 = vld [vmem:[%s745 + $0x8] sm:$0xf]
    %v2003 = vld [vmem:[%s745 + $0xc] sm:$0xf]
    %v2004 = vrot.slane %v1632, 3
    %v2009 = vunpack.c.l.b16 %v2000
    %v2010 = vunpack.c.l.b16 %v2001
    %v2011 = vunpack.c.l.b16 %v2002
    %v2012 = vunpack.c.l.b16 %v2003
    %v2013 = vpack.c.b16 %v2010, %v2009
    %v2014 = vpack.c.b16 %v2012, %v2011
    %v2018 = vsel %vm79, %v2004, 0
    %2020 = vmatprep.subr.bf16.mxu0 0
    %2021 = vmatpush1.bf16.msra.mxu0 %v2013
    %2022 = vmatprep.subr.bf16.mxu0 0
    %2023 = vmatpush1.bf16.msra.mxu0 %v2014
    %2024 = vmatprep.subr.bf16.mxu0 0
    %2025 = vmatpush1.bf16.msra.mxu0 0
    %2026 = vmatprep.subr.bf16.mxu0 0
    %2027 = vmatpush1.bf16.msra.mxu0 0
    %2028 = vmatprep.subr.bf16.mxu0 0
    %2029 = vmatpush1.bf16.msra.mxu0 0
    %2030 = vmatprep.subr.bf16.mxu0 0
    %2031 = vmatpush1.bf16.msra.mxu0 0
    %2032 = vmatprep.subr.bf16.mxu0 0
    %2033 = vmatpush1.bf16.msra.mxu0 0
    %2034 = vmatprep.subr.bf16.mxu0 0
    %2035 = vmatpush1.bf16.msra.mxu0 0
    %2036 = vmatprep.subr.bf16.mxu0 0
    %2037 = vmatpush1.bf16.msra.mxu0 0
    %2038 = vmatprep.subr.bf16.mxu0 0
    %2039 = vmatpush1.bf16.msra.mxu0 0
    %2040 = vmatprep.subr.bf16.mxu0 0
    %2041 = vmatpush1.bf16.msra.mxu0 0
    %2042 = vmatprep.subr.bf16.mxu0 0
    %2043 = vmatpush1.bf16.msra.mxu0 0
    %2044 = vmatprep.subr.bf16.mxu0 0
    %2045 = vmatpush1.bf16.msra.mxu0 0
    %2046 = vmatprep.subr.bf16.mxu0 0
    %2047 = vmatpush1.bf16.msra.mxu0 0
    %2048 = vmatprep.subr.bf16.mxu0 0
    %2049 = vmatpush1.bf16.msra.mxu0 0
    %2050 = vmatprep.subr.bf16.mxu0 0
    %2051 = vmatpush1.bf16.msra.mxu0 0
    %2052 = vmatprep.mubr.bf16.mxu0 0
    %2053 = vmatmul.mubr.bf16.gmra.mrb[0].mxu0 %v2018
    %v2054 = vpop.f32.mrb[0].mxu0
    %v2055 = vadd.f32 0.0, %v2054
    %v2056 = vpop.f32.mrb[0].mxu0
    %v2057 = vpop.f32.mrb[0].mxu0
    %v2058 = vpop.f32.mrb[0].mxu0
    %2059 = vdwg.mxu0
    %v2060 = vadd.f32 %v1999, %v2055
    %v2061 = vld [vmem:[%s807] sm:$0xf]
    %v2062 = vld [vmem:[%s807 + $0x4] sm:$0xf]
    %v2063 = vld [vmem:[%s807 + $0x8] sm:$0xf]
    %v2064 = vld [vmem:[%s807 + $0xc] sm:$0xf]
    %v2065 = vrot.slane %v1697, 3
    %v2070 = vunpack.c.l.b16 %v2061
    %v2071 = vunpack.c.l.b16 %v2062
    %v2072 = vunpack.c.l.b16 %v2063
    %v2073 = vunpack.c.l.b16 %v2064
    %v2074 = vpack.c.b16 %v2071, %v2070
    %v2075 = vpack.c.b16 %v2073, %v2072
    %v2079 = vsel %vm79, %v2065, 0
    %2081 = vmatprep.subr.bf16.mxu0 0
    %2082 = vmatpush1.bf16.msra.mxu0 %v2074
    %2083 = vmatprep.subr.bf16.mxu0 0
    %2084 = vmatpush1.bf16.msra.mxu0 %v2075
    %2085 = vmatprep.subr.bf16.mxu0 0
    %2086 = vmatpush1.bf16.msra.mxu0 0
    %2087 = vmatprep.subr.bf16.mxu0 0
    %2088 = vmatpush1.bf16.msra.mxu0 0
    %2089 = vmatprep.subr.bf16.mxu0 0
    %2090 = vmatpush1.bf16.msra.mxu0 0
    %2091 = vmatprep.subr.bf16.mxu0 0
    %2092 = vmatpush1.bf16.msra.mxu0 0
    %2093 = vmatprep.subr.bf16.mxu0 0
    %2094 = vmatpush1.bf16.msra.mxu0 0
    %2095 = vmatprep.subr.bf16.mxu0 0
    %2096 = vmatpush1.bf16.msra.mxu0 0
    %2097 = vmatprep.subr.bf16.mxu0 0
    %2098 = vmatpush1.bf16.msra.mxu0 0
    %2099 = vmatprep.subr.bf16.mxu0 0
    %2100 = vmatpush1.bf16.msra.mxu0 0
    %2101 = vmatprep.subr.bf16.mxu0 0
    %2102 = vmatpush1.bf16.msra.mxu0 0
    %2103 = vmatprep.subr.bf16.mxu0 0
    %2104 = vmatpush1.bf16.msra.mxu0 0
    %2105 = vmatprep.subr.bf16.mxu0 0
    %2106 = vmatpush1.bf16.msra.mxu0 0
    %2107 = vmatprep.subr.bf16.mxu0 0
    %2108 = vmatpush1.bf16.msra.mxu0 0
    %2109 = vmatprep.subr.bf16.mxu0 0
    %2110 = vmatpush1.bf16.msra.mxu0 0
    %2111 = vmatprep.subr.bf16.mxu0 0
    %2112 = vmatpush1.bf16.msra.mxu0 0
    %2113 = vmatprep.mubr.bf16.mxu0 0
    %2114 = vmatmul.mubr.bf16.gmra.mrb[0].mxu0 %v2079
    %v2115 = vpop.f32.mrb[0].mxu0
    %v2116 = vadd.f32 0.0, %v2115
    %v2117 = vpop.f32.mrb[0].mxu0
    %v2118 = vpop.f32.mrb[0].mxu0
    %v2119 = vpop.f32.mrb[0].mxu0
    %2120 = vdwg.mxu0
    %v2121 = vadd.f32 %v2060, %v2116
    %v2122 = vpack.c.bf16 %v1630, %v1630
    %v2123 = vld [vmem:[%s870] sm:$0xf]
    %v2124 = vld [vmem:[%s870 + $0x4] sm:$0xf]
    %v2125 = vld [vmem:[%s870 + $0x8] sm:$0xf]
    %v2126 = vld [vmem:[%s870 + $0xc] sm:$0xf]
    %v2131 = vunpack.c.l.b16 %v2123
    %v2132 = vunpack.c.l.b16 %v2124
    %v2133 = vunpack.c.l.b16 %v2125
    %v2134 = vunpack.c.l.b16 %v2126
    %v2135 = vpack.c.b16 %v2132, %v2131
    %v2136 = vpack.c.b16 %v2134, %v2133
    %v2140 = vsel %vm79, %v2122, 0
    %2142 = vmatprep.subr.bf16.mxu0 0
    %2143 = vmatpush1.bf16.msra.mxu0 %v2135
    %2144 = vmatprep.subr.bf16.mxu0 0
    %2145 = vmatpush1.bf16.msra.mxu0 %v2136
    %2146 = vmatprep.subr.bf16.mxu0 0
    %2147 = vmatpush1.bf16.msra.mxu0 0
    %2148 = vmatprep.subr.bf16.mxu0 0
    %2149 = vmatpush1.bf16.msra.mxu0 0
    %2150 = vmatprep.subr.bf16.mxu0 0
    %2151 = vmatpush1.bf16.msra.mxu0 0
    %2152 = vmatprep.subr.bf16.mxu0 0
    %2153 = vmatpush1.bf16.msra.mxu0 0
    %2154 = vmatprep.subr.bf16.mxu0 0
    %2155 = vmatpush1.bf16.msra.mxu0 0
    %2156 = vmatprep.subr.bf16.mxu0 0
    %2157 = vmatpush1.bf16.msra.mxu0 0
    %2158 = vmatprep.subr.bf16.mxu0 0
    %2159 = vmatpush1.bf16.msra.mxu0 0
    %2160 = vmatprep.subr.bf16.mxu0 0
    %2161 = vmatpush1.bf16.msra.mxu0 0
    %2162 = vmatprep.subr.bf16.mxu0 0
    %2163 = vmatpush1.bf16.msra.mxu0 0
    %2164 = vmatprep.subr.bf16.mxu0 0
    %2165 = vmatpush1.bf16.msra.mxu0 0
    %2166 = vmatprep.subr.bf16.mxu0 0
    %2167 = vmatpush1.bf16.msra.mxu0 0
    %2168 = vmatprep.subr.bf16.mxu0 0
    %2169 = vmatpush1.bf16.msra.mxu0 0
    %2170 = vmatprep.subr.bf16.mxu0 0
    %2171 = vmatpush1.bf16.msra.mxu0 0
    %2172 = vmatprep.subr.bf16.mxu0 0
    %2173 = vmatpush1.bf16.msra.mxu0 0
    %2174 = vmatprep.mubr.bf16.mxu0 0
    %2175 = vmatmul.mubr.bf16.gmra.mrb[0].mxu0 %v2140
    %v2176 = vpop.f32.mrb[0].mxu0
    %v2177 = vadd.f32 0.0, %v2176
    %v2178 = vpop.f32.mrb[0].mxu0
    %v2179 = vpop.f32.mrb[0].mxu0
    %v2180 = vpop.f32.mrb[0].mxu0
    %2181 = vdwg.mxu0
    %v2182 = vadd.f32 %v2121, %v2177
    %v2183 = vld [vmem:[%s931] sm:$0xf]
    %v2184 = vld [vmem:[%s931 + $0x4] sm:$0xf]
    %v2185 = vld [vmem:[%s931 + $0x8] sm:$0xf]
    %v2186 = vld [vmem:[%s931 + $0xc] sm:$0xf]
    %v2187 = vshrl.u32 %v2122, 16
    %v2193 = vunpack.c.l.b16 %v2183
    %v2194 = vunpack.c.l.b16 %v2184
    %v2195 = vunpack.c.l.b16 %v2185
    %v2196 = vunpack.c.l.b16 %v2186
    %v2197 = vpack.c.b16 %v2194, %v2193
    %v2198 = vpack.c.b16 %v2196, %v2195
    %v2202 = vsel %vm79, %v2187, 0
    %2204 = vmatprep.subr.bf16.mxu0 0
    %2205 = vmatpush1.bf16.msra.mxu0 %v2197
    %2206 = vmatprep.subr.bf16.mxu0 0
    %2207 = vmatpush1.bf16.msra.mxu0 %v2198
    %2208 = vmatprep.subr.bf16.mxu0 0
    %2209 = vmatpush1.bf16.msra.mxu0 0
    %2210 = vmatprep.subr.bf16.mxu0 0
    %2211 = vmatpush1.bf16.msra.mxu0 0
    %2212 = vmatprep.subr.bf16.mxu0 0
    %2213 = vmatpush1.bf16.msra.mxu0 0
    %2214 = vmatprep.subr.bf16.mxu0 0
    %2215 = vmatpush1.bf16.msra.mxu0 0
    %2216 = vmatprep.subr.bf16.mxu0 0
    %2217 = vmatpush1.bf16.msra.mxu0 0
    %2218 = vmatprep.subr.bf16.mxu0 0
    %2219 = vmatpush1.bf16.msra.mxu0 0
    %2220 = vmatprep.subr.bf16.mxu0 0
    %2221 = vmatpush1.bf16.msra.mxu0 0
    %2222 = vmatprep.subr.bf16.mxu0 0
    %2223 = vmatpush1.bf16.msra.mxu0 0
    %2224 = vmatprep.subr.bf16.mxu0 0
    %2225 = vmatpush1.bf16.msra.mxu0 0
    %2226 = vmatprep.subr.bf16.mxu0 0
    %2227 = vmatpush1.bf16.msra.mxu0 0
    %2228 = vmatprep.subr.bf16.mxu0 0
    %2229 = vmatpush1.bf16.msra.mxu0 0
    %2230 = vmatprep.subr.bf16.mxu0 0
    %2231 = vmatpush1.bf16.msra.mxu0 0
    %2232 = vmatprep.subr.bf16.mxu0 0
    %2233 = vmatpush1.bf16.msra.mxu0 0
    %2234 = vmatprep.subr.bf16.mxu0 0
    %2235 = vmatpush1.bf16.msra.mxu0 0
    %2236 = vmatprep.mubr.bf16.mxu0 0
    %2237 = vmatmul.mubr.bf16.gmra.mrb[0].mxu0 %v2202
    %v2238 = vpop.f32.mrb[0].mxu0
    %v2239 = vadd.f32 0.0, %v2238
    %v2240 = vpop.f32.mrb[0].mxu0
    %v2241 = vpop.f32.mrb[0].mxu0
    %v2242 = vpop.f32.mrb[0].mxu0
    %2243 = vdwg.mxu0
    %v2244 = vadd.f32 %v2182, %v2239
    %v2245 = vld [vmem:[%s994] sm:$0xf]
    %v2246 = vld [vmem:[%s994 + $0x4] sm:$0xf]
    %v2247 = vld [vmem:[%s994 + $0x8] sm:$0xf]
    %v2248 = vld [vmem:[%s994 + $0xc] sm:$0xf]
    %v2250 = vrot.slane %v2122, 1
    %v2255 = vunpack.c.l.b16 %v2245
    %v2256 = vunpack.c.l.b16 %v2246
    %v2257 = vunpack.c.l.b16 %v2247
    %v2258 = vunpack.c.l.b16 %v2248
    %v2259 = vpack.c.b16 %v2256, %v2255
    %v2260 = vpack.c.b16 %v2258, %v2257
    %v2264 = vsel %vm79, %v2250, 0
    %2266 = vmatprep.subr.bf16.mxu0 0
    %2267 = vmatpush1.bf16.msra.mxu0 %v2259
    %2268 = vmatprep.subr.bf16.mxu0 0
    %2269 = vmatpush1.bf16.msra.mxu0 %v2260
    %2270 = vmatprep.subr.bf16.mxu0 0
    %2271 = vmatpush1.bf16.msra.mxu0 0
    %2272 = vmatprep.subr.bf16.mxu0 0
    %2273 = vmatpush1.bf16.msra.mxu0 0
    %2274 = vmatprep.subr.bf16.mxu0 0
    %2275 = vmatpush1.bf16.msra.mxu0 0
    %2276 = vmatprep.subr.bf16.mxu0 0
    %2277 = vmatpush1.bf16.msra.mxu0 0
    %2278 = vmatprep.subr.bf16.mxu0 0
    %2279 = vmatpush1.bf16.msra.mxu0 0
    %2280 = vmatprep.subr.bf16.mxu0 0
    %2281 = vmatpush1.bf16.msra.mxu0 0
    %2282 = vmatprep.subr.bf16.mxu0 0
    %2283 = vmatpush1.bf16.msra.mxu0 0
    %2284 = vmatprep.subr.bf16.mxu0 0
    %2285 = vmatpush1.bf16.msra.mxu0 0
    %2286 = vmatprep.subr.bf16.mxu0 0
    %2287 = vmatpush1.bf16.msra.mxu0 0
    %2288 = vmatprep.subr.bf16.mxu0 0
    %2289 = vmatpush1.bf16.msra.mxu0 0
    %2290 = vmatprep.subr.bf16.mxu0 0
    %2291 = vmatpush1.bf16.msra.mxu0 0
    %2292 = vmatprep.subr.bf16.mxu0 0
    %2293 = vmatpush1.bf16.msra.mxu0 0
    %2294 = vmatprep.subr.bf16.mxu0 0
    %2295 = vmatpush1.bf16.msra.mxu0 0
    %2296 = vmatprep.subr.bf16.mxu0 0
    %2297 = vmatpush1.bf16.msra.mxu0 0
    %2298 = vmatprep.mubr.bf16.mxu0 0
    %2299 = vmatmul.mubr.bf16.gmra.mrb[0].mxu0 %v2264
    %v2300 = vpop.f32.mrb[0].mxu0
    %v2301 = vadd.f32 0.0, %v2300
    %v2302 = vpop.f32.mrb[0].mxu0
    %v2303 = vpop.f32.mrb[0].mxu0
    %v2304 = vpop.f32.mrb[0].mxu0
    %2305 = vdwg.mxu0
    %v2306 = vadd.f32 %v2244, %v2301
    %v2307 = vld [vmem:[%s1057] sm:$0xf]
    %v2308 = vld [vmem:[%s1057 + $0x4] sm:$0xf]
    %v2309 = vld [vmem:[%s1057 + $0x8] sm:$0xf]
    %v2310 = vld [vmem:[%s1057 + $0xc] sm:$0xf]
    %v2311 = vrot.slane %v2187, 1
    %v2316 = vunpack.c.l.b16 %v2307
    %v2317 = vunpack.c.l.b16 %v2308
    %v2318 = vunpack.c.l.b16 %v2309
    %v2319 = vunpack.c.l.b16 %v2310
    %v2320 = vpack.c.b16 %v2317, %v2316
    %v2321 = vpack.c.b16 %v2319, %v2318
    %v2325 = vsel %vm79, %v2311, 0
    %2327 = vmatprep.subr.bf16.mxu0 0
    %2328 = vmatpush1.bf16.msra.mxu0 %v2320
    %2329 = vmatprep.subr.bf16.mxu0 0
    %2330 = vmatpush1.bf16.msra.mxu0 %v2321
    %2331 = vmatprep.subr.bf16.mxu0 0
    %2332 = vmatpush1.bf16.msra.mxu0 0
    %2333 = vmatprep.subr.bf16.mxu0 0
    %2334 = vmatpush1.bf16.msra.mxu0 0
    %2335 = vmatprep.subr.bf16.mxu0 0
    %2336 = vmatpush1.bf16.msra.mxu0 0
    %2337 = vmatprep.subr.bf16.mxu0 0
    %2338 = vmatpush1.bf16.msra.mxu0 0
    %2339 = vmatprep.subr.bf16.mxu0 0
    %2340 = vmatpush1.bf16.msra.mxu0 0
    %2341 = vmatprep.subr.bf16.mxu0 0
    %2342 = vmatpush1.bf16.msra.mxu0 0
    %2343 = vmatprep.subr.bf16.mxu0 0
    %2344 = vmatpush1.bf16.msra.mxu0 0
    %2345 = vmatprep.subr.bf16.mxu0 0
    %2346 = vmatpush1.bf16.msra.mxu0 0
    %2347 = vmatprep.subr.bf16.mxu0 0
    %2348 = vmatpush1.bf16.msra.mxu0 0
    %2349 = vmatprep.subr.bf16.mxu0 0
    %2350 = vmatpush1.bf16.msra.mxu0 0
    %2351 = vmatprep.subr.bf16.mxu0 0
    %2352 = vmatpush1.bf16.msra.mxu0 0
    %2353 = vmatprep.subr.bf16.mxu0 0
    %2354 = vmatpush1.bf16.msra.mxu0 0
    %2355 = vmatprep.subr.bf16.mxu0 0
    %2356 = vmatpush1.bf16.msra.mxu0 0
    %2357 = vmatprep.subr.bf16.mxu0 0
    %2358 = vmatpush1.bf16.msra.mxu0 0
    %2359 = vmatprep.mubr.bf16.mxu0 0
    %2360 = vmatmul.mubr.bf16.gmra.mrb[0].mxu0 %v2325
    %v2361 = vpop.f32.mrb[0].mxu0
    %v2362 = vadd.f32 0.0, %v2361
    %v2363 = vpop.f32.mrb[0].mxu0
    %v2364 = vpop.f32.mrb[0].mxu0
    %v2365 = vpop.f32.mrb[0].mxu0
    %2366 = vdwg.mxu0
    %v2367 = vadd.f32 %v2306, %v2362
    %v2368 = vld [vmem:[%s1119] sm:$0xf]
    %v2369 = vld [vmem:[%s1119 + $0x4] sm:$0xf]
    %v2370 = vld [vmem:[%s1119 + $0x8] sm:$0xf]
    %v2371 = vld [vmem:[%s1119 + $0xc] sm:$0xf]
    %v2372 = vrot.slane %v2122, 2
    %v2377 = vunpack.c.l.b16 %v2368
    %v2378 = vunpack.c.l.b16 %v2369
    %v2379 = vunpack.c.l.b16 %v2370
    %v2380 = vunpack.c.l.b16 %v2371
    %v2381 = vpack.c.b16 %v2378, %v2377
    %v2382 = vpack.c.b16 %v2380, %v2379
    %v2386 = vsel %vm79, %v2372, 0
    %2388 = vmatprep.subr.bf16.mxu0 0
    %2389 = vmatpush1.bf16.msra.mxu0 %v2381
    %2390 = vmatprep.subr.bf16.mxu0 0
    %2391 = vmatpush1.bf16.msra.mxu0 %v2382
    %2392 = vmatprep.subr.bf16.mxu0 0
    %2393 = vmatpush1.bf16.msra.mxu0 0
    %2394 = vmatprep.subr.bf16.mxu0 0
    %2395 = vmatpush1.bf16.msra.mxu0 0
    %2396 = vmatprep.subr.bf16.mxu0 0
    %2397 = vmatpush1.bf16.msra.mxu0 0
    %2398 = vmatprep.subr.bf16.mxu0 0
    %2399 = vmatpush1.bf16.msra.mxu0 0
    %2400 = vmatprep.subr.bf16.mxu0 0
    %2401 = vmatpush1.bf16.msra.mxu0 0
    %2402 = vmatprep.subr.bf16.mxu0 0
    %2403 = vmatpush1.bf16.msra.mxu0 0
    %2404 = vmatprep.subr.bf16.mxu0 0
    %2405 = vmatpush1.bf16.msra.mxu0 0
    %2406 = vmatprep.subr.bf16.mxu0 0
    %2407 = vmatpush1.bf16.msra.mxu0 0
    %2408 = vmatprep.subr.bf16.mxu0 0
    %2409 = vmatpush1.bf16.msra.mxu0 0
    %2410 = vmatprep.subr.bf16.mxu0 0
    %2411 = vmatpush1.bf16.msra.mxu0 0
    %2412 = vmatprep.subr.bf16.mxu0 0
    %2413 = vmatpush1.bf16.msra.mxu0 0
    %2414 = vmatprep.subr.bf16.mxu0 0
    %2415 = vmatpush1.bf16.msra.mxu0 0
    %2416 = vmatprep.subr.bf16.mxu0 0
    %2417 = vmatpush1.bf16.msra.mxu0 0
    %2418 = vmatprep.subr.bf16.mxu0 0
    %2419 = vmatpush1.bf16.msra.mxu0 0
    %2420 = vmatprep.mubr.bf16.mxu0 0
    %2421 = vmatmul.mubr.bf16.gmra.mrb[0].mxu0 %v2386
    %v2422 = vpop.f32.mrb[0].mxu0
    %v2423 = vadd.f32 0.0, %v2422
    %v2424 = vpop.f32.mrb[0].mxu0
    %v2425 = vpop.f32.mrb[0].mxu0
    %v2426 = vpop.f32.mrb[0].mxu0
    %2427 = vdwg.mxu0
    %v2428 = vadd.f32 %v2367, %v2423
    %v2429 = vld [vmem:[%s1181] sm:$0xf]
    %v2430 = vld [vmem:[%s1181 + $0x4] sm:$0xf]
    %v2431 = vld [vmem:[%s1181 + $0x8] sm:$0xf]
    %v2432 = vld [vmem:[%s1181 + $0xc] sm:$0xf]
    %v2433 = vrot.slane %v2187, 2
    %v2438 = vunpack.c.l.b16 %v2429
    %v2439 = vunpack.c.l.b16 %v2430
    %v2440 = vunpack.c.l.b16 %v2431
    %v2441 = vunpack.c.l.b16 %v2432
    %v2442 = vpack.c.b16 %v2439, %v2438
    %v2443 = vpack.c.b16 %v2441, %v2440
    %v2447 = vsel %vm79, %v2433, 0
    %2449 = vmatprep.subr.bf16.mxu0 0
    %2450 = vmatpush1.bf16.msra.mxu0 %v2442
    %2451 = vmatprep.subr.bf16.mxu0 0
    %2452 = vmatpush1.bf16.msra.mxu0 %v2443
    %2453 = vmatprep.subr.bf16.mxu0 0
    %2454 = vmatpush1.bf16.msra.mxu0 0
    %2455 = vmatprep.subr.bf16.mxu0 0
    %2456 = vmatpush1.bf16.msra.mxu0 0
    %2457 = vmatprep.subr.bf16.mxu0 0
    %2458 = vmatpush1.bf16.msra.mxu0 0
    %2459 = vmatprep.subr.bf16.mxu0 0
    %2460 = vmatpush1.bf16.msra.mxu0 0
    %2461 = vmatprep.subr.bf16.mxu0 0
    %2462 = vmatpush1.bf16.msra.mxu0 0
    %2463 = vmatprep.subr.bf16.mxu0 0
    %2464 = vmatpush1.bf16.msra.mxu0 0
    %2465 = vmatprep.subr.bf16.mxu0 0
    %2466 = vmatpush1.bf16.msra.mxu0 0
    %2467 = vmatprep.subr.bf16.mxu0 0
    %2468 = vmatpush1.bf16.msra.mxu0 0
    %2469 = vmatprep.subr.bf16.mxu0 0
    %2470 = vmatpush1.bf16.msra.mxu0 0
    %2471 = vmatprep.subr.bf16.mxu0 0
    %2472 = vmatpush1.bf16.msra.mxu0 0
    %2473 = vmatprep.subr.bf16.mxu0 0
    %2474 = vmatpush1.bf16.msra.mxu0 0
    %2475 = vmatprep.subr.bf16.mxu0 0
    %2476 = vmatpush1.bf16.msra.mxu0 0
    %2477 = vmatprep.subr.bf16.mxu0 0
    %2478 = vmatpush1.bf16.msra.mxu0 0
    %2479 = vmatprep.subr.bf16.mxu0 0
    %2480 = vmatpush1.bf16.msra.mxu0 0
    %2481 = vmatprep.mubr.bf16.mxu0 0
    %2482 = vmatmul.mubr.bf16.gmra.mrb[0].mxu0 %v2447
    %v2483 = vpop.f32.mrb[0].mxu0
    %v2484 = vadd.f32 0.0, %v2483
    %v2485 = vpop.f32.mrb[0].mxu0
    %v2486 = vpop.f32.mrb[0].mxu0
    %v2487 = vpop.f32.mrb[0].mxu0
    %2488 = vdwg.mxu0
    %v2489 = vadd.f32 %v2428, %v2484
    %v2490 = vld [vmem:[%s1243] sm:$0xf]
    %v2491 = vld [vmem:[%s1243 + $0x4] sm:$0xf]
    %v2492 = vld [vmem:[%s1243 + $0x8] sm:$0xf]
    %v2493 = vld [vmem:[%s1243 + $0xc] sm:$0xf]
    %v2494 = vrot.slane %v2122, 3
    %v2499 = vunpack.c.l.b16 %v2490
    %v2500 = vunpack.c.l.b16 %v2491
    %v2501 = vunpack.c.l.b16 %v2492
    %v2502 = vunpack.c.l.b16 %v2493
    %v2503 = vpack.c.b16 %v2500, %v2499
    %v2504 = vpack.c.b16 %v2502, %v2501
    %v2508 = vsel %vm79, %v2494, 0
    %2510 = vmatprep.subr.bf16.mxu0 0
    %2511 = vmatpush1.bf16.msra.mxu0 %v2503
    %2512 = vmatprep.subr.bf16.mxu0 0
    %2513 = vmatpush1.bf16.msra.mxu0 %v2504
    %2514 = vmatprep.subr.bf16.mxu0 0
    %2515 = vmatpush1.bf16.msra.mxu0 0
    %2516 = vmatprep.subr.bf16.mxu0 0
    %2517 = vmatpush1.bf16.msra.mxu0 0
    %2518 = vmatprep.subr.bf16.mxu0 0
    %2519 = vmatpush1.bf16.msra.mxu0 0
    %2520 = vmatprep.subr.bf16.mxu0 0
    %2521 = vmatpush1.bf16.msra.mxu0 0
    %2522 = vmatprep.subr.bf16.mxu0 0
    %2523 = vmatpush1.bf16.msra.mxu0 0
    %2524 = vmatprep.subr.bf16.mxu0 0
    %2525 = vmatpush1.bf16.msra.mxu0 0
    %2526 = vmatprep.subr.bf16.mxu0 0
    %2527 = vmatpush1.bf16.msra.mxu0 0
    %2528 = vmatprep.subr.bf16.mxu0 0
    %2529 = vmatpush1.bf16.msra.mxu0 0
    %2530 = vmatprep.subr.bf16.mxu0 0
    %2531 = vmatpush1.bf16.msra.mxu0 0
    %2532 = vmatprep.subr.bf16.mxu0 0
    %2533 = vmatpush1.bf16.msra.mxu0 0
    %2534 = vmatprep.subr.bf16.mxu0 0
    %2535 = vmatpush1.bf16.msra.mxu0 0
    %2536 = vmatprep.subr.bf16.mxu0 0
    %2537 = vmatpush1.bf16.msra.mxu0 0
    %2538 = vmatprep.subr.bf16.mxu0 0
    %2539 = vmatpush1.bf16.msra.mxu0 0
    %2540 = vmatprep.subr.bf16.mxu0 0
    %2541 = vmatpush1.bf16.msra.mxu0 0
    %2542 = vmatprep.mubr.bf16.mxu0 0
    %2543 = vmatmul.mubr.bf16.gmra.mrb[0].mxu0 %v2508
    %v2544 = vpop.f32.mrb[0].mxu0
    %v2545 = vadd.f32 0.0, %v2544
    %v2546 = vpop.f32.mrb[0].mxu0
    %v2547 = vpop.f32.mrb[0].mxu0
    %v2548 = vpop.f32.mrb[0].mxu0
    %2549 = vdwg.mxu0
    %v2550 = vadd.f32 %v2489, %v2545
    %v2551 = vld [vmem:[%s1305] sm:$0xf]
    %v2552 = vld [vmem:[%s1305 + $0x4] sm:$0xf]
    %v2553 = vld [vmem:[%s1305 + $0x8] sm:$0xf]
    %v2554 = vld [vmem:[%s1305 + $0xc] sm:$0xf]
    %v2555 = vrot.slane %v2187, 3
    %v2560 = vunpack.c.l.b16 %v2551
    %v2561 = vunpack.c.l.b16 %v2552
    %v2562 = vunpack.c.l.b16 %v2553
    %v2563 = vunpack.c.l.b16 %v2554
    %v2564 = vpack.c.b16 %v2561, %v2560
    %v2565 = vpack.c.b16 %v2563, %v2562
    %v2569 = vsel %vm79, %v2555, 0
    %2571 = vmatprep.subr.bf16.mxu0 0
    %2572 = vmatpush1.bf16.msra.mxu0 %v2564
    %2573 = vmatprep.subr.bf16.mxu0 0
    %2574 = vmatpush1.bf16.msra.mxu0 %v2565
    %2575 = vmatprep.subr.bf16.mxu0 0
    %2576 = vmatpush1.bf16.msra.mxu0 0
    %2577 = vmatprep.subr.bf16.mxu0 0
    %2578 = vmatpush1.bf16.msra.mxu0 0
    %2579 = vmatprep.subr.bf16.mxu0 0
    %2580 = vmatpush1.bf16.msra.mxu0 0
    %2581 = vmatprep.subr.bf16.mxu0 0
    %2582 = vmatpush1.bf16.msra.mxu0 0
    %2583 = vmatprep.subr.bf16.mxu0 0
    %2584 = vmatpush1.bf16.msra.mxu0 0
    %2585 = vmatprep.subr.bf16.mxu0 0
    %2586 = vmatpush1.bf16.msra.mxu0 0
    %2587 = vmatprep.subr.bf16.mxu0 0
    %2588 = vmatpush1.bf16.msra.mxu0 0
    %2589 = vmatprep.subr.bf16.mxu0 0
    %2590 = vmatpush1.bf16.msra.mxu0 0
    %2591 = vmatprep.subr.bf16.mxu0 0
    %2592 = vmatpush1.bf16.msra.mxu0 0
    %2593 = vmatprep.subr.bf16.mxu0 0
    %2594 = vmatpush1.bf16.msra.mxu0 0
    %2595 = vmatprep.subr.bf16.mxu0 0
    %2596 = vmatpush1.bf16.msra.mxu0 0
    %2597 = vmatprep.subr.bf16.mxu0 0
    %2598 = vmatpush1.bf16.msra.mxu0 0
    %2599 = vmatprep.subr.bf16.mxu0 0
    %2600 = vmatpush1.bf16.msra.mxu0 0
    %2601 = vmatprep.subr.bf16.mxu0 0
    %2602 = vmatpush1.bf16.msra.mxu0 0
    %2603 = vmatprep.mubr.bf16.mxu0 0
    %2604 = vmatmul.mubr.bf16.gmra.mrb[0].mxu0 %v2569
    %v2605 = vpop.f32.mrb[0].mxu0
    %v2606 = vadd.f32 0.0, %v2605
    %v2607 = vpop.f32.mrb[0].mxu0
    %v2608 = vpop.f32.mrb[0].mxu0
    %v2609 = vpop.f32.mrb[0].mxu0
    %2610 = vdwg.mxu0
    %v2611 = vadd.f32 %v2550, %v2606
    %s2612 = scalar_lea.vmem [#allocation2], 1
    %2613 = vst [vmem:[%s2612] sm:$0x1] %v2611
    // Predicated region
    $region42: #{forward.5} parent=1 // pred_check
      _
    $region43: #{forward.5} parent=1 // pred_check_branch
      %2615 = sbr.rel (0) target = $region45
    $region44: #{forward.5} parent=1 // pred_region
      %s2617 = ssub.s32 32, 32
      %2618 = vsyncadd [#allocation3], %s2617
      %s2619 = sshll.u32 [#allocation2], 4
      %s2620 = int_to_ptr.vmem [resolvable:$true] %s2619
      %2625 = dma.vmem_to_hbm [thread:$0]  %s2620, 32, %s10, [#allocation3], 16, 16, 1
    $region45: #{forward.5} parent=1 // pred_fallthru
      _
    // Predicated region
    $region46: #{forward.5} parent=1 // pred_check
      _
    $region47: #{forward.5} parent=1 // pred_check_branch
      %2627 = sbr.rel (0) target = $region49
    $region48: #{forward.5} parent=1 // pred_region
      %s2629 = ssub.s32 512, 512
      %2630 = vsyncadd [#allocation5], %s2629
      %s2631 = sshll.u32 [#allocation4], 4
      %s2632 = int_to_ptr.vmem [resolvable:$true] %s2631
      %2637 = dma.vmem_to_hbm [thread:$0]  %s2632, 512, %s11, [#allocation5], 128, 128, 8
    $region49: #{forward.5} parent=1 // pred_fallthru
      _
    // Predicated region
    $region50: #{forward.5} parent=1 // pred_check
      _
    $region51: #{forward.5} parent=1 // pred_check_branch
      %2639 = sbr.rel (0) target = $region53
    $region52: #{forward.5} parent=1 // pred_region
      %2640 = dma.done [#allocation3], 32
    $region53: #{forward.5} parent=1 // pred_fallthru
      _
    // Predicated region
    $region54: #{forward.5} parent=1 // pred_check
      _
    $region55: #{forward.5} parent=1 // pred_check_branch
      %2642 = sbr.rel (0) target = $region57
    $region56: #{forward.5} parent=1 // pred_region
      %2643 = dma.done [#allocation5], 512
    $region57: #{forward.5} parent=1 // pred_fallthru
      _
    %2644 = vsyncpa [#allocation3], 1
    %2645 = vsyncpa [#allocation5], 1

</llo_original>
